<compile_context>
chip_gen: v5e
topology: v5e:2x2
jax: 0.10.0
libtpu: 0.0.40
codegen_flags: <defaults>
</compile_context>

<pallas_src>
import jax
import jax.numpy as jnp
from jax.experimental import pallas as pl
from jax.experimental.pallas import tpu as pltpu


def _round_up(x, m):
    return ((x + m - 1) // m) * m


LAYER_DIMS = [210, 1024, 1024, 256, 64, 16, 2]
NUM_LAYERS = len(LAYER_DIMS) - 1
IN_DIM = LAYER_DIMS[0]                                   # 210 (kept unpadded)

# Padded per-layer shapes.  Input dim of fc1 stays 210; everything else is
# rounded up to a multiple of 128 (lane width).
PAD_IN = [IN_DIM] + [_round_up(d, 128) for d in LAYER_DIMS[1:-1]]   # [210,1024,1024,256,128,128]
PAD_OUT = [_round_up(d, 128) for d in LAYER_DIMS[1:]]               # [1024,1024,256,128,128,128]
OUT_PAD = PAD_OUT[-1]                                               # 128

# Static lane offsets of each (padded) bias inside the packed bias row.
BIAS_OFF = []
_off = 0
for _i in range(NUM_LAYERS):
    BIAS_OFF.append(_off)
    _off += PAD_OUT[_i]
TOTAL_BIAS = _off                                        # 2688 (all offsets % 128 == 0)

WEIGHT_ELEMS = sum(PAD_IN[i] * PAD_OUT[i] for i in range(NUM_LAYERS))


# ----------------------------- Pallas kernel --------------------------------
def mlp_kernel(x_ref, w1, w2, w3, w4, w5, w6, b_ref, o_ref):
    w_refs = (w1, w2, w3, w4, w5, w6)

    def layer(h, idx, relu):
        dout = PAD_OUT[idx]
        off = BIAS_OFF[idx]
        # Native bf16 x bf16 -> f32 accumulate on the MXU (no weight up-cast).
        y = jnp.dot(h, w_refs[idx][...], preferred_element_type=jnp.float32)
        y = y + b_ref[:, off:off + dout]      # (1, dout) f32 broadcasts over tile
        if relu:
            y = jnp.maximum(y, 0.0)
            y = y.astype(jnp.bfloat16)        # keep inter-layer activations bf16
        return y

    h = x_ref[...]                            # (tb, 210) bf16
    # TODO(synk): nn.Dropout(p=0.4) is identity in eval mode; train-mode dropout
    # (pltpu.prng_random_bits mask) is intentionally not applied here.
    for i in range(NUM_LAYERS - 1):
        h = layer(h, i, relu=True)            # fc1..fc5 + ReLU (bf16 chain)
    o_ref[...] = layer(h, NUM_LAYERS - 1, relu=False)   # fc6, f32 output


# ------------------------------ Param handling --------------------------------
def init_params(key):
    """Deterministic PyTorch-style init: U(-1/sqrt(fan_in), 1/sqrt(fan_in))."""
    params = []
    for i in range(NUM_LAYERS):
        fan_in, fan_out = LAYER_DIMS[i], LAYER_DIMS[i + 1]
        key, kw, kb = jax.random.split(key, 3)
        bound = 1.0 / (fan_in ** 0.5)
        w = jax.random.uniform(kw, (fan_in, fan_out), jnp.float32, -bound, bound)
        b = jax.random.uniform(kb, (fan_out,), jnp.float32, -bound, bound)
        params.append((w, b))
    return params


def prepare_params(params):
    """One-time: zero-pad weights to (PAD_IN, PAD_OUT), cast to bf16, pack biases."""
    padded_ws = []
    bias_parts = []
    for i, (w, b) in enumerate(params):
        din_p, dout_p = PAD_IN[i], PAD_OUT[i]
        w_p = jnp.pad(w, ((0, din_p - w.shape[0]), (0, dout_p - w.shape[1])))
        padded_ws.append(w_p.astype(jnp.bfloat16))
        bias_parts.append(jnp.pad(b, (0, dout_p - b.shape[0])))
    packed_b = jnp.concatenate(bias_parts)[None, :].astype(jnp.float32)  # (1, 2688)
    return tuple(padded_ws), packed_b


# ------------------------------ Forward wrapper --------------------------------
@jax.jit
def net2530_forward(x, padded_ws, packed_b):
    batch, in_dim = x.shape
    assert in_dim == IN_DIM

    # Batch tile: single tile for tiny batches; otherwise up to 512 rows while
    # guaranteeing >= 2 grid steps (so v7x can shard across its 2 TensorCores).
    if batch < 16:
        tb = _round_up(max(batch, 8), 8)
    else:
        tb = min(512, _round_up((batch + 1) // 2, 8))
    pad_batch = _round_up(batch, tb)
    grid = (pad_batch // tb,)

    # bf16 input (halves input DMA); only the batch dim needs padding — the
    # feature dim stays 210 because W1 is stored unpadded on its input dim.
    x_bf = x.astype(jnp.bfloat16)
    if pad_batch != batch:
        x_bf = jnp.pad(x_bf, ((0, pad_batch - batch), (0, 0)))

    in_specs = [pl.BlockSpec((tb, IN_DIM), lambda i: (i, 0))]
    for li in range(NUM_LAYERS):
        in_specs.append(
            pl.BlockSpec((PAD_IN[li], PAD_OUT[li]), lambda i: (0, 0),
                         pipeline_mode=pl.Buffered(1)))      # resident, single-buffered
    in_specs.append(
        pl.BlockSpec((1, TOTAL_BIAS), lambda i: (0, 0),
                     pipeline_mode=pl.Buffered(1)))
    out_spec = pl.BlockSpec((tb, OUT_PAD), lambda i: (i, 0))

    cost = pl.CostEstimate(
        flops=2 * pad_batch * WEIGHT_ELEMS,
        transcendentals=0,
        bytes_accessed=(WEIGHT_ELEMS * 2                    # bf16 weights
                        + TOTAL_BIAS * 4                    # packed bias
                        + pad_batch * IN_DIM * 2            # bf16 input
                        + pad_batch * OUT_PAD * 4))         # f32 output

    out_p = pl.pallas_call(
        mlp_kernel,
        out_shape=jax.ShapeDtypeStruct((pad_batch, OUT_PAD), jnp.float32),
        grid=grid,
        in_specs=in_specs,
        out_specs=out_spec,
        compiler_params=pltpu.CompilerParams(
            dimension_semantics=("parallel",),
            vmem_limit_bytes=32 << 20),
        cost_estimate=cost,
    )(x_bf, *padded_ws, packed_b)

    return out_p[:batch, :LAYER_DIMS[-1]]


def reference_forward_f32(x, params):
    """Pure-f32 JAX reference on the ORIGINAL (unpadded, f32) parameters."""
    h = x.astype(jnp.float32)
    for i, (w, b) in enumerate(params):
        h = jnp.dot(h, w, precision=jax.lax.Precision.HIGHEST) + b
        if i < NUM_LAYERS - 1:
            h = jnp.maximum(h, 0.0)
    return h


if __name__ == "__main__":
    key = jax.random.PRNGKey(0)
    k_params, k_x = jax.random.split(key)

    params = init_params(k_params)
    padded_ws, packed_b = prepare_params(params)   # one-time padding / bf16 cast

    # Small-batch test (single grid step).
    x = jax.random.normal(k_x, (2, 210), jnp.float32)
    out = jax.block_until_ready(net2530_forward(x, padded_ws, packed_b))
    ref = reference_forward_f32(x, params)
    assert out.shape == (2, 2), out.shape
    assert jnp.allclose(out, ref, atol=3e-2, rtol=3e-2), (out, ref)

    # Medium-batch test (>= 2 grid steps: exercises the dual-TC / multi-tile path).
    x2 = jax.random.normal(jax.random.PRNGKey(1), (64, 210), jnp.float32)
    out2 = jax.block_until_ready(net2530_forward(x2, padded_ws, packed_b))
    ref2 = reference_forward_f32(x2, params)
    assert out2.shape == (64, 2), out2.shape
    assert jnp.allclose(out2, ref2, atol=3e-2, rtol=3e-2), (out2, ref2)

    print("KERNEL_OK")
</pallas_src>

<mosaic_0001>
module attributes {stable_mosaic.version = 11 : i64} {
  func.func @mlp_kernel(%arg0: i32, %arg1: memref<8x210xbf16, #tpu.memory_space<vmem>>, %arg2: memref<210x1024xbf16, #tpu.memory_space<vmem>>, %arg3: memref<1024x1024xbf16, #tpu.memory_space<vmem>>, %arg4: memref<1024x256xbf16, #tpu.memory_space<vmem>>, %arg5: memref<256x128xbf16, #tpu.memory_space<vmem>>, %arg6: memref<128x128xbf16, #tpu.memory_space<vmem>>, %arg7: memref<128x128xbf16, #tpu.memory_space<vmem>>, %arg8: memref<1x2688xf32, #tpu.memory_space<vmem>>, %arg9: memref<8x128xf32, #tpu.memory_space<vmem>>) attributes {dimension_semantics = [#tpu.dimension_semantics<parallel>], iteration_bounds = array<i64: 1>, scalar_prefetch = 0 : i64, scratch_operands = 0 : i64, tpu.core_type = #tpu.core_type<tc>, window_params = [{transform_indices = @transform_0, window_bounds = array<i64: 8, 210>}, {pipeline_mode = #tpu.pipeline_mode<synchronous>, transform_indices = @transform_1, window_bounds = array<i64: 210, 1024>}, {pipeline_mode = #tpu.pipeline_mode<synchronous>, transform_indices = @transform_2, window_bounds = array<i64: 1024, 1024>}, {pipeline_mode = #tpu.pipeline_mode<synchronous>, transform_indices = @transform_3, window_bounds = array<i64: 1024, 256>}, {pipeline_mode = #tpu.pipeline_mode<synchronous>, transform_indices = @transform_4, window_bounds = array<i64: 256, 128>}, {pipeline_mode = #tpu.pipeline_mode<synchronous>, transform_indices = @transform_5, window_bounds = array<i64: 128, 128>}, {pipeline_mode = #tpu.pipeline_mode<synchronous>, transform_indices = @transform_6, window_bounds = array<i64: 128, 128>}, {pipeline_mode = #tpu.pipeline_mode<synchronous>, transform_indices = @transform_7, window_bounds = array<i64: 1, 2688>}, {transform_indices = @transform_8, window_bounds = array<i64: 8, 128>}]} {
    %c0 = arith.constant 0 : index
    %c0_0 = arith.constant 0 : index
    %0 = vector.load %arg1[%c0, %c0_0] : memref<8x210xbf16, #tpu.memory_space<vmem>>, vector<8x210xbf16>
    %c0_1 = arith.constant 0 : index
    %c0_2 = arith.constant 0 : index
    %1 = vector.load %arg2[%c0_1, %c0_2] : memref<210x1024xbf16, #tpu.memory_space<vmem>>, vector<210x1024xbf16>
    %cst = arith.constant dense<0.000000e+00> : vector<8x1024xf32>
    %2 = tpu.matmul %0, %1, %cst {dimension_numbers = #tpu.dot_dimension_numbers<[1], [0], [0], [1], [0, 0, 1, 1], [], []>} : vector<8x210xbf16>, vector<210x1024xbf16>, vector<8x1024xf32> -> vector<8x1024xf32>
    %c0_3 = arith.constant 0 : index
    %c0_4 = arith.constant 0 : index
    %3 = vector.load %arg8[%c0_3, %c0_4] : memref<1x2688xf32, #tpu.memory_space<vmem>>, vector<1x1024xf32>
    %4 = vector.broadcast %3 : vector<1x1024xf32> to vector<8x1024xf32>
    %5 = arith.addf %2, %4 : vector<8x1024xf32>
    %cst_5 = arith.constant 0.000000e+00 : f32
    %6 = vector.broadcast %cst_5 : f32 to vector<8x1024xf32>
    %7 = arith.maximumf %5, %6 : vector<8x1024xf32>
    %8 = arith.truncf %7 : vector<8x1024xf32> to vector<8x1024xbf16>
    %c0_6 = arith.constant 0 : index
    %c0_7 = arith.constant 0 : index
    %9 = vector.load %arg3[%c0_6, %c0_7] : memref<1024x1024xbf16, #tpu.memory_space<vmem>>, vector<1024x1024xbf16>
    %cst_8 = arith.constant dense<0.000000e+00> : vector<8x1024xf32>
    %10 = tpu.matmul %8, %9, %cst_8 {dimension_numbers = #tpu.dot_dimension_numbers<[1], [0], [0], [1], [0, 0, 1, 1], [], []>} : vector<8x1024xbf16>, vector<1024x1024xbf16>, vector<8x1024xf32> -> vector<8x1024xf32>
    %c0_9 = arith.constant 0 : index
    %c1024 = arith.constant 1024 : index
    %11 = vector.load %arg8[%c0_9, %c1024] : memref<1x2688xf32, #tpu.memory_space<vmem>>, vector<1x1024xf32>
    %12 = vector.broadcast %11 : vector<1x1024xf32> to vector<8x1024xf32>
    %13 = arith.addf %10, %12 : vector<8x1024xf32>
    %cst_10 = arith.constant 0.000000e+00 : f32
    %14 = vector.broadcast %cst_10 : f32 to vector<8x1024xf32>
    %15 = arith.maximumf %13, %14 : vector<8x1024xf32>
    %16 = arith.truncf %15 : vector<8x1024xf32> to vector<8x1024xbf16>
    %c0_11 = arith.constant 0 : index
    %c0_12 = arith.constant 0 : index
    %17 = vector.load %arg4[%c0_11, %c0_12] : memref<1024x256xbf16, #tpu.memory_space<vmem>>, vector<1024x256xbf16>
    %cst_13 = arith.constant dense<0.000000e+00> : vector<8x256xf32>
    %18 = tpu.matmul %16, %17, %cst_13 {dimension_numbers = #tpu.dot_dimension_numbers<[1], [0], [0], [1], [0, 0, 1, 1], [], []>} : vector<8x1024xbf16>, vector<1024x256xbf16>, vector<8x256xf32> -> vector<8x256xf32>
    %c0_14 = arith.constant 0 : index
    %c2048 = arith.constant 2048 : index
    %19 = vector.load %arg8[%c0_14, %c2048] : memref<1x2688xf32, #tpu.memory_space<vmem>>, vector<1x256xf32>
    %20 = vector.broadcast %19 : vector<1x256xf32> to vector<8x256xf32>
    %21 = arith.addf %18, %20 : vector<8x256xf32>
    %cst_15 = arith.constant 0.000000e+00 : f32
    %22 = vector.broadcast %cst_15 : f32 to vector<8x256xf32>
    %23 = arith.maximumf %21, %22 : vector<8x256xf32>
    %24 = arith.truncf %23 : vector<8x256xf32> to vector<8x256xbf16>
    %c0_16 = arith.constant 0 : index
    %c0_17 = arith.constant 0 : index
    %25 = vector.load %arg5[%c0_16, %c0_17] : memref<256x128xbf16, #tpu.memory_space<vmem>>, vector<256x128xbf16>
    %cst_18 = arith.constant dense<0.000000e+00> : vector<8x128xf32>
    %26 = tpu.matmul %24, %25, %cst_18 {dimension_numbers = #tpu.dot_dimension_numbers<[1], [0], [0], [1], [0, 0, 1, 1], [], []>} : vector<8x256xbf16>, vector<256x128xbf16>, vector<8x128xf32> -> vector<8x128xf32>
    %c0_19 = arith.constant 0 : index
    %c2304 = arith.constant 2304 : index
    %27 = vector.load %arg8[%c0_19, %c2304] : memref<1x2688xf32, #tpu.memory_space<vmem>>, vector<1x128xf32>
    %28 = vector.broadcast %27 : vector<1x128xf32> to vector<8x128xf32>
    %29 = arith.addf %26, %28 : vector<8x128xf32>
    %cst_20 = arith.constant 0.000000e+00 : f32
    %30 = vector.broadcast %cst_20 : f32 to vector<8x128xf32>
    %31 = arith.maximumf %29, %30 : vector<8x128xf32>
    %32 = arith.truncf %31 : vector<8x128xf32> to vector<8x128xbf16>
    %c0_21 = arith.constant 0 : index
    %c0_22 = arith.constant 0 : index
    %33 = vector.load %arg6[%c0_21, %c0_22] : memref<128x128xbf16, #tpu.memory_space<vmem>>, vector<128x128xbf16>
    %cst_23 = arith.constant dense<0.000000e+00> : vector<8x128xf32>
    %34 = tpu.matmul %32, %33, %cst_23 {dimension_numbers = #tpu.dot_dimension_numbers<[1], [0], [0], [1], [0, 0, 1, 1], [], []>} : vector<8x128xbf16>, vector<128x128xbf16>, vector<8x128xf32> -> vector<8x128xf32>
    %c0_24 = arith.constant 0 : index
    %c2432 = arith.constant 2432 : index
    %35 = vector.load %arg8[%c0_24, %c2432] : memref<1x2688xf32, #tpu.memory_space<vmem>>, vector<1x128xf32>
    %36 = vector.broadcast %35 : vector<1x128xf32> to vector<8x128xf32>
    %37 = arith.addf %34, %36 : vector<8x128xf32>
    %cst_25 = arith.constant 0.000000e+00 : f32
    %38 = vector.broadcast %cst_25 : f32 to vector<8x128xf32>
    %39 = arith.maximumf %37, %38 : vector<8x128xf32>
    %40 = arith.truncf %39 : vector<8x128xf32> to vector<8x128xbf16>
    %c0_26 = arith.constant 0 : index
    %c0_27 = arith.constant 0 : index
    %41 = vector.load %arg7[%c0_26, %c0_27] : memref<128x128xbf16, #tpu.memory_space<vmem>>, vector<128x128xbf16>
    %cst_28 = arith.constant dense<0.000000e+00> : vector<8x128xf32>
    %42 = tpu.matmul %40, %41, %cst_28 {dimension_numbers = #tpu.dot_dimension_numbers<[1], [0], [0], [1], [0, 0, 1, 1], [], []>} : vector<8x128xbf16>, vector<128x128xbf16>, vector<8x128xf32> -> vector<8x128xf32>
    %c0_29 = arith.constant 0 : index
    %c2560 = arith.constant 2560 : index
    %43 = vector.load %arg8[%c0_29, %c2560] : memref<1x2688xf32, #tpu.memory_space<vmem>>, vector<1x128xf32>
    %44 = vector.broadcast %43 : vector<1x128xf32> to vector<8x128xf32>
    %45 = arith.addf %42, %44 : vector<8x128xf32>
    %c0_30 = arith.constant 0 : index
    %c0_31 = arith.constant 0 : index
    %46 = vector.load %arg9[%c0_30, %c0_31] : memref<8x128xf32, #tpu.memory_space<vmem>>, vector<8x128xf32>
    tpu.vector_store %arg9[%c0_30, %c0_31], %45 {strides = array<i32>} : memref<8x128xf32, #tpu.memory_space<vmem>>, vector<8x128xf32>,
    return
  }
  func.func @transform_0(%arg0: i32) -> (i32, i32) {
    %c0_i32 = arith.constant 0 : i32
    %c0_i32_0 = arith.constant 0 : i32
    return %arg0, %c0_i32 : i32, i32
  }
  func.func @transform_1(%arg0: i32) -> (i32, i32) {
    %c0_i32 = arith.constant 0 : i32
    %c0_i32_0 = arith.constant 0 : i32
    %c0_i32_1 = arith.constant 0 : i32
    return %c0_i32, %c0_i32_0 : i32, i32
  }
  func.func @transform_2(%arg0: i32) -> (i32, i32) {
    %c0_i32 = arith.constant 0 : i32
    %c0_i32_0 = arith.constant 0 : i32
    %c0_i32_1 = arith.constant 0 : i32
    return %c0_i32, %c0_i32_0 : i32, i32
  }
  func.func @transform_3(%arg0: i32) -> (i32, i32) {
    %c0_i32 = arith.constant 0 : i32
    %c0_i32_0 = arith.constant 0 : i32
    %c0_i32_1 = arith.constant 0 : i32
    return %c0_i32, %c0_i32_0 : i32, i32
  }
  func.func @transform_4(%arg0: i32) -> (i32, i32) {
    %c0_i32 = arith.constant 0 : i32
    %c0_i32_0 = arith.constant 0 : i32
    %c0_i32_1 = arith.constant 0 : i32
    return %c0_i32, %c0_i32_0 : i32, i32
  }
  func.func @transform_5(%arg0: i32) -> (i32, i32) {
    %c0_i32 = arith.constant 0 : i32
    %c0_i32_0 = arith.constant 0 : i32
    %c0_i32_1 = arith.constant 0 : i32
    return %c0_i32, %c0_i32_0 : i32, i32
  }
  func.func @transform_6(%arg0: i32) -> (i32, i32) {
    %c0_i32 = arith.constant 0 : i32
    %c0_i32_0 = arith.constant 0 : i32
    %c0_i32_1 = arith.constant 0 : i32
    return %c0_i32, %c0_i32_0 : i32, i32
  }
  func.func @transform_7(%arg0: i32) -> (i32, i32) {
    %c0_i32 = arith.constant 0 : i32
    %c0_i32_0 = arith.constant 0 : i32
    %c0_i32_1 = arith.constant 0 : i32
    return %c0_i32, %c0_i32_0 : i32, i32
  }
  func.func @transform_8(%arg0: i32) -> (i32, i32) {
    %c0_i32 = arith.constant 0 : i32
    %c0_i32_0 = arith.constant 0 : i32
    return %arg0, %c0_i32 : i32, i32
  }
}

</mosaic_0001>

<llo_original>
// kernel: net2530_forward.1
$region0: #{net2530_forward.1}
  #allocation0 [shape = 'u32[]', space=smem, size = 0x4, offset = 0x4, fixed_abs, tag = 'smem constant byte address 0x4 - core index']
  #allocation1 [shape = 'u32[72,128]{1,0:T(1,128)}', space=vmem, size = 0x9000, scoped, tag = 'internal scratch']
  %s0 = inlined_call_operand.vmem [shape: bf16[8,210], index: 0, kind: input, shape index: {}]
  %s1 = inlined_call_operand.hbm [shape: bf16[210,1024], index: 1, kind: input, shape index: {}]
  %s2 = inlined_call_operand.hbm [shape: bf16[1024,1024], index: 2, kind: input, shape index: {}]
  %s3 = inlined_call_operand.hbm [shape: bf16[1024,256], index: 3, kind: input, shape index: {}]
  %s4 = inlined_call_operand.hbm [shape: bf16[256,128], index: 4, kind: input, shape index: {}]
  %s5 = inlined_call_operand.hbm [shape: bf16[128,128], index: 5, kind: input, shape index: {}]
  %s6 = inlined_call_operand.hbm [shape: bf16[128,128], index: 6, kind: input, shape index: {}]
  %s7 = inlined_call_operand.hbm [shape: f32[1,2688], index: 7, kind: input, shape index: {}]
  %s8 = inlined_call_operand.vmem [shape: f32[8,128], index: 8, kind: output, shape index: {}]
  %s9 = sld [smem:[#allocation0]]
  $region70: #{net2530_forward.1} parent=0
    _
  %s11 = ssub.s32 1, %s9
  %s12 = scalar_select 0, %s11, %s9
  $region1: #{net2530_forward.1} parent=0
    #allocation2 [shape = 'u8[442368]{0}', space=vmem, size = 0x6c000, scoped, tag = 'input window, operand 1, single buffered']
    #allocation3 [shape = 's32[1]{0}', space=sflag, size = 0x4, scoped, tag = 'scoped memory for net2530_forward.1']
    #allocation4 [shape = 'u8[2097152]{0}', space=vmem, size = 0x200000, scoped, tag = 'input window, operand 2, single buffered']
    #allocation5 [shape = 's32[1]{0}', space=sflag, size = 0x4, scoped, tag = 'scoped memory for net2530_forward.1']
    #allocation6 [shape = 'u8[524288]{0}', space=vmem, size = 0x80000, scoped, tag = 'input window, operand 3, single buffered']
    #allocation7 [shape = 'u8[65536]{0}', space=vmem, size = 0x10000, scoped, tag = 'input window, operand 4, single buffered']
    #allocation8 [shape = 's32[1]{0}', space=sflag, size = 0x4, scoped, tag = 'scoped memory for net2530_forward.1']
    #allocation9 [shape = 'u8[32768]{0}', space=vmem, size = 0x8000, scoped, tag = 'input window, operand 5, single buffered']
    #allocation10 [shape = 'u8[32768]{0}', space=vmem, size = 0x8000, scoped, tag = 'input window, operand 6, single buffered']
    #allocation11 [shape = 's32[1]{0}', space=sflag, size = 0x4, scoped, tag = 'scoped memory for net2530_forward.1']
    #allocation12 [shape = 'u8[10752]{0}', space=vmem, size = 0x2c00, scoped, tag = 'input window, operand 7, single buffered']
    %13 = vsyncpa [#allocation3], 0
    %14 = vsyncpa [#allocation5], 0
    %15 = vsyncpa [#allocation8], 0
    %16 = vsyncpa [#allocation11], 0
    // Predicated region
    $region2: #{net2530_forward.1} parent=1 // pred_check
      _
    $region3: #{net2530_forward.1} parent=1 // pred_check_branch
      %18 = sbr.rel (0) target = $region5
    $region4: #{net2530_forward.1} parent=1 // pred_region
      _
    $region5: #{net2530_forward.1} parent=1 // pred_fallthru
      _
    // Predicated region
    $region6: #{net2530_forward.1} parent=1 // pred_check
      _
    $region7: #{net2530_forward.1} parent=1 // pred_check_branch
      %20 = sbr.rel (0) target = $region9
    $region8: #{net2530_forward.1} parent=1 // pred_region
      %22 = vsyncadd [#allocation3], 0
      %s23 = sshll.u32 %s1, 4
      %s24 = int_to_ptr.hbm [resolvable:$true] %s23
      %s25 = sshll.u32 [#allocation2], 4
      %s26 = int_to_ptr.vmem [resolvable:$true] %s25
      %31 = dma.hbm_to_vmem [thread:$0]  %s24, 13824, %s26, [#allocation3], 512, 512, 32
    $region9: #{net2530_forward.1} parent=1 // pred_fallthru
      _
    // Predicated region
    $region10: #{net2530_forward.1} parent=1 // pred_check
      _
    $region11: #{net2530_forward.1} parent=1 // pred_check_branch
      %33 = sbr.rel (0) target = $region13
    $region12: #{net2530_forward.1} parent=1 // pred_region
      %35 = vsyncadd [#allocation5], 0
      %s36 = sshll.u32 %s2, 4
      %s37 = int_to_ptr.hbm [resolvable:$true] %s36
      %s38 = sshll.u32 [#allocation4], 4
      %s39 = int_to_ptr.vmem [resolvable:$true] %s38
      %44 = dma.hbm_to_vmem [thread:$0]  %s37, 65536, %s39, [#allocation5], 512, 512, 32
    $region13: #{net2530_forward.1} parent=1 // pred_fallthru
      _
    // Predicated region
    $region14: #{net2530_forward.1} parent=1 // pred_check
      _
    $region15: #{net2530_forward.1} parent=1 // pred_check_branch
      %46 = sbr.rel (0) target = $region17
    $region16: #{net2530_forward.1} parent=1 // pred_region
      %48 = vsyncadd [#allocation5], 0
      %s49 = sshll.u32 %s3, 4
      %s50 = int_to_ptr.hbm [resolvable:$true] %s49
      %s51 = sshll.u32 [#allocation6], 4
      %s52 = int_to_ptr.vmem [resolvable:$true] %s51
      %57 = dma.hbm_to_vmem [thread:$0]  %s50, 16384, %s52, [#allocation5], 128, 128, 8
    $region17: #{net2530_forward.1} parent=1 // pred_fallthru
      _
    // Predicated region
    $region18: #{net2530_forward.1} parent=1 // pred_check
      _
    $region19: #{net2530_forward.1} parent=1 // pred_check_branch
      %59 = sbr.rel (0) target = $region21
    $region20: #{net2530_forward.1} parent=1 // pred_region
      %61 = vsyncadd [#allocation8], 0
      %s62 = sshll.u32 %s4, 4
      %s63 = int_to_ptr.hbm [resolvable:$true] %s62
      %s64 = sshll.u32 [#allocation7], 4
      %s65 = int_to_ptr.vmem [resolvable:$true] %s64
      %70 = dma.hbm_to_vmem [thread:$0]  %s63, 2048, %s65, [#allocation8], 64, 64, 4
    $region21: #{net2530_forward.1} parent=1 // pred_fallthru
      _
    // Predicated region
    $region22: #{net2530_forward.1} parent=1 // pred_check
      _
    $region23: #{net2530_forward.1} parent=1 // pred_check_branch
      %72 = sbr.rel (0) target = $region25
    $region24: #{net2530_forward.1} parent=1 // pred_region
      %74 = vsyncadd [#allocation8], 0
      %s75 = sshll.u32 %s5, 4
      %s76 = int_to_ptr.hbm [resolvable:$true] %s75
      %s77 = sshll.u32 [#allocation9], 4
      %s78 = int_to_ptr.vmem [resolvable:$true] %s77
      %83 = dma.hbm_to_vmem [thread:$0]  %s76, 1024, %s78, [#allocation8], 64, 64, 4
    $region25: #{net2530_forward.1} parent=1 // pred_fallthru
      _
    // Predicated region
    $region26: #{net2530_forward.1} parent=1 // pred_check
      _
    $region27: #{net2530_forward.1} parent=1 // pred_check_branch
      %85 = sbr.rel (0) target = $region29
    $region28: #{net2530_forward.1} parent=1 // pred_region
      %87 = vsyncadd [#allocation11], 0
      %s88 = sshll.u32 %s6, 4
      %s89 = int_to_ptr.hbm [resolvable:$true] %s88
      %s90 = sshll.u32 [#allocation10], 4
      %s91 = int_to_ptr.vmem [resolvable:$true] %s90
      %96 = dma.hbm_to_vmem [thread:$0]  %s89, 1024, %s91, [#allocation11], 64, 64, 4
    $region29: #{net2530_forward.1} parent=1 // pred_fallthru
      _
    // Predicated region
    $region30: #{net2530_forward.1} parent=1 // pred_check
      _
    $region31: #{net2530_forward.1} parent=1 // pred_check_branch
      %98 = sbr.rel (0) target = $region33
    $region32: #{net2530_forward.1} parent=1 // pred_region
      %100 = vsyncadd [#allocation11], 0
      %s102 = sshll.u32 %s7, 4
      %s103 = int_to_ptr.hbm [resolvable:$true] %s102
      %s104 = sshll.u32 [#allocation12], 4
      %s105 = int_to_ptr.vmem [resolvable:$true] %s104
      %107 = dma.hbm_to_vmem [thread:$0]  %s103, 336, %s105, [#allocation11]
    $region33: #{net2530_forward.1} parent=1 // pred_fallthru
      _
    // Predicated region
    $region34: #{net2530_forward.1} parent=1 // pred_check
      _
    $region35: #{net2530_forward.1} parent=1 // pred_check_branch
      %109 = sbr.rel (0) target = $region37
    $region36: #{net2530_forward.1} parent=1 // pred_region
      %111 = dma.done [#allocation3], 13824
    $region37: #{net2530_forward.1} parent=1 // pred_fallthru
      _
    // Predicated region
    $region38: #{net2530_forward.1} parent=1 // pred_check
      _
    $region39: #{net2530_forward.1} parent=1 // pred_check_branch
      %113 = sbr.rel (0) target = $region41
    $region40: #{net2530_forward.1} parent=1 // pred_region
      %115 = dma.done [#allocation5], 65536
    $region41: #{net2530_forward.1} parent=1 // pred_fallthru
      _
    // Predicated region
    $region42: #{net2530_forward.1} parent=1 // pred_check
      _
    $region43: #{net2530_forward.1} parent=1 // pred_check_branch
      %117 = sbr.rel (0) target = $region45
    $region44: #{net2530_forward.1} parent=1 // pred_region
      %119 = dma.done [#allocation5], 16384
    $region45: #{net2530_forward.1} parent=1 // pred_fallthru
      _
    // Predicated region
    $region46: #{net2530_forward.1} parent=1 // pred_check
      _
    $region47: #{net2530_forward.1} parent=1 // pred_check_branch
      %121 = sbr.rel (0) target = $region49
    $region48: #{net2530_forward.1} parent=1 // pred_region
      %123 = dma.done [#allocation8], 2048
    $region49: #{net2530_forward.1} parent=1 // pred_fallthru
      _
    // Predicated region
    $region50: #{net2530_forward.1} parent=1 // pred_check
      _
    $region51: #{net2530_forward.1} parent=1 // pred_check_branch
      %125 = sbr.rel (0) target = $region53
    $region52: #{net2530_forward.1} parent=1 // pred_region
      %127 = dma.done [#allocation8], 1024
    $region53: #{net2530_forward.1} parent=1 // pred_fallthru
      _
    // Predicated region
    $region54: #{net2530_forward.1} parent=1 // pred_check
      _
    $region55: #{net2530_forward.1} parent=1 // pred_check_branch
      %129 = sbr.rel (0) target = $region57
    $region56: #{net2530_forward.1} parent=1 // pred_region
      %131 = dma.done [#allocation11], 1024
    $region57: #{net2530_forward.1} parent=1 // pred_fallthru
      _
    // Predicated region
    $region58: #{net2530_forward.1} parent=1 // pred_check
      _
    $region59: #{net2530_forward.1} parent=1 // pred_check_branch
      %133 = sbr.rel (0) target = $region61
    $region60: #{net2530_forward.1} parent=1 // pred_region
      %135 = dma.done [#allocation11], 336
    $region61: #{net2530_forward.1} parent=1 // pred_fallthru
      _
    %v137 = vld [vmem:[%s0] sm:$0xff]
    %v138 = vld [vmem:[#allocation2] sm:$0xff]
    %v139 = vld [vmem:[#allocation2 + $0x8] sm:$0xff]
    %v140 = vld [vmem:[#allocation2 + $0x10] sm:$0xff]
    %v141 = vld [vmem:[#allocation2 + $0x18] sm:$0xff]
    %v142 = vld [vmem:[#allocation2 + $0x20] sm:$0xff]
    %v143 = vld [vmem:[#allocation2 + $0x28] sm:$0xff]
    %v144 = vld [vmem:[#allocation2 + $0x30] sm:$0xff]
    %v145 = vld [vmem:[#allocation2 + $0x38] sm:$0xff]
    %v146 = vld [vmem:[#allocation2 + $0x40] sm:$0xff]
    %v147 = vld [vmem:[#allocation2 + $0x48] sm:$0xff]
    %v148 = vld [vmem:[#allocation2 + $0x50] sm:$0xff]
    %v149 = vld [vmem:[#allocation2 + $0x58] sm:$0xff]
    %v150 = vld [vmem:[#allocation2 + $0x60] sm:$0xff]
    %v151 = vld [vmem:[#allocation2 + $0x68] sm:$0xff]
    %v152 = vld [vmem:[#allocation2 + $0x70] sm:$0xff]
    %v153 = vld [vmem:[#allocation2 + $0x78] sm:$0xff]
    %v154 = vld [vmem:[#allocation2 + $0x80] sm:$0xff]
    %v155 = vld [vmem:[#allocation2 + $0x88] sm:$0xff]
    %v156 = vld [vmem:[#allocation2 + $0x90] sm:$0xff]
    %v157 = vld [vmem:[#allocation2 + $0x98] sm:$0xff]
    %v158 = vld [vmem:[#allocation2 + $0xa0] sm:$0xff]
    %v159 = vld [vmem:[#allocation2 + $0xa8] sm:$0xff]
    %v160 = vld [vmem:[#allocation2 + $0xb0] sm:$0xff]
    %v161 = vld [vmem:[#allocation2 + $0xb8] sm:$0xff]
    %v162 = vld [vmem:[#allocation2 + $0xc0] sm:$0xff]
    %v163 = vld [vmem:[#allocation2 + $0xc8] sm:$0xff]
    %v164 = vld [vmem:[#allocation2 + $0xd0] sm:$0xff]
    %v165 = vld [vmem:[#allocation2 + $0xd8] sm:$0xff]
    %v166 = vld [vmem:[#allocation2 + $0xe0] sm:$0xff]
    %v167 = vld [vmem:[#allocation2 + $0xe8] sm:$0xff]
    %v168 = vld [vmem:[#allocation2 + $0xf0] sm:$0xff]
    %v169 = vld [vmem:[#allocation2 + $0xf8] sm:$0xff]
    %v170 = vld [vmem:[#allocation2 + $0x100] sm:$0xff]
    %v171 = vld [vmem:[#allocation2 + $0x108] sm:$0xff]
    %v172 = vld [vmem:[#allocation2 + $0x110] sm:$0xff]
    %v173 = vld [vmem:[#allocation2 + $0x118] sm:$0xff]
    %v174 = vld [vmem:[#allocation2 + $0x120] sm:$0xff]
    %v175 = vld [vmem:[#allocation2 + $0x128] sm:$0xff]
    %v176 = vld [vmem:[#allocation2 + $0x130] sm:$0xff]
    %v177 = vld [vmem:[#allocation2 + $0x138] sm:$0xff]
    %v178 = vld [vmem:[#allocation2 + $0x140] sm:$0xff]
    %v179 = vld [vmem:[#allocation2 + $0x148] sm:$0xff]
    %v180 = vld [vmem:[#allocation2 + $0x150] sm:$0xff]
    %v181 = vld [vmem:[#allocation2 + $0x158] sm:$0xff]
    %v182 = vld [vmem:[#allocation2 + $0x160] sm:$0xff]
    %v183 = vld [vmem:[#allocation2 + $0x168] sm:$0xff]
    %v184 = vld [vmem:[#allocation2 + $0x170] sm:$0xff]
    %v185 = vld [vmem:[#allocation2 + $0x178] sm:$0xff]
    %v186 = vld [vmem:[#allocation2 + $0x180] sm:$0xff]
    %v187 = vld [vmem:[#allocation2 + $0x188] sm:$0xff]
    %v188 = vld [vmem:[#allocation2 + $0x190] sm:$0xff]
    %v189 = vld [vmem:[#allocation2 + $0x198] sm:$0xff]
    %v190 = vld [vmem:[#allocation2 + $0x1a0] sm:$0xff]
    %v191 = vld [vmem:[#allocation2 + $0x1a8] sm:$0xff]
    %v192 = vld [vmem:[#allocation2 + $0x1b0] sm:$0xff]
    %v193 = vld [vmem:[#allocation2 + $0x1b8] sm:$0xff]
    %v194 = vld [vmem:[#allocation2 + $0x1c0] sm:$0xff]
    %v195 = vld [vmem:[#allocation2 + $0x1c8] sm:$0xff]
    %v196 = vld [vmem:[#allocation2 + $0x1d0] sm:$0xff]
    %v197 = vld [vmem:[#allocation2 + $0x1d8] sm:$0xff]
    %v198 = vld [vmem:[#allocation2 + $0x1e0] sm:$0xff]
    %v199 = vld [vmem:[#allocation2 + $0x1e8] sm:$0xff]
    %v200 = vld [vmem:[#allocation2 + $0x1f0] sm:$0xff]
    %v201 = vld [vmem:[#allocation2 + $0x1f8] sm:$0xff]
    %v202 = vld [vmem:[#allocation2 + $0x200] sm:$0xff]
    %v203 = vld [vmem:[#allocation2 + $0x208] sm:$0xff]
    %v204 = vld [vmem:[#allocation2 + $0x210] sm:$0xff]
    %v205 = vld [vmem:[#allocation2 + $0x218] sm:$0xff]
    %v206 = vld [vmem:[#allocation2 + $0x220] sm:$0xff]
    %v207 = vld [vmem:[#allocation2 + $0x228] sm:$0xff]
    %v208 = vld [vmem:[#allocation2 + $0x230] sm:$0xff]
    %v209 = vld [vmem:[#allocation2 + $0x238] sm:$0xff]
    %v210 = vld [vmem:[#allocation2 + $0x240] sm:$0xff]
    %v211 = vld [vmem:[#allocation2 + $0x248] sm:$0xff]
    %v212 = vld [vmem:[#allocation2 + $0x250] sm:$0xff]
    %v213 = vld [vmem:[#allocation2 + $0x258] sm:$0xff]
    %v214 = vld [vmem:[#allocation2 + $0x260] sm:$0xff]
    %v215 = vld [vmem:[#allocation2 + $0x268] sm:$0xff]
    %v216 = vld [vmem:[#allocation2 + $0x270] sm:$0xff]
    %v217 = vld [vmem:[#allocation2 + $0x278] sm:$0xff]
    %v218 = vld [vmem:[#allocation2 + $0x280] sm:$0xff]
    %v219 = vld [vmem:[#allocation2 + $0x288] sm:$0xff]
    %v220 = vld [vmem:[#allocation2 + $0x290] sm:$0xff]
    %v221 = vld [vmem:[#allocation2 + $0x298] sm:$0xff]
    %v222 = vld [vmem:[#allocation2 + $0x2a0] sm:$0xff]
    %v223 = vld [vmem:[#allocation2 + $0x2a8] sm:$0xff]
    %v224 = vld [vmem:[#allocation2 + $0x2b0] sm:$0xff]
    %v225 = vld [vmem:[#allocation2 + $0x2b8] sm:$0xff]
    %v226 = vld [vmem:[#allocation2 + $0x2c0] sm:$0xff]
    %v227 = vld [vmem:[#allocation2 + $0x2c8] sm:$0xff]
    %v228 = vld [vmem:[#allocation2 + $0x2d0] sm:$0xff]
    %v229 = vld [vmem:[#allocation2 + $0x2d8] sm:$0xff]
    %v230 = vld [vmem:[#allocation2 + $0x2e0] sm:$0xff]
    %v231 = vld [vmem:[#allocation2 + $0x2e8] sm:$0xff]
    %v232 = vld [vmem:[#allocation2 + $0x2f0] sm:$0xff]
    %v233 = vld [vmem:[#allocation2 + $0x2f8] sm:$0xff]
    %v234 = vld [vmem:[#allocation2 + $0x300] sm:$0xff]
    %v235 = vld [vmem:[#allocation2 + $0x308] sm:$0xff]
    %v236 = vld [vmem:[#allocation2 + $0x310] sm:$0xff]
    %v237 = vld [vmem:[#allocation2 + $0x318] sm:$0xff]
    %v238 = vld [vmem:[#allocation2 + $0x320] sm:$0xff]
    %v239 = vld [vmem:[#allocation2 + $0x328] sm:$0xff]
    %v240 = vld [vmem:[#allocation2 + $0x330] sm:$0xff]
    %v241 = vld [vmem:[#allocation2 + $0x338] sm:$0xff]
    %v242 = vld [vmem:[#allocation2 + $0x340] sm:$0x11]
    %v243 = vld [vmem:[#allocation2 + $0x348] sm:$0x11]
    %v244 = vld [vmem:[#allocation2 + $0x350] sm:$0x11]
    %v245 = vld [vmem:[#allocation2 + $0x358] sm:$0x11]
    %v246 = vld [vmem:[#allocation12] sm:$0xff]
    %v248 = vperm.slane %v246, 0
    %v249 = vperm.slane %v246, 1
    %v250 = vperm.slane %v246, 2
    %v251 = vperm.slane %v246, 3
    %v252 = vperm.slane %v246, 4
    %v253 = vperm.slane %v246, 5
    %v254 = vperm.slane %v246, 6
    %v255 = vperm.slane %v246, 7
    %v265 = vunpack.c.l.b16 %v137
    %v266 = vunpack.c.h.b16 %v137
    %v267 = vpack.c.b16 %v265, %v265
    %v268 = vpack.c.b16 %v266, %v266
    %v378 = vunpack.c.l.b16 %v138
    %v379 = vunpack.c.h.b16 %v138
    %v380 = vunpack.c.l.b16 %v139
    %v381 = vunpack.c.h.b16 %v139
    %v382 = vunpack.c.l.b16 %v140
    %v383 = vunpack.c.h.b16 %v140
    %v384 = vunpack.c.l.b16 %v141
    %v385 = vunpack.c.h.b16 %v141
    %v386 = vunpack.c.l.b16 %v142
    %v387 = vunpack.c.h.b16 %v142
    %v388 = vunpack.c.l.b16 %v143
    %v389 = vunpack.c.h.b16 %v143
    %v390 = vunpack.c.l.b16 %v144
    %v391 = vunpack.c.h.b16 %v144
    %v392 = vunpack.c.l.b16 %v145
    %v393 = vunpack.c.h.b16 %v145
    %v394 = vunpack.c.l.b16 %v146
    %v395 = vunpack.c.h.b16 %v146
    %v396 = vunpack.c.l.b16 %v147
    %v397 = vunpack.c.h.b16 %v147
    %v398 = vunpack.c.l.b16 %v148
    %v399 = vunpack.c.h.b16 %v148
    %v400 = vunpack.c.l.b16 %v149
    %v401 = vunpack.c.h.b16 %v149
    %v402 = vunpack.c.l.b16 %v150
    %v403 = vunpack.c.h.b16 %v150
    %v404 = vunpack.c.l.b16 %v151
    %v405 = vunpack.c.h.b16 %v151
    %v406 = vunpack.c.l.b16 %v152
    %v407 = vunpack.c.h.b16 %v152
    %v408 = vunpack.c.l.b16 %v153
    %v409 = vunpack.c.h.b16 %v153
    %v410 = vunpack.c.l.b16 %v154
    %v411 = vunpack.c.h.b16 %v154
    %v412 = vunpack.c.l.b16 %v155
    %v413 = vunpack.c.h.b16 %v155
    %v414 = vunpack.c.l.b16 %v156
    %v415 = vunpack.c.h.b16 %v156
    %v416 = vunpack.c.l.b16 %v157
    %v417 = vunpack.c.h.b16 %v157
    %v418 = vunpack.c.l.b16 %v158
    %v419 = vunpack.c.h.b16 %v158
    %v420 = vunpack.c.l.b16 %v159
    %v421 = vunpack.c.h.b16 %v159
    %v422 = vunpack.c.l.b16 %v160
    %v423 = vunpack.c.h.b16 %v160
    %v424 = vunpack.c.l.b16 %v161
    %v425 = vunpack.c.h.b16 %v161
    %v426 = vunpack.c.l.b16 %v162
    %v427 = vunpack.c.h.b16 %v162
    %v428 = vunpack.c.l.b16 %v163
    %v429 = vunpack.c.h.b16 %v163
    %v430 = vunpack.c.l.b16 %v164
    %v431 = vunpack.c.h.b16 %v164
    %v432 = vunpack.c.l.b16 %v165
    %v433 = vunpack.c.h.b16 %v165
    %v434 = vunpack.c.l.b16 %v166
    %v435 = vunpack.c.h.b16 %v166
    %v436 = vunpack.c.l.b16 %v167
    %v437 = vunpack.c.h.b16 %v167
    %v438 = vunpack.c.l.b16 %v168
    %v439 = vunpack.c.h.b16 %v168
    %v440 = vunpack.c.l.b16 %v169
    %v441 = vunpack.c.h.b16 %v169
    %v442 = vunpack.c.l.b16 %v170
    %v443 = vunpack.c.h.b16 %v170
    %v444 = vunpack.c.l.b16 %v171
    %v445 = vunpack.c.h.b16 %v171
    %v446 = vunpack.c.l.b16 %v172
    %v447 = vunpack.c.h.b16 %v172
    %v448 = vunpack.c.l.b16 %v173
    %v449 = vunpack.c.h.b16 %v173
    %v450 = vunpack.c.l.b16 %v174
    %v451 = vunpack.c.h.b16 %v174
    %v452 = vunpack.c.l.b16 %v175
    %v453 = vunpack.c.h.b16 %v175
    %v454 = vunpack.c.l.b16 %v176
    %v455 = vunpack.c.h.b16 %v176
    %v456 = vunpack.c.l.b16 %v177
    %v457 = vunpack.c.h.b16 %v177
    %v458 = vunpack.c.l.b16 %v178
    %v459 = vunpack.c.h.b16 %v178
    %v460 = vunpack.c.l.b16 %v179
    %v461 = vunpack.c.h.b16 %v179
    %v462 = vunpack.c.l.b16 %v180
    %v463 = vunpack.c.h.b16 %v180
    %v464 = vunpack.c.l.b16 %v181
    %v465 = vunpack.c.h.b16 %v181
    %v466 = vunpack.c.l.b16 %v182
    %v467 = vunpack.c.h.b16 %v182
    %v468 = vunpack.c.l.b16 %v183
    %v469 = vunpack.c.h.b16 %v183
    %v470 = vunpack.c.l.b16 %v184
    %v471 = vunpack.c.h.b16 %v184
    %v472 = vunpack.c.l.b16 %v185
    %v473 = vunpack.c.h.b16 %v185
    %v474 = vunpack.c.l.b16 %v186
    %v475 = vunpack.c.h.b16 %v186
    %v476 = vunpack.c.l.b16 %v187
    %v477 = vunpack.c.h.b16 %v187
    %v478 = vunpack.c.l.b16 %v188
    %v479 = vunpack.c.h.b16 %v188
    %v480 = vunpack.c.l.b16 %v189
    %v481 = vunpack.c.h.b16 %v189
    %v482 = vunpack.c.l.b16 %v190
    %v483 = vunpack.c.h.b16 %v190
    %v484 = vunpack.c.l.b16 %v191
    %v485 = vunpack.c.h.b16 %v191
    %v486 = vunpack.c.l.b16 %v192
    %v487 = vunpack.c.h.b16 %v192
    %v488 = vunpack.c.l.b16 %v193
    %v489 = vunpack.c.h.b16 %v193
    %v490 = vunpack.c.l.b16 %v194
    %v491 = vunpack.c.h.b16 %v194
    %v492 = vunpack.c.l.b16 %v195
    %v493 = vunpack.c.h.b16 %v195
    %v494 = vunpack.c.l.b16 %v196
    %v495 = vunpack.c.h.b16 %v196
    %v496 = vunpack.c.l.b16 %v197
    %v497 = vunpack.c.h.b16 %v197
    %v498 = vunpack.c.l.b16 %v198
    %v499 = vunpack.c.h.b16 %v198
    %v500 = vunpack.c.l.b16 %v199
    %v501 = vunpack.c.h.b16 %v199
    %v502 = vunpack.c.l.b16 %v200
    %v503 = vunpack.c.h.b16 %v200
    %v504 = vunpack.c.l.b16 %v201
    %v505 = vunpack.c.h.b16 %v201
    %v506 = vunpack.c.l.b16 %v202
    %v507 = vunpack.c.h.b16 %v202
    %v508 = vunpack.c.l.b16 %v203
    %v509 = vunpack.c.h.b16 %v203
    %v510 = vunpack.c.l.b16 %v204
    %v511 = vunpack.c.h.b16 %v204
    %v512 = vunpack.c.l.b16 %v205
    %v513 = vunpack.c.h.b16 %v205
    %v514 = vunpack.c.l.b16 %v206
    %v515 = vunpack.c.h.b16 %v206
    %v516 = vunpack.c.l.b16 %v207
    %v517 = vunpack.c.h.b16 %v207
    %v518 = vunpack.c.l.b16 %v208
    %v519 = vunpack.c.h.b16 %v208
    %v520 = vunpack.c.l.b16 %v209
    %v521 = vunpack.c.h.b16 %v209
    %v522 = vunpack.c.l.b16 %v210
    %v523 = vunpack.c.h.b16 %v210
    %v524 = vunpack.c.l.b16 %v211
    %v525 = vunpack.c.h.b16 %v211
    %v526 = vunpack.c.l.b16 %v212
    %v527 = vunpack.c.h.b16 %v212
    %v528 = vunpack.c.l.b16 %v213
    %v529 = vunpack.c.h.b16 %v213
    %v530 = vunpack.c.l.b16 %v214
    %v531 = vunpack.c.h.b16 %v214
    %v532 = vunpack.c.l.b16 %v215
    %v533 = vunpack.c.h.b16 %v215
    %v534 = vunpack.c.l.b16 %v216
    %v535 = vunpack.c.h.b16 %v216
    %v536 = vunpack.c.l.b16 %v217
    %v537 = vunpack.c.h.b16 %v217
    %v538 = vunpack.c.l.b16 %v218
    %v539 = vunpack.c.h.b16 %v218
    %v540 = vunpack.c.l.b16 %v219
    %v541 = vunpack.c.h.b16 %v219
    %v542 = vunpack.c.l.b16 %v220
    %v543 = vunpack.c.h.b16 %v220
    %v544 = vunpack.c.l.b16 %v221
    %v545 = vunpack.c.h.b16 %v221
    %v546 = vunpack.c.l.b16 %v222
    %v547 = vunpack.c.h.b16 %v222
    %v548 = vunpack.c.l.b16 %v223
    %v549 = vunpack.c.h.b16 %v223
    %v550 = vunpack.c.l.b16 %v224
    %v551 = vunpack.c.h.b16 %v224
    %v552 = vunpack.c.l.b16 %v225
    %v553 = vunpack.c.h.b16 %v225
    %v554 = vunpack.c.l.b16 %v226
    %v555 = vunpack.c.h.b16 %v226
    %v556 = vunpack.c.l.b16 %v227
    %v557 = vunpack.c.h.b16 %v227
    %v558 = vunpack.c.l.b16 %v228
    %v559 = vunpack.c.h.b16 %v228
    %v560 = vunpack.c.l.b16 %v229
    %v561 = vunpack.c.h.b16 %v229
    %v562 = vunpack.c.l.b16 %v230
    %v563 = vunpack.c.h.b16 %v230
    %v564 = vunpack.c.l.b16 %v231
    %v565 = vunpack.c.h.b16 %v231
    %v566 = vunpack.c.l.b16 %v232
    %v567 = vunpack.c.h.b16 %v232
    %v568 = vunpack.c.l.b16 %v233
    %v569 = vunpack.c.h.b16 %v233
    %v570 = vunpack.c.l.b16 %v234
    %v571 = vunpack.c.h.b16 %v234
    %v572 = vunpack.c.l.b16 %v235
    %v573 = vunpack.c.h.b16 %v235
    %v574 = vunpack.c.l.b16 %v236
    %v575 = vunpack.c.h.b16 %v236
    %v576 = vunpack.c.l.b16 %v237
    %v577 = vunpack.c.h.b16 %v237
    %v578 = vunpack.c.l.b16 %v238
    %v579 = vunpack.c.h.b16 %v238
    %v580 = vunpack.c.l.b16 %v239
    %v581 = vunpack.c.h.b16 %v239
    %v582 = vunpack.c.l.b16 %v240
    %v583 = vunpack.c.h.b16 %v240
    %v584 = vunpack.c.l.b16 %v241
    %v585 = vunpack.c.h.b16 %v241
    %v586 = vunpack.c.l.b16 %v242
    %v587 = vunpack.c.h.b16 %v242
    %v588 = vunpack.c.l.b16 %v243
    %v589 = vunpack.c.h.b16 %v243
    %v590 = vunpack.c.l.b16 %v244
    %v591 = vunpack.c.h.b16 %v244
    %v592 = vunpack.c.l.b16 %v245
    %v593 = vunpack.c.h.b16 %v245
    %v594 = vpack.c.b16 %v386, %v378
    %v595 = vpack.c.b16 %v387, %v379
    %v596 = vpack.c.b16 %v388, %v380
    %v597 = vpack.c.b16 %v389, %v381
    %v598 = vpack.c.b16 %v390, %v382
    %v599 = vpack.c.b16 %v391, %v383
    %v600 = vpack.c.b16 %v392, %v384
    %v601 = vpack.c.b16 %v393, %v385
    %v602 = vpack.c.b16 %v402, %v394
    %v603 = vpack.c.b16 %v403, %v395
    %v604 = vpack.c.b16 %v404, %v396
    %v605 = vpack.c.b16 %v405, %v397
    %v606 = vpack.c.b16 %v406, %v398
    %v607 = vpack.c.b16 %v407, %v399
    %v608 = vpack.c.b16 %v408, %v400
    %v609 = vpack.c.b16 %v409, %v401
    %v610 = vpack.c.b16 %v418, %v410
    %v611 = vpack.c.b16 %v419, %v411
    %v612 = vpack.c.b16 %v420, %v412
    %v613 = vpack.c.b16 %v421, %v413
    %v614 = vpack.c.b16 %v422, %v414
    %v615 = vpack.c.b16 %v423, %v415
    %v616 = vpack.c.b16 %v424, %v416
    %v617 = vpack.c.b16 %v425, %v417
    %v618 = vpack.c.b16 %v434, %v426
    %v619 = vpack.c.b16 %v435, %v427
    %v620 = vpack.c.b16 %v436, %v428
    %v621 = vpack.c.b16 %v437, %v429
    %v622 = vpack.c.b16 %v438, %v430
    %v623 = vpack.c.b16 %v439, %v431
    %v624 = vpack.c.b16 %v440, %v432
    %v625 = vpack.c.b16 %v441, %v433
    %v626 = vpack.c.b16 %v450, %v442
    %v627 = vpack.c.b16 %v451, %v443
    %v628 = vpack.c.b16 %v452, %v444
    %v629 = vpack.c.b16 %v453, %v445
    %v630 = vpack.c.b16 %v454, %v446
    %v631 = vpack.c.b16 %v455, %v447
    %v632 = vpack.c.b16 %v456, %v448
    %v633 = vpack.c.b16 %v457, %v449
    %v634 = vpack.c.b16 %v466, %v458
    %v635 = vpack.c.b16 %v467, %v459
    %v636 = vpack.c.b16 %v468, %v460
    %v637 = vpack.c.b16 %v469, %v461
    %v638 = vpack.c.b16 %v470, %v462
    %v639 = vpack.c.b16 %v471, %v463
    %v640 = vpack.c.b16 %v472, %v464
    %v641 = vpack.c.b16 %v473, %v465
    %v642 = vpack.c.b16 %v482, %v474
    %v643 = vpack.c.b16 %v483, %v475
    %v644 = vpack.c.b16 %v484, %v476
    %v645 = vpack.c.b16 %v485, %v477
    %v646 = vpack.c.b16 %v486, %v478
    %v647 = vpack.c.b16 %v487, %v479
    %v648 = vpack.c.b16 %v488, %v480
    %v649 = vpack.c.b16 %v489, %v481
    %v650 = vpack.c.b16 %v498, %v490
    %v651 = vpack.c.b16 %v499, %v491
    %v652 = vpack.c.b16 %v500, %v492
    %v653 = vpack.c.b16 %v501, %v493
    %v654 = vpack.c.b16 %v502, %v494
    %v655 = vpack.c.b16 %v503, %v495
    %v656 = vpack.c.b16 %v504, %v496
    %v657 = vpack.c.b16 %v505, %v497
    %v658 = vpack.c.b16 %v514, %v506
    %v659 = vpack.c.b16 %v515, %v507
    %v660 = vpack.c.b16 %v516, %v508
    %v661 = vpack.c.b16 %v517, %v509
    %v662 = vpack.c.b16 %v518, %v510
    %v663 = vpack.c.b16 %v519, %v511
    %v664 = vpack.c.b16 %v520, %v512
    %v665 = vpack.c.b16 %v521, %v513
    %v666 = vpack.c.b16 %v530, %v522
    %v667 = vpack.c.b16 %v531, %v523
    %v668 = vpack.c.b16 %v532, %v524
    %v669 = vpack.c.b16 %v533, %v525
    %v670 = vpack.c.b16 %v534, %v526
    %v671 = vpack.c.b16 %v535, %v527
    %v672 = vpack.c.b16 %v536, %v528
    %v673 = vpack.c.b16 %v537, %v529
    %v674 = vpack.c.b16 %v546, %v538
    %v675 = vpack.c.b16 %v547, %v539
    %v676 = vpack.c.b16 %v548, %v540
    %v677 = vpack.c.b16 %v549, %v541
    %v678 = vpack.c.b16 %v550, %v542
    %v679 = vpack.c.b16 %v551, %v543
    %v680 = vpack.c.b16 %v552, %v544
    %v681 = vpack.c.b16 %v553, %v545
    %v682 = vpack.c.b16 %v562, %v554
    %v683 = vpack.c.b16 %v563, %v555
    %v684 = vpack.c.b16 %v564, %v556
    %v685 = vpack.c.b16 %v565, %v557
    %v686 = vpack.c.b16 %v566, %v558
    %v687 = vpack.c.b16 %v567, %v559
    %v688 = vpack.c.b16 %v568, %v560
    %v689 = vpack.c.b16 %v569, %v561
    %v690 = vpack.c.b16 %v578, %v570
    %v691 = vpack.c.b16 %v579, %v571
    %v692 = vpack.c.b16 %v580, %v572
    %v693 = vpack.c.b16 %v581, %v573
    %v694 = vpack.c.b16 %v582, %v574
    %v695 = vpack.c.b16 %v583, %v575
    %v696 = vpack.c.b16 %v584, %v576
    %v697 = vpack.c.b16 %v585, %v577
    %v698 = vpack.c.b16 %v586, %v586
    %v699 = vpack.c.b16 %v587, %v587
    %v700 = vpack.c.b16 %v588, %v588
    %v701 = vpack.c.b16 %v589, %v589
    %v702 = vpack.c.b16 %v590, %v590
    %v703 = vpack.c.b16 %v591, %v591
    %v704 = vpack.c.b16 %v592, %v592
    %v705 = vpack.c.b16 %v593, %v593
    %vm810 = vcmask 670720
    %v812 = vsel %vm810, %v268, 0
    %vm814 = vcmask 1040384
    %v816 = vsel %vm814, %v698, 0
    %v819 = vsel %vm814, %v699, 0
    %v822 = vsel %vm814, %v700, 0
    %v825 = vsel %vm814, %v701, 0
    %v828 = vsel %vm814, %v702, 0
    %v831 = vsel %vm814, %v703, 0
    %v834 = vsel %vm814, %v704, 0
    %v837 = vsel %vm814, %v705, 0
    %839 = vmatpush.bf16.msra.mxu0 %v650
    %840 = vmatpush.bf16.msra.mxu0 %v642
    %841 = vmatpush.bf16.msra.mxu0 %v634
    %842 = vmatpush.bf16.msra.mxu0 %v626
    %843 = vmatpush.bf16.msra.mxu0 %v618
    %844 = vmatpush.bf16.msra.mxu0 %v610
    %845 = vmatpush.bf16.msra.mxu0 %v602
    %846 = vmatpush.bf16.msra.mxu0 %v594
    %847 = vmatmul.bf16.gmra.mxu0 %v267
    %v848 = vpop.f32.mrf.mxu0
    %v849 = vadd.f32 %v248, %v848
    %v850 = vpop.f32.mrf.mxu0
    %851 = vdwg.mxu0
    %852 = vmatpush.bf16.msra.mxu0 0
    %853 = vmatpush.bf16.msra.mxu0 0
    %854 = vmatpush.bf16.msra.mxu0 %v816
    %855 = vmatpush.bf16.msra.mxu0 %v690
    %856 = vmatpush.bf16.msra.mxu0 %v682
    %857 = vmatpush.bf16.msra.mxu0 %v674
    %858 = vmatpush.bf16.msra.mxu0 %v666
    %859 = vmatpush.bf16.msra.mxu0 %v658
    %860 = vmatmul.bf16.gmra.mxu0 %v812
    %v861 = vpop.f32.mrf.mxu0
    %v862 = vadd.f32 %v849, %v861
    %v863 = vpop.f32.mrf.mxu0
    %864 = vdwg.mxu0
    %865 = vmatpush.bf16.msra.mxu0 %v651
    %866 = vmatpush.bf16.msra.mxu0 %v643
    %867 = vmatpush.bf16.msra.mxu0 %v635
    %868 = vmatpush.bf16.msra.mxu0 %v627
    %869 = vmatpush.bf16.msra.mxu0 %v619
    %870 = vmatpush.bf16.msra.mxu0 %v611
    %871 = vmatpush.bf16.msra.mxu0 %v603
    %872 = vmatpush.bf16.msra.mxu0 %v595
    %873 = vmatmul.bf16.gmra.mxu0 %v267
    %v874 = vpop.f32.mrf.mxu0
    %v875 = vadd.f32 %v249, %v874
    %v876 = vpop.f32.mrf.mxu0
    %877 = vdwg.mxu0
    %878 = vmatpush.bf16.msra.mxu0 0
    %879 = vmatpush.bf16.msra.mxu0 0
    %880 = vmatpush.bf16.msra.mxu0 %v819
    %881 = vmatpush.bf16.msra.mxu0 %v691
    %882 = vmatpush.bf16.msra.mxu0 %v683
    %883 = vmatpush.bf16.msra.mxu0 %v675
    %884 = vmatpush.bf16.msra.mxu0 %v667
    %885 = vmatpush.bf16.msra.mxu0 %v659
    %886 = vmatmul.bf16.gmra.mxu0 %v812
    %v887 = vpop.f32.mrf.mxu0
    %v888 = vadd.f32 %v875, %v887
    %v889 = vpop.f32.mrf.mxu0
    %890 = vdwg.mxu0
    %891 = vmatpush.bf16.msra.mxu0 %v652
    %892 = vmatpush.bf16.msra.mxu0 %v644
    %893 = vmatpush.bf16.msra.mxu0 %v636
    %894 = vmatpush.bf16.msra.mxu0 %v628
    %895 = vmatpush.bf16.msra.mxu0 %v620
    %896 = vmatpush.bf16.msra.mxu0 %v612
    %897 = vmatpush.bf16.msra.mxu0 %v604
    %898 = vmatpush.bf16.msra.mxu0 %v596
    %899 = vmatmul.bf16.gmra.mxu0 %v267
    %v900 = vpop.f32.mrf.mxu0
    %v901 = vadd.f32 %v250, %v900
    %v902 = vpop.f32.mrf.mxu0
    %903 = vdwg.mxu0
    %904 = vmatpush.bf16.msra.mxu0 0
    %905 = vmatpush.bf16.msra.mxu0 0
    %906 = vmatpush.bf16.msra.mxu0 %v822
    %907 = vmatpush.bf16.msra.mxu0 %v692
    %908 = vmatpush.bf16.msra.mxu0 %v684
    %909 = vmatpush.bf16.msra.mxu0 %v676
    %910 = vmatpush.bf16.msra.mxu0 %v668
    %911 = vmatpush.bf16.msra.mxu0 %v660
    %912 = vmatmul.bf16.gmra.mxu0 %v812
    %v913 = vpop.f32.mrf.mxu0
    %v914 = vadd.f32 %v901, %v913
    %v915 = vpop.f32.mrf.mxu0
    %916 = vdwg.mxu0
    %917 = vmatpush.bf16.msra.mxu0 %v653
    %918 = vmatpush.bf16.msra.mxu0 %v645
    %919 = vmatpush.bf16.msra.mxu0 %v637
    %920 = vmatpush.bf16.msra.mxu0 %v629
    %921 = vmatpush.bf16.msra.mxu0 %v621
    %922 = vmatpush.bf16.msra.mxu0 %v613
    %923 = vmatpush.bf16.msra.mxu0 %v605
    %924 = vmatpush.bf16.msra.mxu0 %v597
    %925 = vmatmul.bf16.gmra.mxu0 %v267
    %v926 = vpop.f32.mrf.mxu0
    %v927 = vadd.f32 %v251, %v926
    %v928 = vpop.f32.mrf.mxu0
    %929 = vdwg.mxu0
    %930 = vmatpush.bf16.msra.mxu0 0
    %931 = vmatpush.bf16.msra.mxu0 0
    %932 = vmatpush.bf16.msra.mxu0 %v825
    %933 = vmatpush.bf16.msra.mxu0 %v693
    %934 = vmatpush.bf16.msra.mxu0 %v685
    %935 = vmatpush.bf16.msra.mxu0 %v677
    %936 = vmatpush.bf16.msra.mxu0 %v669
    %937 = vmatpush.bf16.msra.mxu0 %v661
    %938 = vmatmul.bf16.gmra.mxu0 %v812
    %v939 = vpop.f32.mrf.mxu0
    %v940 = vadd.f32 %v927, %v939
    %v941 = vpop.f32.mrf.mxu0
    %942 = vdwg.mxu0
    %943 = vmatpush.bf16.msra.mxu0 %v654
    %944 = vmatpush.bf16.msra.mxu0 %v646
    %945 = vmatpush.bf16.msra.mxu0 %v638
    %946 = vmatpush.bf16.msra.mxu0 %v630
    %947 = vmatpush.bf16.msra.mxu0 %v622
    %948 = vmatpush.bf16.msra.mxu0 %v614
    %949 = vmatpush.bf16.msra.mxu0 %v606
    %950 = vmatpush.bf16.msra.mxu0 %v598
    %951 = vmatmul.bf16.gmra.mxu0 %v267
    %v952 = vpop.f32.mrf.mxu0
    %v953 = vadd.f32 %v252, %v952
    %v954 = vpop.f32.mrf.mxu0
    %955 = vdwg.mxu0
    %956 = vmatpush.bf16.msra.mxu0 0
    %957 = vmatpush.bf16.msra.mxu0 0
    %958 = vmatpush.bf16.msra.mxu0 %v828
    %959 = vmatpush.bf16.msra.mxu0 %v694
    %960 = vmatpush.bf16.msra.mxu0 %v686
    %961 = vmatpush.bf16.msra.mxu0 %v678
    %962 = vmatpush.bf16.msra.mxu0 %v670
    %963 = vmatpush.bf16.msra.mxu0 %v662
    %964 = vmatmul.bf16.gmra.mxu0 %v812
    %v965 = vpop.f32.mrf.mxu0
    %v966 = vadd.f32 %v953, %v965
    %v967 = vpop.f32.mrf.mxu0
    %968 = vdwg.mxu0
    %969 = vmatpush.bf16.msra.mxu0 %v655
    %970 = vmatpush.bf16.msra.mxu0 %v647
    %971 = vmatpush.bf16.msra.mxu0 %v639
    %972 = vmatpush.bf16.msra.mxu0 %v631
    %973 = vmatpush.bf16.msra.mxu0 %v623
    %974 = vmatpush.bf16.msra.mxu0 %v615
    %975 = vmatpush.bf16.msra.mxu0 %v607
    %976 = vmatpush.bf16.msra.mxu0 %v599
    %977 = vmatmul.bf16.gmra.mxu0 %v267
    %v978 = vpop.f32.mrf.mxu0
    %v979 = vadd.f32 %v253, %v978
    %v980 = vpop.f32.mrf.mxu0
    %981 = vdwg.mxu0
    %982 = vmatpush.bf16.msra.mxu0 0
    %983 = vmatpush.bf16.msra.mxu0 0
    %984 = vmatpush.bf16.msra.mxu0 %v831
    %985 = vmatpush.bf16.msra.mxu0 %v695
    %986 = vmatpush.bf16.msra.mxu0 %v687
    %987 = vmatpush.bf16.msra.mxu0 %v679
    %988 = vmatpush.bf16.msra.mxu0 %v671
    %989 = vmatpush.bf16.msra.mxu0 %v663
    %990 = vmatmul.bf16.gmra.mxu0 %v812
    %v991 = vpop.f32.mrf.mxu0
    %v992 = vadd.f32 %v979, %v991
    %v993 = vpop.f32.mrf.mxu0
    %994 = vdwg.mxu0
    %995 = vmatpush.bf16.msra.mxu0 %v656
    %996 = vmatpush.bf16.msra.mxu0 %v648
    %997 = vmatpush.bf16.msra.mxu0 %v640
    %998 = vmatpush.bf16.msra.mxu0 %v632
    %999 = vmatpush.bf16.msra.mxu0 %v624
    %1000 = vmatpush.bf16.msra.mxu0 %v616
    %1001 = vmatpush.bf16.msra.mxu0 %v608
    %1002 = vmatpush.bf16.msra.mxu0 %v600
    %1003 = vmatmul.bf16.gmra.mxu0 %v267
    %v1004 = vpop.f32.mrf.mxu0
    %v1005 = vadd.f32 %v254, %v1004
    %v1006 = vpop.f32.mrf.mxu0
    %1007 = vdwg.mxu0
    %1008 = vmatpush.bf16.msra.mxu0 0
    %1009 = vmatpush.bf16.msra.mxu0 0
    %1010 = vmatpush.bf16.msra.mxu0 %v834
    %1011 = vmatpush.bf16.msra.mxu0 %v696
    %1012 = vmatpush.bf16.msra.mxu0 %v688
    %1013 = vmatpush.bf16.msra.mxu0 %v680
    %1014 = vmatpush.bf16.msra.mxu0 %v672
    %1015 = vmatpush.bf16.msra.mxu0 %v664
    %1016 = vmatmul.bf16.gmra.mxu0 %v812
    %v1017 = vpop.f32.mrf.mxu0
    %v1018 = vadd.f32 %v1005, %v1017
    %v1019 = vpop.f32.mrf.mxu0
    %1020 = vdwg.mxu0
    %1021 = vmatpush.bf16.msra.mxu0 %v657
    %1022 = vmatpush.bf16.msra.mxu0 %v649
    %1023 = vmatpush.bf16.msra.mxu0 %v641
    %1024 = vmatpush.bf16.msra.mxu0 %v633
    %1025 = vmatpush.bf16.msra.mxu0 %v625
    %1026 = vmatpush.bf16.msra.mxu0 %v617
    %1027 = vmatpush.bf16.msra.mxu0 %v609
    %1028 = vmatpush.bf16.msra.mxu0 %v601
    %1029 = vmatmul.bf16.gmra.mxu0 %v267
    %v1030 = vpop.f32.mrf.mxu0
    %v1031 = vadd.f32 %v255, %v1030
    %v1032 = vpop.f32.mrf.mxu0
    %1033 = vdwg.mxu0
    %1034 = vmatpush.bf16.msra.mxu0 0
    %1035 = vmatpush.bf16.msra.mxu0 0
    %1036 = vmatpush.bf16.msra.mxu0 %v837
    %1037 = vmatpush.bf16.msra.mxu0 %v697
    %1038 = vmatpush.bf16.msra.mxu0 %v689
    %1039 = vmatpush.bf16.msra.mxu0 %v681
    %1040 = vmatpush.bf16.msra.mxu0 %v673
    %1041 = vmatpush.bf16.msra.mxu0 %v665
    %1042 = vmatmul.bf16.gmra.mxu0 %v812
    %v1043 = vpop.f32.mrf.mxu0
    %v1044 = vadd.f32 %v1031, %v1043
    %v1045 = vpop.f32.mrf.mxu0
    %1046 = vdwg.mxu0
    %v1047 = vmax.f32 %v862, 0.0
    %v1048 = vmax.f32 %v888, 0.0
    %v1049 = vmax.f32 %v914, 0.0
    %v1050 = vmax.f32 %v940, 0.0
    %v1051 = vmax.f32 %v966, 0.0
    %v1052 = vmax.f32 %v992, 0.0
    %v1053 = vmax.f32 %v1018, 0.0
    %v1054 = vmax.f32 %v1044, 0.0
    %v1055 = vpack.c.bf16 %v1047, %v1047
    %v1056 = vpack.c.bf16 %v1048, %v1048
    %v1057 = vpack.c.bf16 %v1049, %v1049
    %v1058 = vpack.c.bf16 %v1050, %v1050
    %v1059 = vpack.c.bf16 %v1051, %v1051
    %v1060 = vpack.c.bf16 %v1052, %v1052
    %v1061 = vpack.c.bf16 %v1053, %v1053
    %v1062 = vpack.c.bf16 %v1054, %v1054
    %v1063 = vld [vmem:[#allocation4] sm:$0xff]
    %v1064 = vld [vmem:[#allocation4 + $0x8] sm:$0xff]
    %v1065 = vld [vmem:[#allocation4 + $0x10] sm:$0xff]
    %v1066 = vld [vmem:[#allocation4 + $0x18] sm:$0xff]
    %v1067 = vld [vmem:[#allocation4 + $0x20] sm:$0xff]
    %v1068 = vld [vmem:[#allocation4 + $0x28] sm:$0xff]
    %v1069 = vld [vmem:[#allocation4 + $0x30] sm:$0xff]
    %v1070 = vld [vmem:[#allocation4 + $0x38] sm:$0xff]
    %v1071 = vld [vmem:[#allocation4 + $0x40] sm:$0xff]
    %v1072 = vld [vmem:[#allocation4 + $0x48] sm:$0xff]
    %v1073 = vld [vmem:[#allocation4 + $0x50] sm:$0xff]
    %v1074 = vld [vmem:[#allocation4 + $0x58] sm:$0xff]
    %v1075 = vld [vmem:[#allocation4 + $0x60] sm:$0xff]
    %v1076 = vld [vmem:[#allocation4 + $0x68] sm:$0xff]
    %v1077 = vld [vmem:[#allocation4 + $0x70] sm:$0xff]
    %v1078 = vld [vmem:[#allocation4 + $0x78] sm:$0xff]
    %v1079 = vld [vmem:[#allocation4 + $0x80] sm:$0xff]
    %v1080 = vld [vmem:[#allocation4 + $0x88] sm:$0xff]
    %v1081 = vld [vmem:[#allocation4 + $0x90] sm:$0xff]
    %v1082 = vld [vmem:[#allocation4 + $0x98] sm:$0xff]
    %v1083 = vld [vmem:[#allocation4 + $0xa0] sm:$0xff]
    %v1084 = vld [vmem:[#allocation4 + $0xa8] sm:$0xff]
    %v1085 = vld [vmem:[#allocation4 + $0xb0] sm:$0xff]
    %v1086 = vld [vmem:[#allocation4 + $0xb8] sm:$0xff]
    %v1087 = vld [vmem:[#allocation4 + $0xc0] sm:$0xff]
    %v1088 = vld [vmem:[#allocation4 + $0xc8] sm:$0xff]
    %v1089 = vld [vmem:[#allocation4 + $0xd0] sm:$0xff]
    %v1090 = vld [vmem:[#allocation4 + $0xd8] sm:$0xff]
    %v1091 = vld [vmem:[#allocation4 + $0xe0] sm:$0xff]
    %v1092 = vld [vmem:[#allocation4 + $0xe8] sm:$0xff]
    %v1093 = vld [vmem:[#allocation4 + $0xf0] sm:$0xff]
    %v1094 = vld [vmem:[#allocation4 + $0xf8] sm:$0xff]
    %v1095 = vld [vmem:[#allocation4 + $0x100] sm:$0xff]
    %v1096 = vld [vmem:[#allocation4 + $0x108] sm:$0xff]
    %v1097 = vld [vmem:[#allocation4 + $0x110] sm:$0xff]
    %v1098 = vld [vmem:[#allocation4 + $0x118] sm:$0xff]
    %v1099 = vld [vmem:[#allocation4 + $0x120] sm:$0xff]
    %v1100 = vld [vmem:[#allocation4 + $0x128] sm:$0xff]
    %v1101 = vld [vmem:[#allocation4 + $0x130] sm:$0xff]
    %v1102 = vld [vmem:[#allocation4 + $0x138] sm:$0xff]
    %v1103 = vld [vmem:[#allocation4 + $0x140] sm:$0xff]
    %v1104 = vld [vmem:[#allocation4 + $0x148] sm:$0xff]
    %v1105 = vld [vmem:[#allocation4 + $0x150] sm:$0xff]
    %v1106 = vld [vmem:[#allocation4 + $0x158] sm:$0xff]
    %v1107 = vld [vmem:[#allocation4 + $0x160] sm:$0xff]
    %v1108 = vld [vmem:[#allocation4 + $0x168] sm:$0xff]
    %v1109 = vld [vmem:[#allocation4 + $0x170] sm:$0xff]
    %v1110 = vld [vmem:[#allocation4 + $0x178] sm:$0xff]
    %v1111 = vld [vmem:[#allocation4 + $0x180] sm:$0xff]
    %v1112 = vld [vmem:[#allocation4 + $0x188] sm:$0xff]
    %v1113 = vld [vmem:[#allocation4 + $0x190] sm:$0xff]
    %v1114 = vld [vmem:[#allocation4 + $0x198] sm:$0xff]
    %v1115 = vld [vmem:[#allocation4 + $0x1a0] sm:$0xff]
    %v1116 = vld [vmem:[#allocation4 + $0x1a8] sm:$0xff]
    %v1117 = vld [vmem:[#allocation4 + $0x1b0] sm:$0xff]
    %v1118 = vld [vmem:[#allocation4 + $0x1b8] sm:$0xff]
    %v1119 = vld [vmem:[#allocation4 + $0x1c0] sm:$0xff]
    %v1120 = vld [vmem:[#allocation4 + $0x1c8] sm:$0xff]
    %v1121 = vld [vmem:[#allocation4 + $0x1d0] sm:$0xff]
    %v1122 = vld [vmem:[#allocation4 + $0x1d8] sm:$0xff]
    %v1123 = vld [vmem:[#allocation4 + $0x1e0] sm:$0xff]
    %v1124 = vld [vmem:[#allocation4 + $0x1e8] sm:$0xff]
    %v1125 = vld [vmem:[#allocation4 + $0x1f0] sm:$0xff]
    %v1126 = vld [vmem:[#allocation4 + $0x1f8] sm:$0xff]
    %v1127 = vld [vmem:[#allocation4 + $0x200] sm:$0xff]
    %v1128 = vld [vmem:[#allocation4 + $0x208] sm:$0xff]
    %v1129 = vld [vmem:[#allocation4 + $0x210] sm:$0xff]
    %v1130 = vld [vmem:[#allocation4 + $0x218] sm:$0xff]
    %v1131 = vld [vmem:[#allocation4 + $0x220] sm:$0xff]
    %v1132 = vld [vmem:[#allocation4 + $0x228] sm:$0xff]
    %v1133 = vld [vmem:[#allocation4 + $0x230] sm:$0xff]
    %v1134 = vld [vmem:[#allocation4 + $0x238] sm:$0xff]
    %v1135 = vld [vmem:[#allocation4 + $0x240] sm:$0xff]
    %v1136 = vld [vmem:[#allocation4 + $0x248] sm:$0xff]
    %v1137 = vld [vmem:[#allocation4 + $0x250] sm:$0xff]
    %v1138 = vld [vmem:[#allocation4 + $0x258] sm:$0xff]
    %v1139 = vld [vmem:[#allocation4 + $0x260] sm:$0xff]
    %v1140 = vld [vmem:[#allocation4 + $0x268] sm:$0xff]
    %v1141 = vld [vmem:[#allocation4 + $0x270] sm:$0xff]
    %v1142 = vld [vmem:[#allocation4 + $0x278] sm:$0xff]
    %v1143 = vld [vmem:[#allocation4 + $0x280] sm:$0xff]
    %v1144 = vld [vmem:[#allocation4 + $0x288] sm:$0xff]
    %v1145 = vld [vmem:[#allocation4 + $0x290] sm:$0xff]
    %v1146 = vld [vmem:[#allocation4 + $0x298] sm:$0xff]
    %v1147 = vld [vmem:[#allocation4 + $0x2a0] sm:$0xff]
    %v1148 = vld [vmem:[#allocation4 + $0x2a8] sm:$0xff]
    %v1149 = vld [vmem:[#allocation4 + $0x2b0] sm:$0xff]
    %v1150 = vld [vmem:[#allocation4 + $0x2b8] sm:$0xff]
    %v1151 = vld [vmem:[#allocation4 + $0x2c0] sm:$0xff]
    %v1152 = vld [vmem:[#allocation4 + $0x2c8] sm:$0xff]
    %v1153 = vld [vmem:[#allocation4 + $0x2d0] sm:$0xff]
    %v1154 = vld [vmem:[#allocation4 + $0x2d8] sm:$0xff]
    %v1155 = vld [vmem:[#allocation4 + $0x2e0] sm:$0xff]
    %v1156 = vld [vmem:[#allocation4 + $0x2e8] sm:$0xff]
    %v1157 = vld [vmem:[#allocation4 + $0x2f0] sm:$0xff]
    %v1158 = vld [vmem:[#allocation4 + $0x2f8] sm:$0xff]
    %v1159 = vld [vmem:[#allocation4 + $0x300] sm:$0xff]
    %v1160 = vld [vmem:[#allocation4 + $0x308] sm:$0xff]
    %v1161 = vld [vmem:[#allocation4 + $0x310] sm:$0xff]
    %v1162 = vld [vmem:[#allocation4 + $0x318] sm:$0xff]
    %v1163 = vld [vmem:[#allocation4 + $0x320] sm:$0xff]
    %v1164 = vld [vmem:[#allocation4 + $0x328] sm:$0xff]
    %v1165 = vld [vmem:[#allocation4 + $0x330] sm:$0xff]
    %v1166 = vld [vmem:[#allocation4 + $0x338] sm:$0xff]
    %v1167 = vld [vmem:[#allocation4 + $0x340] sm:$0xff]
    %v1168 = vld [vmem:[#allocation4 + $0x348] sm:$0xff]
    %v1169 = vld [vmem:[#allocation4 + $0x350] sm:$0xff]
    %v1170 = vld [vmem:[#allocation4 + $0x358] sm:$0xff]
    %v1171 = vld [vmem:[#allocation4 + $0x360] sm:$0xff]
    %v1172 = vld [vmem:[#allocation4 + $0x368] sm:$0xff]
    %v1173 = vld [vmem:[#allocation4 + $0x370] sm:$0xff]
    %v1174 = vld [vmem:[#allocation4 + $0x378] sm:$0xff]
    %v1175 = vld [vmem:[#allocation4 + $0x380] sm:$0xff]
    %v1176 = vld [vmem:[#allocation4 + $0x388] sm:$0xff]
    %v1177 = vld [vmem:[#allocation4 + $0x390] sm:$0xff]
    %v1178 = vld [vmem:[#allocation4 + $0x398] sm:$0xff]
    %v1179 = vld [vmem:[#allocation4 + $0x3a0] sm:$0xff]
    %v1180 = vld [vmem:[#allocation4 + $0x3a8] sm:$0xff]
    %v1181 = vld [vmem:[#allocation4 + $0x3b0] sm:$0xff]
    %v1182 = vld [vmem:[#allocation4 + $0x3b8] sm:$0xff]
    %v1183 = vld [vmem:[#allocation4 + $0x3c0] sm:$0xff]
    %v1184 = vld [vmem:[#allocation4 + $0x3c8] sm:$0xff]
    %v1185 = vld [vmem:[#allocation4 + $0x3d0] sm:$0xff]
    %v1186 = vld [vmem:[#allocation4 + $0x3d8] sm:$0xff]
    %v1187 = vld [vmem:[#allocation4 + $0x3e0] sm:$0xff]
    %v1188 = vld [vmem:[#allocation4 + $0x3e8] sm:$0xff]
    %v1189 = vld [vmem:[#allocation4 + $0x3f0] sm:$0xff]
    %v1190 = vld [vmem:[#allocation4 + $0x3f8] sm:$0xff]
    %v1191 = vld [vmem:[#allocation4 + $0x400] sm:$0xff]
    %v1192 = vld [vmem:[#allocation4 + $0x408] sm:$0xff]
    %v1193 = vld [vmem:[#allocation4 + $0x410] sm:$0xff]
    %v1194 = vld [vmem:[#allocation4 + $0x418] sm:$0xff]
    %v1195 = vld [vmem:[#allocation4 + $0x420] sm:$0xff]
    %v1196 = vld [vmem:[#allocation4 + $0x428] sm:$0xff]
    %v1197 = vld [vmem:[#allocation4 + $0x430] sm:$0xff]
    %v1198 = vld [vmem:[#allocation4 + $0x438] sm:$0xff]
    %v1199 = vld [vmem:[#allocation4 + $0x440] sm:$0xff]
    %v1200 = vld [vmem:[#allocation4 + $0x448] sm:$0xff]
    %v1201 = vld [vmem:[#allocation4 + $0x450] sm:$0xff]
    %v1202 = vld [vmem:[#allocation4 + $0x458] sm:$0xff]
    %v1203 = vld [vmem:[#allocation4 + $0x460] sm:$0xff]
    %v1204 = vld [vmem:[#allocation4 + $0x468] sm:$0xff]
    %v1205 = vld [vmem:[#allocation4 + $0x470] sm:$0xff]
    %v1206 = vld [vmem:[#allocation4 + $0x478] sm:$0xff]
    %v1207 = vld [vmem:[#allocation4 + $0x480] sm:$0xff]
    %v1208 = vld [vmem:[#allocation4 + $0x488] sm:$0xff]
    %v1209 = vld [vmem:[#allocation4 + $0x490] sm:$0xff]
    %v1210 = vld [vmem:[#allocation4 + $0x498] sm:$0xff]
    %v1211 = vld [vmem:[#allocation4 + $0x4a0] sm:$0xff]
    %v1212 = vld [vmem:[#allocation4 + $0x4a8] sm:$0xff]
    %v1213 = vld [vmem:[#allocation4 + $0x4b0] sm:$0xff]
    %v1214 = vld [vmem:[#allocation4 + $0x4b8] sm:$0xff]
    %v1215 = vld [vmem:[#allocation4 + $0x4c0] sm:$0xff]
    %v1216 = vld [vmem:[#allocation4 + $0x4c8] sm:$0xff]
    %v1217 = vld [vmem:[#allocation4 + $0x4d0] sm:$0xff]
    %v1218 = vld [vmem:[#allocation4 + $0x4d8] sm:$0xff]
    %v1219 = vld [vmem:[#allocation4 + $0x4e0] sm:$0xff]
    %v1220 = vld [vmem:[#allocation4 + $0x4e8] sm:$0xff]
    %v1221 = vld [vmem:[#allocation4 + $0x4f0] sm:$0xff]
    %v1222 = vld [vmem:[#allocation4 + $0x4f8] sm:$0xff]
    %v1223 = vld [vmem:[#allocation4 + $0x500] sm:$0xff]
    %v1224 = vld [vmem:[#allocation4 + $0x508] sm:$0xff]
    %v1225 = vld [vmem:[#allocation4 + $0x510] sm:$0xff]
    %v1226 = vld [vmem:[#allocation4 + $0x518] sm:$0xff]
    %v1227 = vld [vmem:[#allocation4 + $0x520] sm:$0xff]
    %v1228 = vld [vmem:[#allocation4 + $0x528] sm:$0xff]
    %v1229 = vld [vmem:[#allocation4 + $0x530] sm:$0xff]
    %v1230 = vld [vmem:[#allocation4 + $0x538] sm:$0xff]
    %v1231 = vld [vmem:[#allocation4 + $0x540] sm:$0xff]
    %v1232 = vld [vmem:[#allocation4 + $0x548] sm:$0xff]
    %v1233 = vld [vmem:[#allocation4 + $0x550] sm:$0xff]
    %v1234 = vld [vmem:[#allocation4 + $0x558] sm:$0xff]
    %v1235 = vld [vmem:[#allocation4 + $0x560] sm:$0xff]
    %v1236 = vld [vmem:[#allocation4 + $0x568] sm:$0xff]
    %v1237 = vld [vmem:[#allocation4 + $0x570] sm:$0xff]
    %v1238 = vld [vmem:[#allocation4 + $0x578] sm:$0xff]
    %v1239 = vld [vmem:[#allocation4 + $0x580] sm:$0xff]
    %v1240 = vld [vmem:[#allocation4 + $0x588] sm:$0xff]
    %v1241 = vld [vmem:[#allocation4 + $0x590] sm:$0xff]
    %v1242 = vld [vmem:[#allocation4 + $0x598] sm:$0xff]
    %v1243 = vld [vmem:[#allocation4 + $0x5a0] sm:$0xff]
    %v1244 = vld [vmem:[#allocation4 + $0x5a8] sm:$0xff]
    %v1245 = vld [vmem:[#allocation4 + $0x5b0] sm:$0xff]
    %v1246 = vld [vmem:[#allocation4 + $0x5b8] sm:$0xff]
    %v1247 = vld [vmem:[#allocation4 + $0x5c0] sm:$0xff]
    %v1248 = vld [vmem:[#allocation4 + $0x5c8] sm:$0xff]
    %v1249 = vld [vmem:[#allocation4 + $0x5d0] sm:$0xff]
    %v1250 = vld [vmem:[#allocation4 + $0x5d8] sm:$0xff]
    %v1251 = vld [vmem:[#allocation4 + $0x5e0] sm:$0xff]
    %v1252 = vld [vmem:[#allocation4 + $0x5e8] sm:$0xff]
    %v1253 = vld [vmem:[#allocation4 + $0x5f0] sm:$0xff]
    %v1254 = vld [vmem:[#allocation4 + $0x5f8] sm:$0xff]
    %v1255 = vld [vmem:[#allocation4 + $0x600] sm:$0xff]
    %v1256 = vld [vmem:[#allocation4 + $0x608] sm:$0xff]
    %v1257 = vld [vmem:[#allocation4 + $0x610] sm:$0xff]
    %v1258 = vld [vmem:[#allocation4 + $0x618] sm:$0xff]
    %v1259 = vld [vmem:[#allocation4 + $0x620] sm:$0xff]
    %v1260 = vld [vmem:[#allocation4 + $0x628] sm:$0xff]
    %v1261 = vld [vmem:[#allocation4 + $0x630] sm:$0xff]
    %v1262 = vld [vmem:[#allocation4 + $0x638] sm:$0xff]
    %v1263 = vld [vmem:[#allocation4 + $0x640] sm:$0xff]
    %v1264 = vld [vmem:[#allocation4 + $0x648] sm:$0xff]
    %v1265 = vld [vmem:[#allocation4 + $0x650] sm:$0xff]
    %v1266 = vld [vmem:[#allocation4 + $0x658] sm:$0xff]
    %v1267 = vld [vmem:[#allocation4 + $0x660] sm:$0xff]
    %v1268 = vld [vmem:[#allocation4 + $0x668] sm:$0xff]
    %v1269 = vld [vmem:[#allocation4 + $0x670] sm:$0xff]
    %v1270 = vld [vmem:[#allocation4 + $0x678] sm:$0xff]
    %v1271 = vld [vmem:[#allocation4 + $0x680] sm:$0xff]
    %v1272 = vld [vmem:[#allocation4 + $0x688] sm:$0xff]
    %v1273 = vld [vmem:[#allocation4 + $0x690] sm:$0xff]
    %v1274 = vld [vmem:[#allocation4 + $0x698] sm:$0xff]
    %v1275 = vld [vmem:[#allocation4 + $0x6a0] sm:$0xff]
    %v1276 = vld [vmem:[#allocation4 + $0x6a8] sm:$0xff]
    %v1277 = vld [vmem:[#allocation4 + $0x6b0] sm:$0xff]
    %v1278 = vld [vmem:[#allocation4 + $0x6b8] sm:$0xff]
    %v1279 = vld [vmem:[#allocation4 + $0x6c0] sm:$0xff]
    %v1280 = vld [vmem:[#allocation4 + $0x6c8] sm:$0xff]
    %v1281 = vld [vmem:[#allocation4 + $0x6d0] sm:$0xff]
    %v1282 = vld [vmem:[#allocation4 + $0x6d8] sm:$0xff]
    %v1283 = vld [vmem:[#allocation4 + $0x6e0] sm:$0xff]
    %v1284 = vld [vmem:[#allocation4 + $0x6e8] sm:$0xff]
    %v1285 = vld [vmem:[#allocation4 + $0x6f0] sm:$0xff]
    %v1286 = vld [vmem:[#allocation4 + $0x6f8] sm:$0xff]
    %v1287 = vld [vmem:[#allocation4 + $0x700] sm:$0xff]
    %v1288 = vld [vmem:[#allocation4 + $0x708] sm:$0xff]
    %v1289 = vld [vmem:[#allocation4 + $0x710] sm:$0xff]
    %v1290 = vld [vmem:[#allocation4 + $0x718] sm:$0xff]
    %v1291 = vld [vmem:[#allocation4 + $0x720] sm:$0xff]
    %v1292 = vld [vmem:[#allocation4 + $0x728] sm:$0xff]
    %v1293 = vld [vmem:[#allocation4 + $0x730] sm:$0xff]
    %v1294 = vld [vmem:[#allocation4 + $0x738] sm:$0xff]
    %v1295 = vld [vmem:[#allocation4 + $0x740] sm:$0xff]
    %v1296 = vld [vmem:[#allocation4 + $0x748] sm:$0xff]
    %v1297 = vld [vmem:[#allocation4 + $0x750] sm:$0xff]
    %v1298 = vld [vmem:[#allocation4 + $0x758] sm:$0xff]
    %v1299 = vld [vmem:[#allocation4 + $0x760] sm:$0xff]
    %v1300 = vld [vmem:[#allocation4 + $0x768] sm:$0xff]
    %v1301 = vld [vmem:[#allocation4 + $0x770] sm:$0xff]
    %v1302 = vld [vmem:[#allocation4 + $0x778] sm:$0xff]
    %v1303 = vld [vmem:[#allocation4 + $0x780] sm:$0xff]
    %v1304 = vld [vmem:[#allocation4 + $0x788] sm:$0xff]
    %v1305 = vld [vmem:[#allocation4 + $0x790] sm:$0xff]
    %v1306 = vld [vmem:[#allocation4 + $0x798] sm:$0xff]
    %v1307 = vld [vmem:[#allocation4 + $0x7a0] sm:$0xff]
    %v1308 = vld [vmem:[#allocation4 + $0x7a8] sm:$0xff]
    %v1309 = vld [vmem:[#allocation4 + $0x7b0] sm:$0xff]
    %v1310 = vld [vmem:[#allocation4 + $0x7b8] sm:$0xff]
    %v1311 = vld [vmem:[#allocation4 + $0x7c0] sm:$0xff]
    %v1312 = vld [vmem:[#allocation4 + $0x7c8] sm:$0xff]
    %v1313 = vld [vmem:[#allocation4 + $0x7d0] sm:$0xff]
    %v1314 = vld [vmem:[#allocation4 + $0x7d8] sm:$0xff]
    %v1315 = vld [vmem:[#allocation4 + $0x7e0] sm:$0xff]
    %v1316 = vld [vmem:[#allocation4 + $0x7e8] sm:$0xff]
    %v1317 = vld [vmem:[#allocation4 + $0x7f0] sm:$0xff]
    %v1318 = vld [vmem:[#allocation4 + $0x7f8] sm:$0xff]
    %v1319 = vld [vmem:[#allocation4 + $0x800] sm:$0xff]
    %v1320 = vld [vmem:[#allocation4 + $0x808] sm:$0xff]
    %v1321 = vld [vmem:[#allocation4 + $0x810] sm:$0xff]
    %v1322 = vld [vmem:[#allocation4 + $0x818] sm:$0xff]
    %v1323 = vld [vmem:[#allocation4 + $0x820] sm:$0xff]
    %v1324 = vld [vmem:[#allocation4 + $0x828] sm:$0xff]
    %v1325 = vld [vmem:[#allocation4 + $0x830] sm:$0xff]
    %v1326 = vld [vmem:[#allocation4 + $0x838] sm:$0xff]
    %v1327 = vld [vmem:[#allocation4 + $0x840] sm:$0xff]
    %v1328 = vld [vmem:[#allocation4 + $0x848] sm:$0xff]
    %v1329 = vld [vmem:[#allocation4 + $0x850] sm:$0xff]
    %v1330 = vld [vmem:[#allocation4 + $0x858] sm:$0xff]
    %v1331 = vld [vmem:[#allocation4 + $0x860] sm:$0xff]
    %v1332 = vld [vmem:[#allocation4 + $0x868] sm:$0xff]
    %v1333 = vld [vmem:[#allocation4 + $0x870] sm:$0xff]
    %v1334 = vld [vmem:[#allocation4 + $0x878] sm:$0xff]
    %v1335 = vld [vmem:[#allocation4 + $0x880] sm:$0xff]
    %v1336 = vld [vmem:[#allocation4 + $0x888] sm:$0xff]
    %v1337 = vld [vmem:[#allocation4 + $0x890] sm:$0xff]
    %v1338 = vld [vmem:[#allocation4 + $0x898] sm:$0xff]
    %v1339 = vld [vmem:[#allocation4 + $0x8a0] sm:$0xff]
    %v1340 = vld [vmem:[#allocation4 + $0x8a8] sm:$0xff]
    %v1341 = vld [vmem:[#allocation4 + $0x8b0] sm:$0xff]
    %v1342 = vld [vmem:[#allocation4 + $0x8b8] sm:$0xff]
    %v1343 = vld [vmem:[#allocation4 + $0x8c0] sm:$0xff]
    %v1344 = vld [vmem:[#allocation4 + $0x8c8] sm:$0xff]
    %v1345 = vld [vmem:[#allocation4 + $0x8d0] sm:$0xff]
    %v1346 = vld [vmem:[#allocation4 + $0x8d8] sm:$0xff]
    %v1347 = vld [vmem:[#allocation4 + $0x8e0] sm:$0xff]
    %v1348 = vld [vmem:[#allocation4 + $0x8e8] sm:$0xff]
    %v1349 = vld [vmem:[#allocation4 + $0x8f0] sm:$0xff]
    %v1350 = vld [vmem:[#allocation4 + $0x8f8] sm:$0xff]
    %v1351 = vld [vmem:[#allocation4 + $0x900] sm:$0xff]
    %v1352 = vld [vmem:[#allocation4 + $0x908] sm:$0xff]
    %v1353 = vld [vmem:[#allocation4 + $0x910] sm:$0xff]
    %v1354 = vld [vmem:[#allocation4 + $0x918] sm:$0xff]
    %v1355 = vld [vmem:[#allocation4 + $0x920] sm:$0xff]
    %v1356 = vld [vmem:[#allocation4 + $0x928] sm:$0xff]
    %v1357 = vld [vmem:[#allocation4 + $0x930] sm:$0xff]
    %v1358 = vld [vmem:[#allocation4 + $0x938] sm:$0xff]
    %v1359 = vld [vmem:[#allocation4 + $0x940] sm:$0xff]
    %v1360 = vld [vmem:[#allocation4 + $0x948] sm:$0xff]
    %v1361 = vld [vmem:[#allocation4 + $0x950] sm:$0xff]
    %v1362 = vld [vmem:[#allocation4 + $0x958] sm:$0xff]
    %v1363 = vld [vmem:[#allocation4 + $0x960] sm:$0xff]
    %v1364 = vld [vmem:[#allocation4 + $0x968] sm:$0xff]
    %v1365 = vld [vmem:[#allocation4 + $0x970] sm:$0xff]
    %v1366 = vld [vmem:[#allocation4 + $0x978] sm:$0xff]
    %v1367 = vld [vmem:[#allocation4 + $0x980] sm:$0xff]
    %v1368 = vld [vmem:[#allocation4 + $0x988] sm:$0xff]
    %v1369 = vld [vmem:[#allocation4 + $0x990] sm:$0xff]
    %v1370 = vld [vmem:[#allocation4 + $0x998] sm:$0xff]
    %v1371 = vld [vmem:[#allocation4 + $0x9a0] sm:$0xff]
    %v1372 = vld [vmem:[#allocation4 + $0x9a8] sm:$0xff]
    %v1373 = vld [vmem:[#allocation4 + $0x9b0] sm:$0xff]
    %v1374 = vld [vmem:[#allocation4 + $0x9b8] sm:$0xff]
    %v1375 = vld [vmem:[#allocation4 + $0x9c0] sm:$0xff]
    %v1376 = vld [vmem:[#allocation4 + $0x9c8] sm:$0xff]
    %v1377 = vld [vmem:[#allocation4 + $0x9d0] sm:$0xff]
    %v1378 = vld [vmem:[#allocation4 + $0x9d8] sm:$0xff]
    %v1379 = vld [vmem:[#allocation4 + $0x9e0] sm:$0xff]
    %v1380 = vld [vmem:[#allocation4 + $0x9e8] sm:$0xff]
    %v1381 = vld [vmem:[#allocation4 + $0x9f0] sm:$0xff]
    %v1382 = vld [vmem:[#allocation4 + $0x9f8] sm:$0xff]
    %v1383 = vld [vmem:[#allocation4 + $0xa00] sm:$0xff]
    %v1384 = vld [vmem:[#allocation4 + $0xa08] sm:$0xff]
    %v1385 = vld [vmem:[#allocation4 + $0xa10] sm:$0xff]
    %v1386 = vld [vmem:[#allocation4 + $0xa18] sm:$0xff]
    %v1387 = vld [vmem:[#allocation4 + $0xa20] sm:$0xff]
    %v1388 = vld [vmem:[#allocation4 + $0xa28] sm:$0xff]
    %v1389 = vld [vmem:[#allocation4 + $0xa30] sm:$0xff]
    %v1390 = vld [vmem:[#allocation4 + $0xa38] sm:$0xff]
    %v1391 = vld [vmem:[#allocation4 + $0xa40] sm:$0xff]
    %v1392 = vld [vmem:[#allocation4 + $0xa48] sm:$0xff]
    %v1393 = vld [vmem:[#allocation4 + $0xa50] sm:$0xff]
    %v1394 = vld [vmem:[#allocation4 + $0xa58] sm:$0xff]
    %v1395 = vld [vmem:[#allocation4 + $0xa60] sm:$0xff]
    %v1396 = vld [vmem:[#allocation4 + $0xa68] sm:$0xff]
    %v1397 = vld [vmem:[#allocation4 + $0xa70] sm:$0xff]
    %v1398 = vld [vmem:[#allocation4 + $0xa78] sm:$0xff]
    %v1399 = vld [vmem:[#allocation4 + $0xa80] sm:$0xff]
    %v1400 = vld [vmem:[#allocation4 + $0xa88] sm:$0xff]
    %v1401 = vld [vmem:[#allocation4 + $0xa90] sm:$0xff]
    %v1402 = vld [vmem:[#allocation4 + $0xa98] sm:$0xff]
    %v1403 = vld [vmem:[#allocation4 + $0xaa0] sm:$0xff]
    %v1404 = vld [vmem:[#allocation4 + $0xaa8] sm:$0xff]
    %v1405 = vld [vmem:[#allocation4 + $0xab0] sm:$0xff]
    %v1406 = vld [vmem:[#allocation4 + $0xab8] sm:$0xff]
    %v1407 = vld [vmem:[#allocation4 + $0xac0] sm:$0xff]
    %v1408 = vld [vmem:[#allocation4 + $0xac8] sm:$0xff]
    %v1409 = vld [vmem:[#allocation4 + $0xad0] sm:$0xff]
    %v1410 = vld [vmem:[#allocation4 + $0xad8] sm:$0xff]
    %v1411 = vld [vmem:[#allocation4 + $0xae0] sm:$0xff]
    %v1412 = vld [vmem:[#allocation4 + $0xae8] sm:$0xff]
    %v1413 = vld [vmem:[#allocation4 + $0xaf0] sm:$0xff]
    %v1414 = vld [vmem:[#allocation4 + $0xaf8] sm:$0xff]
    %v1415 = vld [vmem:[#allocation4 + $0xb00] sm:$0xff]
    %v1416 = vld [vmem:[#allocation4 + $0xb08] sm:$0xff]
    %v1417 = vld [vmem:[#allocation4 + $0xb10] sm:$0xff]
    %v1418 = vld [vmem:[#allocation4 + $0xb18] sm:$0xff]
    %v1419 = vld [vmem:[#allocation4 + $0xb20] sm:$0xff]
    %v1420 = vld [vmem:[#allocation4 + $0xb28] sm:$0xff]
    %v1421 = vld [vmem:[#allocation4 + $0xb30] sm:$0xff]
    %v1422 = vld [vmem:[#allocation4 + $0xb38] sm:$0xff]
    %v1423 = vld [vmem:[#allocation4 + $0xb40] sm:$0xff]
    %v1424 = vld [vmem:[#allocation4 + $0xb48] sm:$0xff]
    %v1425 = vld [vmem:[#allocation4 + $0xb50] sm:$0xff]
    %v1426 = vld [vmem:[#allocation4 + $0xb58] sm:$0xff]
    %v1427 = vld [vmem:[#allocation4 + $0xb60] sm:$0xff]
    %v1428 = vld [vmem:[#allocation4 + $0xb68] sm:$0xff]
    %v1429 = vld [vmem:[#allocation4 + $0xb70] sm:$0xff]
    %v1430 = vld [vmem:[#allocation4 + $0xb78] sm:$0xff]
    %v1431 = vld [vmem:[#allocation4 + $0xb80] sm:$0xff]
    %v1432 = vld [vmem:[#allocation4 + $0xb88] sm:$0xff]
    %v1433 = vld [vmem:[#allocation4 + $0xb90] sm:$0xff]
    %v1434 = vld [vmem:[#allocation4 + $0xb98] sm:$0xff]
    %v1435 = vld [vmem:[#allocation4 + $0xba0] sm:$0xff]
    %v1436 = vld [vmem:[#allocation4 + $0xba8] sm:$0xff]
    %v1437 = vld [vmem:[#allocation4 + $0xbb0] sm:$0xff]
    %v1438 = vld [vmem:[#allocation4 + $0xbb8] sm:$0xff]
    %v1439 = vld [vmem:[#allocation4 + $0xbc0] sm:$0xff]
    %v1440 = vld [vmem:[#allocation4 + $0xbc8] sm:$0xff]
    %v1441 = vld [vmem:[#allocation4 + $0xbd0] sm:$0xff]
    %v1442 = vld [vmem:[#allocation4 + $0xbd8] sm:$0xff]
    %v1443 = vld [vmem:[#allocation4 + $0xbe0] sm:$0xff]
    %v1444 = vld [vmem:[#allocation4 + $0xbe8] sm:$0xff]
    %v1445 = vld [vmem:[#allocation4 + $0xbf0] sm:$0xff]
    %v1446 = vld [vmem:[#allocation4 + $0xbf8] sm:$0xff]
    %v1447 = vld [vmem:[#allocation4 + $0xc00] sm:$0xff]
    %v1448 = vld [vmem:[#allocation4 + $0xc08] sm:$0xff]
    %v1449 = vld [vmem:[#allocation4 + $0xc10] sm:$0xff]
    %v1450 = vld [vmem:[#allocation4 + $0xc18] sm:$0xff]
    %v1451 = vld [vmem:[#allocation4 + $0xc20] sm:$0xff]
    %v1452 = vld [vmem:[#allocation4 + $0xc28] sm:$0xff]
    %v1453 = vld [vmem:[#allocation4 + $0xc30] sm:$0xff]
    %v1454 = vld [vmem:[#allocation4 + $0xc38] sm:$0xff]
    %v1455 = vld [vmem:[#allocation4 + $0xc40] sm:$0xff]
    %v1456 = vld [vmem:[#allocation4 + $0xc48] sm:$0xff]
    %v1457 = vld [vmem:[#allocation4 + $0xc50] sm:$0xff]
    %v1458 = vld [vmem:[#allocation4 + $0xc58] sm:$0xff]
    %v1459 = vld [vmem:[#allocation4 + $0xc60] sm:$0xff]
    %v1460 = vld [vmem:[#allocation4 + $0xc68] sm:$0xff]
    %v1461 = vld [vmem:[#allocation4 + $0xc70] sm:$0xff]
    %v1462 = vld [vmem:[#allocation4 + $0xc78] sm:$0xff]
    %v1463 = vld [vmem:[#allocation4 + $0xc80] sm:$0xff]
    %v1464 = vld [vmem:[#allocation4 + $0xc88] sm:$0xff]
    %v1465 = vld [vmem:[#allocation4 + $0xc90] sm:$0xff]
    %v1466 = vld [vmem:[#allocation4 + $0xc98] sm:$0xff]
    %v1467 = vld [vmem:[#allocation4 + $0xca0] sm:$0xff]
    %v1468 = vld [vmem:[#allocation4 + $0xca8] sm:$0xff]
    %v1469 = vld [vmem:[#allocation4 + $0xcb0] sm:$0xff]
    %v1470 = vld [vmem:[#allocation4 + $0xcb8] sm:$0xff]
    %v1471 = vld [vmem:[#allocation4 + $0xcc0] sm:$0xff]
    %v1472 = vld [vmem:[#allocation4 + $0xcc8] sm:$0xff]
    %v1473 = vld [vmem:[#allocation4 + $0xcd0] sm:$0xff]
    %v1474 = vld [vmem:[#allocation4 + $0xcd8] sm:$0xff]
    %v1475 = vld [vmem:[#allocation4 + $0xce0] sm:$0xff]
    %v1476 = vld [vmem:[#allocation4 + $0xce8] sm:$0xff]
    %v1477 = vld [vmem:[#allocation4 + $0xcf0] sm:$0xff]
    %v1478 = vld [vmem:[#allocation4 + $0xcf8] sm:$0xff]
    %v1479 = vld [vmem:[#allocation4 + $0xd00] sm:$0xff]
    %v1480 = vld [vmem:[#allocation4 + $0xd08] sm:$0xff]
    %v1481 = vld [vmem:[#allocation4 + $0xd10] sm:$0xff]
    %v1482 = vld [vmem:[#allocation4 + $0xd18] sm:$0xff]
    %v1483 = vld [vmem:[#allocation4 + $0xd20] sm:$0xff]
    %v1484 = vld [vmem:[#allocation4 + $0xd28] sm:$0xff]
    %v1485 = vld [vmem:[#allocation4 + $0xd30] sm:$0xff]
    %v1486 = vld [vmem:[#allocation4 + $0xd38] sm:$0xff]
    %v1487 = vld [vmem:[#allocation4 + $0xd40] sm:$0xff]
    %v1488 = vld [vmem:[#allocation4 + $0xd48] sm:$0xff]
    %v1489 = vld [vmem:[#allocation4 + $0xd50] sm:$0xff]
    %v1490 = vld [vmem:[#allocation4 + $0xd58] sm:$0xff]
    %v1491 = vld [vmem:[#allocation4 + $0xd60] sm:$0xff]
    %v1492 = vld [vmem:[#allocation4 + $0xd68] sm:$0xff]
    %v1493 = vld [vmem:[#allocation4 + $0xd70] sm:$0xff]
    %v1494 = vld [vmem:[#allocation4 + $0xd78] sm:$0xff]
    %v1495 = vld [vmem:[#allocation4 + $0xd80] sm:$0xff]
    %v1496 = vld [vmem:[#allocation4 + $0xd88] sm:$0xff]
    %v1497 = vld [vmem:[#allocation4 + $0xd90] sm:$0xff]
    %v1498 = vld [vmem:[#allocation4 + $0xd98] sm:$0xff]
    %v1499 = vld [vmem:[#allocation4 + $0xda0] sm:$0xff]
    %v1500 = vld [vmem:[#allocation4 + $0xda8] sm:$0xff]
    %v1501 = vld [vmem:[#allocation4 + $0xdb0] sm:$0xff]
    %v1502 = vld [vmem:[#allocation4 + $0xdb8] sm:$0xff]
    %v1503 = vld [vmem:[#allocation4 + $0xdc0] sm:$0xff]
    %v1504 = vld [vmem:[#allocation4 + $0xdc8] sm:$0xff]
    %v1505 = vld [vmem:[#allocation4 + $0xdd0] sm:$0xff]
    %v1506 = vld [vmem:[#allocation4 + $0xdd8] sm:$0xff]
    %v1507 = vld [vmem:[#allocation4 + $0xde0] sm:$0xff]
    %v1508 = vld [vmem:[#allocation4 + $0xde8] sm:$0xff]
    %v1509 = vld [vmem:[#allocation4 + $0xdf0] sm:$0xff]
    %v1510 = vld [vmem:[#allocation4 + $0xdf8] sm:$0xff]
    %v1511 = vld [vmem:[#allocation4 + $0xe00] sm:$0xff]
    %v1512 = vld [vmem:[#allocation4 + $0xe08] sm:$0xff]
    %v1513 = vld [vmem:[#allocation4 + $0xe10] sm:$0xff]
    %v1514 = vld [vmem:[#allocation4 + $0xe18] sm:$0xff]
    %v1515 = vld [vmem:[#allocation4 + $0xe20] sm:$0xff]
    %v1516 = vld [vmem:[#allocation4 + $0xe28] sm:$0xff]
    %v1517 = vld [vmem:[#allocation4 + $0xe30] sm:$0xff]
    %v1518 = vld [vmem:[#allocation4 + $0xe38] sm:$0xff]
    %v1519 = vld [vmem:[#allocation4 + $0xe40] sm:$0xff]
    %v1520 = vld [vmem:[#allocation4 + $0xe48] sm:$0xff]
    %v1521 = vld [vmem:[#allocation4 + $0xe50] sm:$0xff]
    %v1522 = vld [vmem:[#allocation4 + $0xe58] sm:$0xff]
    %v1523 = vld [vmem:[#allocation4 + $0xe60] sm:$0xff]
    %v1524 = vld [vmem:[#allocation4 + $0xe68] sm:$0xff]
    %v1525 = vld [vmem:[#allocation4 + $0xe70] sm:$0xff]
    %v1526 = vld [vmem:[#allocation4 + $0xe78] sm:$0xff]
    %v1527 = vld [vmem:[#allocation4 + $0xe80] sm:$0xff]
    %v1528 = vld [vmem:[#allocation4 + $0xe88] sm:$0xff]
    %v1529 = vld [vmem:[#allocation4 + $0xe90] sm:$0xff]
    %v1530 = vld [vmem:[#allocation4 + $0xe98] sm:$0xff]
    %v1531 = vld [vmem:[#allocation4 + $0xea0] sm:$0xff]
    %v1532 = vld [vmem:[#allocation4 + $0xea8] sm:$0xff]
    %v1533 = vld [vmem:[#allocation4 + $0xeb0] sm:$0xff]
    %v1534 = vld [vmem:[#allocation4 + $0xeb8] sm:$0xff]
    %v1535 = vld [vmem:[#allocation4 + $0xec0] sm:$0xff]
    %v1536 = vld [vmem:[#allocation4 + $0xec8] sm:$0xff]
    %v1537 = vld [vmem:[#allocation4 + $0xed0] sm:$0xff]
    %v1538 = vld [vmem:[#allocation4 + $0xed8] sm:$0xff]
    %v1539 = vld [vmem:[#allocation4 + $0xee0] sm:$0xff]
    %v1540 = vld [vmem:[#allocation4 + $0xee8] sm:$0xff]
    %v1541 = vld [vmem:[#allocation4 + $0xef0] sm:$0xff]
    %v1542 = vld [vmem:[#allocation4 + $0xef8] sm:$0xff]
    %v1543 = vld [vmem:[#allocation4 + $0xf00] sm:$0xff]
    %v1544 = vld [vmem:[#allocation4 + $0xf08] sm:$0xff]
    %v1545 = vld [vmem:[#allocation4 + $0xf10] sm:$0xff]
    %v1546 = vld [vmem:[#allocation4 + $0xf18] sm:$0xff]
    %v1547 = vld [vmem:[#allocation4 + $0xf20] sm:$0xff]
    %v1548 = vld [vmem:[#allocation4 + $0xf28] sm:$0xff]
    %v1549 = vld [vmem:[#allocation4 + $0xf30] sm:$0xff]
    %v1550 = vld [vmem:[#allocation4 + $0xf38] sm:$0xff]
    %v1551 = vld [vmem:[#allocation4 + $0xf40] sm:$0xff]
    %v1552 = vld [vmem:[#allocation4 + $0xf48] sm:$0xff]
    %v1553 = vld [vmem:[#allocation4 + $0xf50] sm:$0xff]
    %v1554 = vld [vmem:[#allocation4 + $0xf58] sm:$0xff]
    %v1555 = vld [vmem:[#allocation4 + $0xf60] sm:$0xff]
    %v1556 = vld [vmem:[#allocation4 + $0xf68] sm:$0xff]
    %v1557 = vld [vmem:[#allocation4 + $0xf70] sm:$0xff]
    %v1558 = vld [vmem:[#allocation4 + $0xf78] sm:$0xff]
    %v1559 = vld [vmem:[#allocation4 + $0xf80] sm:$0xff]
    %v1560 = vld [vmem:[#allocation4 + $0xf88] sm:$0xff]
    %v1561 = vld [vmem:[#allocation4 + $0xf90] sm:$0xff]
    %v1562 = vld [vmem:[#allocation4 + $0xf98] sm:$0xff]
    %v1563 = vld [vmem:[#allocation4 + $0xfa0] sm:$0xff]
    %v1564 = vld [vmem:[#allocation4 + $0xfa8] sm:$0xff]
    %v1565 = vld [vmem:[#allocation4 + $0xfb0] sm:$0xff]
    %v1566 = vld [vmem:[#allocation4 + $0xfb8] sm:$0xff]
    %v1567 = vld [vmem:[#allocation4 + $0xfc0] sm:$0xff]
    %v1568 = vld [vmem:[#allocation4 + $0xfc8] sm:$0xff]
    %v1569 = vld [vmem:[#allocation4 + $0xfd0] sm:$0xff]
    %v1570 = vld [vmem:[#allocation4 + $0xfd8] sm:$0xff]
    %v1571 = vld [vmem:[#allocation4 + $0xfe0] sm:$0xff]
    %v1572 = vld [vmem:[#allocation4 + $0xfe8] sm:$0xff]
    %v1573 = vld [vmem:[#allocation4 + $0xff0] sm:$0xff]
    %v1574 = vld [vmem:[#allocation4 + $0xff8] sm:$0xff]
    %v1575 = vld [vmem:[#allocation12 + $0x8] sm:$0xff]
    %v1577 = vperm.slane %v1575, 0
    %v1578 = vperm.slane %v1575, 1
    %v1579 = vperm.slane %v1575, 2
    %v1580 = vperm.slane %v1575, 3
    %v1581 = vperm.slane %v1575, 4
    %v1582 = vperm.slane %v1575, 5
    %v1583 = vperm.slane %v1575, 6
    %v1584 = vperm.slane %v1575, 7
    %v2105 = vunpack.c.l.b16 %v1063
    %v2106 = vunpack.c.h.b16 %v1063
    %v2107 = vunpack.c.l.b16 %v1064
    %v2108 = vunpack.c.h.b16 %v1064
    %v2109 = vunpack.c.l.b16 %v1065
    %v2110 = vunpack.c.h.b16 %v1065
    %v2111 = vunpack.c.l.b16 %v1066
    %v2112 = vunpack.c.h.b16 %v1066
    %v2113 = vunpack.c.l.b16 %v1067
    %v2114 = vunpack.c.h.b16 %v1067
    %v2115 = vunpack.c.l.b16 %v1068
    %v2116 = vunpack.c.h.b16 %v1068
    %v2117 = vunpack.c.l.b16 %v1069
    %v2118 = vunpack.c.h.b16 %v1069
    %v2119 = vunpack.c.l.b16 %v1070
    %v2120 = vunpack.c.h.b16 %v1070
    %v2121 = vunpack.c.l.b16 %v1071
    %v2122 = vunpack.c.h.b16 %v1071
    %v2123 = vunpack.c.l.b16 %v1072
    %v2124 = vunpack.c.h.b16 %v1072
    %v2125 = vunpack.c.l.b16 %v1073
    %v2126 = vunpack.c.h.b16 %v1073
    %v2127 = vunpack.c.l.b16 %v1074
    %v2128 = vunpack.c.h.b16 %v1074
    %v2129 = vunpack.c.l.b16 %v1075
    %v2130 = vunpack.c.h.b16 %v1075
    %v2131 = vunpack.c.l.b16 %v1076
    %v2132 = vunpack.c.h.b16 %v1076
    %v2133 = vunpack.c.l.b16 %v1077
    %v2134 = vunpack.c.h.b16 %v1077
    %v2135 = vunpack.c.l.b16 %v1078
    %v2136 = vunpack.c.h.b16 %v1078
    %v2137 = vunpack.c.l.b16 %v1079
    %v2138 = vunpack.c.h.b16 %v1079
    %v2139 = vunpack.c.l.b16 %v1080
    %v2140 = vunpack.c.h.b16 %v1080
    %v2141 = vunpack.c.l.b16 %v1081
    %v2142 = vunpack.c.h.b16 %v1081
    %v2143 = vunpack.c.l.b16 %v1082
    %v2144 = vunpack.c.h.b16 %v1082
    %v2145 = vunpack.c.l.b16 %v1083
    %v2146 = vunpack.c.h.b16 %v1083
    %v2147 = vunpack.c.l.b16 %v1084
    %v2148 = vunpack.c.h.b16 %v1084
    %v2149 = vunpack.c.l.b16 %v1085
    %v2150 = vunpack.c.h.b16 %v1085
    %v2151 = vunpack.c.l.b16 %v1086
    %v2152 = vunpack.c.h.b16 %v1086
    %v2153 = vunpack.c.l.b16 %v1087
    %v2154 = vunpack.c.h.b16 %v1087
    %v2155 = vunpack.c.l.b16 %v1088
    %v2156 = vunpack.c.h.b16 %v1088
    %v2157 = vunpack.c.l.b16 %v1089
    %v2158 = vunpack.c.h.b16 %v1089
    %v2159 = vunpack.c.l.b16 %v1090
    %v2160 = vunpack.c.h.b16 %v1090
    %v2161 = vunpack.c.l.b16 %v1091
    %v2162 = vunpack.c.h.b16 %v1091
    %v2163 = vunpack.c.l.b16 %v1092
    %v2164 = vunpack.c.h.b16 %v1092
    %v2165 = vunpack.c.l.b16 %v1093
    %v2166 = vunpack.c.h.b16 %v1093
    %v2167 = vunpack.c.l.b16 %v1094
    %v2168 = vunpack.c.h.b16 %v1094
    %v2169 = vunpack.c.l.b16 %v1095
    %v2170 = vunpack.c.h.b16 %v1095
    %v2171 = vunpack.c.l.b16 %v1096
    %v2172 = vunpack.c.h.b16 %v1096
    %v2173 = vunpack.c.l.b16 %v1097
    %v2174 = vunpack.c.h.b16 %v1097
    %v2175 = vunpack.c.l.b16 %v1098
    %v2176 = vunpack.c.h.b16 %v1098
    %v2177 = vunpack.c.l.b16 %v1099
    %v2178 = vunpack.c.h.b16 %v1099
    %v2179 = vunpack.c.l.b16 %v1100
    %v2180 = vunpack.c.h.b16 %v1100
    %v2181 = vunpack.c.l.b16 %v1101
    %v2182 = vunpack.c.h.b16 %v1101
    %v2183 = vunpack.c.l.b16 %v1102
    %v2184 = vunpack.c.h.b16 %v1102
    %v2185 = vunpack.c.l.b16 %v1103
    %v2186 = vunpack.c.h.b16 %v1103
    %v2187 = vunpack.c.l.b16 %v1104
    %v2188 = vunpack.c.h.b16 %v1104
    %v2189 = vunpack.c.l.b16 %v1105
    %v2190 = vunpack.c.h.b16 %v1105
    %v2191 = vunpack.c.l.b16 %v1106
    %v2192 = vunpack.c.h.b16 %v1106
    %v2193 = vunpack.c.l.b16 %v1107
    %v2194 = vunpack.c.h.b16 %v1107
    %v2195 = vunpack.c.l.b16 %v1108
    %v2196 = vunpack.c.h.b16 %v1108
    %v2197 = vunpack.c.l.b16 %v1109
    %v2198 = vunpack.c.h.b16 %v1109
    %v2199 = vunpack.c.l.b16 %v1110
    %v2200 = vunpack.c.h.b16 %v1110
    %v2201 = vunpack.c.l.b16 %v1111
    %v2202 = vunpack.c.h.b16 %v1111
    %v2203 = vunpack.c.l.b16 %v1112
    %v2204 = vunpack.c.h.b16 %v1112
    %v2205 = vunpack.c.l.b16 %v1113
    %v2206 = vunpack.c.h.b16 %v1113
    %v2207 = vunpack.c.l.b16 %v1114
    %v2208 = vunpack.c.h.b16 %v1114
    %v2209 = vunpack.c.l.b16 %v1115
    %v2210 = vunpack.c.h.b16 %v1115
    %v2211 = vunpack.c.l.b16 %v1116
    %v2212 = vunpack.c.h.b16 %v1116
    %v2213 = vunpack.c.l.b16 %v1117
    %v2214 = vunpack.c.h.b16 %v1117
    %v2215 = vunpack.c.l.b16 %v1118
    %v2216 = vunpack.c.h.b16 %v1118
    %v2217 = vunpack.c.l.b16 %v1119
    %v2218 = vunpack.c.h.b16 %v1119
    %v2219 = vunpack.c.l.b16 %v1120
    %v2220 = vunpack.c.h.b16 %v1120
    %v2221 = vunpack.c.l.b16 %v1121
    %v2222 = vunpack.c.h.b16 %v1121
    %v2223 = vunpack.c.l.b16 %v1122
    %v2224 = vunpack.c.h.b16 %v1122
    %v2225 = vunpack.c.l.b16 %v1123
    %v2226 = vunpack.c.h.b16 %v1123
    %v2227 = vunpack.c.l.b16 %v1124
    %v2228 = vunpack.c.h.b16 %v1124
    %v2229 = vunpack.c.l.b16 %v1125
    %v2230 = vunpack.c.h.b16 %v1125
    %v2231 = vunpack.c.l.b16 %v1126
    %v2232 = vunpack.c.h.b16 %v1126
    %v2233 = vunpack.c.l.b16 %v1127
    %v2234 = vunpack.c.h.b16 %v1127
    %v2235 = vunpack.c.l.b16 %v1128
    %v2236 = vunpack.c.h.b16 %v1128
    %v2237 = vunpack.c.l.b16 %v1129
    %v2238 = vunpack.c.h.b16 %v1129
    %v2239 = vunpack.c.l.b16 %v1130
    %v2240 = vunpack.c.h.b16 %v1130
    %v2241 = vunpack.c.l.b16 %v1131
    %v2242 = vunpack.c.h.b16 %v1131
    %v2243 = vunpack.c.l.b16 %v1132
    %v2244 = vunpack.c.h.b16 %v1132
    %v2245 = vunpack.c.l.b16 %v1133
    %v2246 = vunpack.c.h.b16 %v1133
    %v2247 = vunpack.c.l.b16 %v1134
    %v2248 = vunpack.c.h.b16 %v1134
    %v2249 = vunpack.c.l.b16 %v1135
    %v2250 = vunpack.c.h.b16 %v1135
    %v2251 = vunpack.c.l.b16 %v1136
    %v2252 = vunpack.c.h.b16 %v1136
    %v2253 = vunpack.c.l.b16 %v1137
    %v2254 = vunpack.c.h.b16 %v1137
    %v2255 = vunpack.c.l.b16 %v1138
    %v2256 = vunpack.c.h.b16 %v1138
    %v2257 = vunpack.c.l.b16 %v1139
    %v2258 = vunpack.c.h.b16 %v1139
    %v2259 = vunpack.c.l.b16 %v1140
    %v2260 = vunpack.c.h.b16 %v1140
    %v2261 = vunpack.c.l.b16 %v1141
    %v2262 = vunpack.c.h.b16 %v1141
    %v2263 = vunpack.c.l.b16 %v1142
    %v2264 = vunpack.c.h.b16 %v1142
    %v2265 = vunpack.c.l.b16 %v1143
    %v2266 = vunpack.c.h.b16 %v1143
    %v2267 = vunpack.c.l.b16 %v1144
    %v2268 = vunpack.c.h.b16 %v1144
    %v2269 = vunpack.c.l.b16 %v1145
    %v2270 = vunpack.c.h.b16 %v1145
    %v2271 = vunpack.c.l.b16 %v1146
    %v2272 = vunpack.c.h.b16 %v1146
    %v2273 = vunpack.c.l.b16 %v1147
    %v2274 = vunpack.c.h.b16 %v1147
    %v2275 = vunpack.c.l.b16 %v1148
    %v2276 = vunpack.c.h.b16 %v1148
    %v2277 = vunpack.c.l.b16 %v1149
    %v2278 = vunpack.c.h.b16 %v1149
    %v2279 = vunpack.c.l.b16 %v1150
    %v2280 = vunpack.c.h.b16 %v1150
    %v2281 = vunpack.c.l.b16 %v1151
    %v2282 = vunpack.c.h.b16 %v1151
    %v2283 = vunpack.c.l.b16 %v1152
    %v2284 = vunpack.c.h.b16 %v1152
    %v2285 = vunpack.c.l.b16 %v1153
    %v2286 = vunpack.c.h.b16 %v1153
    %v2287 = vunpack.c.l.b16 %v1154
    %v2288 = vunpack.c.h.b16 %v1154
    %v2289 = vunpack.c.l.b16 %v1155
    %v2290 = vunpack.c.h.b16 %v1155
    %v2291 = vunpack.c.l.b16 %v1156
    %v2292 = vunpack.c.h.b16 %v1156
    %v2293 = vunpack.c.l.b16 %v1157
    %v2294 = vunpack.c.h.b16 %v1157
    %v2295 = vunpack.c.l.b16 %v1158
    %v2296 = vunpack.c.h.b16 %v1158
    %v2297 = vunpack.c.l.b16 %v1159
    %v2298 = vunpack.c.h.b16 %v1159
    %v2299 = vunpack.c.l.b16 %v1160
    %v2300 = vunpack.c.h.b16 %v1160
    %v2301 = vunpack.c.l.b16 %v1161
    %v2302 = vunpack.c.h.b16 %v1161
    %v2303 = vunpack.c.l.b16 %v1162
    %v2304 = vunpack.c.h.b16 %v1162
    %v2305 = vunpack.c.l.b16 %v1163
    %v2306 = vunpack.c.h.b16 %v1163
    %v2307 = vunpack.c.l.b16 %v1164
    %v2308 = vunpack.c.h.b16 %v1164
    %v2309 = vunpack.c.l.b16 %v1165
    %v2310 = vunpack.c.h.b16 %v1165
    %v2311 = vunpack.c.l.b16 %v1166
    %v2312 = vunpack.c.h.b16 %v1166
    %v2313 = vunpack.c.l.b16 %v1167
    %v2314 = vunpack.c.h.b16 %v1167
    %v2315 = vunpack.c.l.b16 %v1168
    %v2316 = vunpack.c.h.b16 %v1168
    %v2317 = vunpack.c.l.b16 %v1169
    %v2318 = vunpack.c.h.b16 %v1169
    %v2319 = vunpack.c.l.b16 %v1170
    %v2320 = vunpack.c.h.b16 %v1170
    %v2321 = vunpack.c.l.b16 %v1171
    %v2322 = vunpack.c.h.b16 %v1171
    %v2323 = vunpack.c.l.b16 %v1172
    %v2324 = vunpack.c.h.b16 %v1172
    %v2325 = vunpack.c.l.b16 %v1173
    %v2326 = vunpack.c.h.b16 %v1173
    %v2327 = vunpack.c.l.b16 %v1174
    %v2328 = vunpack.c.h.b16 %v1174
    %v2329 = vunpack.c.l.b16 %v1175
    %v2330 = vunpack.c.h.b16 %v1175
    %v2331 = vunpack.c.l.b16 %v1176
    %v2332 = vunpack.c.h.b16 %v1176
    %v2333 = vunpack.c.l.b16 %v1177
    %v2334 = vunpack.c.h.b16 %v1177
    %v2335 = vunpack.c.l.b16 %v1178
    %v2336 = vunpack.c.h.b16 %v1178
    %v2337 = vunpack.c.l.b16 %v1179
    %v2338 = vunpack.c.h.b16 %v1179
    %v2339 = vunpack.c.l.b16 %v1180
    %v2340 = vunpack.c.h.b16 %v1180
    %v2341 = vunpack.c.l.b16 %v1181
    %v2342 = vunpack.c.h.b16 %v1181
    %v2343 = vunpack.c.l.b16 %v1182
    %v2344 = vunpack.c.h.b16 %v1182
    %v2345 = vunpack.c.l.b16 %v1183
    %v2346 = vunpack.c.h.b16 %v1183
    %v2347 = vunpack.c.l.b16 %v1184
    %v2348 = vunpack.c.h.b16 %v1184
    %v2349 = vunpack.c.l.b16 %v1185
    %v2350 = vunpack.c.h.b16 %v1185
    %v2351 = vunpack.c.l.b16 %v1186
    %v2352 = vunpack.c.h.b16 %v1186
    %v2353 = vunpack.c.l.b16 %v1187
    %v2354 = vunpack.c.h.b16 %v1187
    %v2355 = vunpack.c.l.b16 %v1188
    %v2356 = vunpack.c.h.b16 %v1188
    %v2357 = vunpack.c.l.b16 %v1189
    %v2358 = vunpack.c.h.b16 %v1189
    %v2359 = vunpack.c.l.b16 %v1190
    %v2360 = vunpack.c.h.b16 %v1190
    %v2361 = vunpack.c.l.b16 %v1191
    %v2362 = vunpack.c.h.b16 %v1191
    %v2363 = vunpack.c.l.b16 %v1192
    %v2364 = vunpack.c.h.b16 %v1192
    %v2365 = vunpack.c.l.b16 %v1193
    %v2366 = vunpack.c.h.b16 %v1193
    %v2367 = vunpack.c.l.b16 %v1194
    %v2368 = vunpack.c.h.b16 %v1194
    %v2369 = vunpack.c.l.b16 %v1195
    %v2370 = vunpack.c.h.b16 %v1195
    %v2371 = vunpack.c.l.b16 %v1196
    %v2372 = vunpack.c.h.b16 %v1196
    %v2373 = vunpack.c.l.b16 %v1197
    %v2374 = vunpack.c.h.b16 %v1197
    %v2375 = vunpack.c.l.b16 %v1198
    %v2376 = vunpack.c.h.b16 %v1198
    %v2377 = vunpack.c.l.b16 %v1199
    %v2378 = vunpack.c.h.b16 %v1199
    %v2379 = vunpack.c.l.b16 %v1200
    %v2380 = vunpack.c.h.b16 %v1200
    %v2381 = vunpack.c.l.b16 %v1201
    %v2382 = vunpack.c.h.b16 %v1201
    %v2383 = vunpack.c.l.b16 %v1202
    %v2384 = vunpack.c.h.b16 %v1202
    %v2385 = vunpack.c.l.b16 %v1203
    %v2386 = vunpack.c.h.b16 %v1203
    %v2387 = vunpack.c.l.b16 %v1204
    %v2388 = vunpack.c.h.b16 %v1204
    %v2389 = vunpack.c.l.b16 %v1205
    %v2390 = vunpack.c.h.b16 %v1205
    %v2391 = vunpack.c.l.b16 %v1206
    %v2392 = vunpack.c.h.b16 %v1206
    %v2393 = vunpack.c.l.b16 %v1207
    %v2394 = vunpack.c.h.b16 %v1207
    %v2395 = vunpack.c.l.b16 %v1208
    %v2396 = vunpack.c.h.b16 %v1208
    %v2397 = vunpack.c.l.b16 %v1209
    %v2398 = vunpack.c.h.b16 %v1209
    %v2399 = vunpack.c.l.b16 %v1210
    %v2400 = vunpack.c.h.b16 %v1210
    %v2401 = vunpack.c.l.b16 %v1211
    %v2402 = vunpack.c.h.b16 %v1211
    %v2403 = vunpack.c.l.b16 %v1212
    %v2404 = vunpack.c.h.b16 %v1212
    %v2405 = vunpack.c.l.b16 %v1213
    %v2406 = vunpack.c.h.b16 %v1213
    %v2407 = vunpack.c.l.b16 %v1214
    %v2408 = vunpack.c.h.b16 %v1214
    %v2409 = vunpack.c.l.b16 %v1215
    %v2410 = vunpack.c.h.b16 %v1215
    %v2411 = vunpack.c.l.b16 %v1216
    %v2412 = vunpack.c.h.b16 %v1216
    %v2413 = vunpack.c.l.b16 %v1217
    %v2414 = vunpack.c.h.b16 %v1217
    %v2415 = vunpack.c.l.b16 %v1218
    %v2416 = vunpack.c.h.b16 %v1218
    %v2417 = vunpack.c.l.b16 %v1219
    %v2418 = vunpack.c.h.b16 %v1219
    %v2419 = vunpack.c.l.b16 %v1220
    %v2420 = vunpack.c.h.b16 %v1220
    %v2421 = vunpack.c.l.b16 %v1221
    %v2422 = vunpack.c.h.b16 %v1221
    %v2423 = vunpack.c.l.b16 %v1222
    %v2424 = vunpack.c.h.b16 %v1222
    %v2425 = vunpack.c.l.b16 %v1223
    %v2426 = vunpack.c.h.b16 %v1223
    %v2427 = vunpack.c.l.b16 %v1224
    %v2428 = vunpack.c.h.b16 %v1224
    %v2429 = vunpack.c.l.b16 %v1225
    %v2430 = vunpack.c.h.b16 %v1225
    %v2431 = vunpack.c.l.b16 %v1226
    %v2432 = vunpack.c.h.b16 %v1226
    %v2433 = vunpack.c.l.b16 %v1227
    %v2434 = vunpack.c.h.b16 %v1227
    %v2435 = vunpack.c.l.b16 %v1228
    %v2436 = vunpack.c.h.b16 %v1228
    %v2437 = vunpack.c.l.b16 %v1229
    %v2438 = vunpack.c.h.b16 %v1229
    %v2439 = vunpack.c.l.b16 %v1230
    %v2440 = vunpack.c.h.b16 %v1230
    %v2441 = vunpack.c.l.b16 %v1231
    %v2442 = vunpack.c.h.b16 %v1231
    %v2443 = vunpack.c.l.b16 %v1232
    %v2444 = vunpack.c.h.b16 %v1232
    %v2445 = vunpack.c.l.b16 %v1233
    %v2446 = vunpack.c.h.b16 %v1233
    %v2447 = vunpack.c.l.b16 %v1234
    %v2448 = vunpack.c.h.b16 %v1234
    %v2449 = vunpack.c.l.b16 %v1235
    %v2450 = vunpack.c.h.b16 %v1235
    %v2451 = vunpack.c.l.b16 %v1236
    %v2452 = vunpack.c.h.b16 %v1236
    %v2453 = vunpack.c.l.b16 %v1237
    %v2454 = vunpack.c.h.b16 %v1237
    %v2455 = vunpack.c.l.b16 %v1238
    %v2456 = vunpack.c.h.b16 %v1238
    %v2457 = vunpack.c.l.b16 %v1239
    %v2458 = vunpack.c.h.b16 %v1239
    %v2459 = vunpack.c.l.b16 %v1240
    %v2460 = vunpack.c.h.b16 %v1240
    %v2461 = vunpack.c.l.b16 %v1241
    %v2462 = vunpack.c.h.b16 %v1241
    %v2463 = vunpack.c.l.b16 %v1242
    %v2464 = vunpack.c.h.b16 %v1242
    %v2465 = vunpack.c.l.b16 %v1243
    %v2466 = vunpack.c.h.b16 %v1243
    %v2467 = vunpack.c.l.b16 %v1244
    %v2468 = vunpack.c.h.b16 %v1244
    %v2469 = vunpack.c.l.b16 %v1245
    %v2470 = vunpack.c.h.b16 %v1245
    %v2471 = vunpack.c.l.b16 %v1246
    %v2472 = vunpack.c.h.b16 %v1246
    %v2473 = vunpack.c.l.b16 %v1247
    %v2474 = vunpack.c.h.b16 %v1247
    %v2475 = vunpack.c.l.b16 %v1248
    %v2476 = vunpack.c.h.b16 %v1248
    %v2477 = vunpack.c.l.b16 %v1249
    %v2478 = vunpack.c.h.b16 %v1249
    %v2479 = vunpack.c.l.b16 %v1250
    %v2480 = vunpack.c.h.b16 %v1250
    %v2481 = vunpack.c.l.b16 %v1251
    %v2482 = vunpack.c.h.b16 %v1251
    %v2483 = vunpack.c.l.b16 %v1252
    %v2484 = vunpack.c.h.b16 %v1252
    %v2485 = vunpack.c.l.b16 %v1253
    %v2486 = vunpack.c.h.b16 %v1253
    %v2487 = vunpack.c.l.b16 %v1254
    %v2488 = vunpack.c.h.b16 %v1254
    %v2489 = vunpack.c.l.b16 %v1255
    %v2490 = vunpack.c.h.b16 %v1255
    %v2491 = vunpack.c.l.b16 %v1256
    %v2492 = vunpack.c.h.b16 %v1256
    %v2493 = vunpack.c.l.b16 %v1257
    %v2494 = vunpack.c.h.b16 %v1257
    %v2495 = vunpack.c.l.b16 %v1258
    %v2496 = vunpack.c.h.b16 %v1258
    %v2497 = vunpack.c.l.b16 %v1259
    %v2498 = vunpack.c.h.b16 %v1259
    %v2499 = vunpack.c.l.b16 %v1260
    %v2500 = vunpack.c.h.b16 %v1260
    %v2501 = vunpack.c.l.b16 %v1261
    %v2502 = vunpack.c.h.b16 %v1261
    %v2503 = vunpack.c.l.b16 %v1262
    %v2504 = vunpack.c.h.b16 %v1262
    %v2505 = vunpack.c.l.b16 %v1263
    %v2506 = vunpack.c.h.b16 %v1263
    %v2507 = vunpack.c.l.b16 %v1264
    %v2508 = vunpack.c.h.b16 %v1264
    %v2509 = vunpack.c.l.b16 %v1265
    %v2510 = vunpack.c.h.b16 %v1265
    %v2511 = vunpack.c.l.b16 %v1266
    %v2512 = vunpack.c.h.b16 %v1266
    %v2513 = vunpack.c.l.b16 %v1267
    %v2514 = vunpack.c.h.b16 %v1267
    %v2515 = vunpack.c.l.b16 %v1268
    %v2516 = vunpack.c.h.b16 %v1268
    %v2517 = vunpack.c.l.b16 %v1269
    %v2518 = vunpack.c.h.b16 %v1269
    %v2519 = vunpack.c.l.b16 %v1270
    %v2520 = vunpack.c.h.b16 %v1270
    %v2521 = vunpack.c.l.b16 %v1271
    %v2522 = vunpack.c.h.b16 %v1271
    %v2523 = vunpack.c.l.b16 %v1272
    %v2524 = vunpack.c.h.b16 %v1272
    %v2525 = vunpack.c.l.b16 %v1273
    %v2526 = vunpack.c.h.b16 %v1273
    %v2527 = vunpack.c.l.b16 %v1274
    %v2528 = vunpack.c.h.b16 %v1274
    %v2529 = vunpack.c.l.b16 %v1275
    %v2530 = vunpack.c.h.b16 %v1275
    %v2531 = vunpack.c.l.b16 %v1276
    %v2532 = vunpack.c.h.b16 %v1276
    %v2533 = vunpack.c.l.b16 %v1277
    %v2534 = vunpack.c.h.b16 %v1277
    %v2535 = vunpack.c.l.b16 %v1278
    %v2536 = vunpack.c.h.b16 %v1278
    %v2537 = vunpack.c.l.b16 %v1279
    %v2538 = vunpack.c.h.b16 %v1279
    %v2539 = vunpack.c.l.b16 %v1280
    %v2540 = vunpack.c.h.b16 %v1280
    %v2541 = vunpack.c.l.b16 %v1281
    %v2542 = vunpack.c.h.b16 %v1281
    %v2543 = vunpack.c.l.b16 %v1282
    %v2544 = vunpack.c.h.b16 %v1282
    %v2545 = vunpack.c.l.b16 %v1283
    %v2546 = vunpack.c.h.b16 %v1283
    %v2547 = vunpack.c.l.b16 %v1284
    %v2548 = vunpack.c.h.b16 %v1284
    %v2549 = vunpack.c.l.b16 %v1285
    %v2550 = vunpack.c.h.b16 %v1285
    %v2551 = vunpack.c.l.b16 %v1286
    %v2552 = vunpack.c.h.b16 %v1286
    %v2553 = vunpack.c.l.b16 %v1287
    %v2554 = vunpack.c.h.b16 %v1287
    %v2555 = vunpack.c.l.b16 %v1288
    %v2556 = vunpack.c.h.b16 %v1288
    %v2557 = vunpack.c.l.b16 %v1289
    %v2558 = vunpack.c.h.b16 %v1289
    %v2559 = vunpack.c.l.b16 %v1290
    %v2560 = vunpack.c.h.b16 %v1290
    %v2561 = vunpack.c.l.b16 %v1291
    %v2562 = vunpack.c.h.b16 %v1291
    %v2563 = vunpack.c.l.b16 %v1292
    %v2564 = vunpack.c.h.b16 %v1292
    %v2565 = vunpack.c.l.b16 %v1293
    %v2566 = vunpack.c.h.b16 %v1293
    %v2567 = vunpack.c.l.b16 %v1294
    %v2568 = vunpack.c.h.b16 %v1294
    %v2569 = vunpack.c.l.b16 %v1295
    %v2570 = vunpack.c.h.b16 %v1295
    %v2571 = vunpack.c.l.b16 %v1296
    %v2572 = vunpack.c.h.b16 %v1296
    %v2573 = vunpack.c.l.b16 %v1297
    %v2574 = vunpack.c.h.b16 %v1297
    %v2575 = vunpack.c.l.b16 %v1298
    %v2576 = vunpack.c.h.b16 %v1298
    %v2577 = vunpack.c.l.b16 %v1299
    %v2578 = vunpack.c.h.b16 %v1299
    %v2579 = vunpack.c.l.b16 %v1300
    %v2580 = vunpack.c.h.b16 %v1300
    %v2581 = vunpack.c.l.b16 %v1301
    %v2582 = vunpack.c.h.b16 %v1301
    %v2583 = vunpack.c.l.b16 %v1302
    %v2584 = vunpack.c.h.b16 %v1302
    %v2585 = vunpack.c.l.b16 %v1303
    %v2586 = vunpack.c.h.b16 %v1303
    %v2587 = vunpack.c.l.b16 %v1304
    %v2588 = vunpack.c.h.b16 %v1304
    %v2589 = vunpack.c.l.b16 %v1305
    %v2590 = vunpack.c.h.b16 %v1305
    %v2591 = vunpack.c.l.b16 %v1306
    %v2592 = vunpack.c.h.b16 %v1306
    %v2593 = vunpack.c.l.b16 %v1307
    %v2594 = vunpack.c.h.b16 %v1307
    %v2595 = vunpack.c.l.b16 %v1308
    %v2596 = vunpack.c.h.b16 %v1308
    %v2597 = vunpack.c.l.b16 %v1309
    %v2598 = vunpack.c.h.b16 %v1309
    %v2599 = vunpack.c.l.b16 %v1310
    %v2600 = vunpack.c.h.b16 %v1310
    %v2601 = vunpack.c.l.b16 %v1311
    %v2602 = vunpack.c.h.b16 %v1311
    %v2603 = vunpack.c.l.b16 %v1312
    %v2604 = vunpack.c.h.b16 %v1312
    %v2605 = vunpack.c.l.b16 %v1313
    %v2606 = vunpack.c.h.b16 %v1313
    %v2607 = vunpack.c.l.b16 %v1314
    %v2608 = vunpack.c.h.b16 %v1314
    %v2609 = vunpack.c.l.b16 %v1315
    %v2610 = vunpack.c.h.b16 %v1315
    %v2611 = vunpack.c.l.b16 %v1316
    %v2612 = vunpack.c.h.b16 %v1316
    %v2613 = vunpack.c.l.b16 %v1317
    %v2614 = vunpack.c.h.b16 %v1317
    %v2615 = vunpack.c.l.b16 %v1318
    %v2616 = vunpack.c.h.b16 %v1318
    %v2617 = vunpack.c.l.b16 %v1319
    %v2618 = vunpack.c.h.b16 %v1319
    %v2619 = vunpack.c.l.b16 %v1320
    %v2620 = vunpack.c.h.b16 %v1320
    %v2621 = vunpack.c.l.b16 %v1321
    %v2622 = vunpack.c.h.b16 %v1321
    %v2623 = vunpack.c.l.b16 %v1322
    %v2624 = vunpack.c.h.b16 %v1322
    %v2625 = vunpack.c.l.b16 %v1323
    %v2626 = vunpack.c.h.b16 %v1323
    %v2627 = vunpack.c.l.b16 %v1324
    %v2628 = vunpack.c.h.b16 %v1324
    %v2629 = vunpack.c.l.b16 %v1325
    %v2630 = vunpack.c.h.b16 %v1325
    %v2631 = vunpack.c.l.b16 %v1326
    %v2632 = vunpack.c.h.b16 %v1326
    %v2633 = vunpack.c.l.b16 %v1327
    %v2634 = vunpack.c.h.b16 %v1327
    %v2635 = vunpack.c.l.b16 %v1328
    %v2636 = vunpack.c.h.b16 %v1328
    %v2637 = vunpack.c.l.b16 %v1329
    %v2638 = vunpack.c.h.b16 %v1329
    %v2639 = vunpack.c.l.b16 %v1330
    %v2640 = vunpack.c.h.b16 %v1330
    %v2641 = vunpack.c.l.b16 %v1331
    %v2642 = vunpack.c.h.b16 %v1331
    %v2643 = vunpack.c.l.b16 %v1332
    %v2644 = vunpack.c.h.b16 %v1332
    %v2645 = vunpack.c.l.b16 %v1333
    %v2646 = vunpack.c.h.b16 %v1333
    %v2647 = vunpack.c.l.b16 %v1334
    %v2648 = vunpack.c.h.b16 %v1334
    %v2649 = vunpack.c.l.b16 %v1335
    %v2650 = vunpack.c.h.b16 %v1335
    %v2651 = vunpack.c.l.b16 %v1336
    %v2652 = vunpack.c.h.b16 %v1336
    %v2653 = vunpack.c.l.b16 %v1337
    %v2654 = vunpack.c.h.b16 %v1337
    %v2655 = vunpack.c.l.b16 %v1338
    %v2656 = vunpack.c.h.b16 %v1338
    %v2657 = vunpack.c.l.b16 %v1339
    %v2658 = vunpack.c.h.b16 %v1339
    %v2659 = vunpack.c.l.b16 %v1340
    %v2660 = vunpack.c.h.b16 %v1340
    %v2661 = vunpack.c.l.b16 %v1341
    %v2662 = vunpack.c.h.b16 %v1341
    %v2663 = vunpack.c.l.b16 %v1342
    %v2664 = vunpack.c.h.b16 %v1342
    %v2665 = vunpack.c.l.b16 %v1343
    %v2666 = vunpack.c.h.b16 %v1343
    %v2667 = vunpack.c.l.b16 %v1344
    %v2668 = vunpack.c.h.b16 %v1344
    %v2669 = vunpack.c.l.b16 %v1345
    %v2670 = vunpack.c.h.b16 %v1345
    %v2671 = vunpack.c.l.b16 %v1346
    %v2672 = vunpack.c.h.b16 %v1346
    %v2673 = vunpack.c.l.b16 %v1347
    %v2674 = vunpack.c.h.b16 %v1347
    %v2675 = vunpack.c.l.b16 %v1348
    %v2676 = vunpack.c.h.b16 %v1348
    %v2677 = vunpack.c.l.b16 %v1349
    %v2678 = vunpack.c.h.b16 %v1349
    %v2679 = vunpack.c.l.b16 %v1350
    %v2680 = vunpack.c.h.b16 %v1350
    %v2681 = vunpack.c.l.b16 %v1351
    %v2682 = vunpack.c.h.b16 %v1351
    %v2683 = vunpack.c.l.b16 %v1352
    %v2684 = vunpack.c.h.b16 %v1352
    %v2685 = vunpack.c.l.b16 %v1353
    %v2686 = vunpack.c.h.b16 %v1353
    %v2687 = vunpack.c.l.b16 %v1354
    %v2688 = vunpack.c.h.b16 %v1354
    %v2689 = vunpack.c.l.b16 %v1355
    %v2690 = vunpack.c.h.b16 %v1355
    %v2691 = vunpack.c.l.b16 %v1356
    %v2692 = vunpack.c.h.b16 %v1356
    %v2693 = vunpack.c.l.b16 %v1357
    %v2694 = vunpack.c.h.b16 %v1357
    %v2695 = vunpack.c.l.b16 %v1358
    %v2696 = vunpack.c.h.b16 %v1358
    %v2697 = vunpack.c.l.b16 %v1359
    %v2698 = vunpack.c.h.b16 %v1359
    %v2699 = vunpack.c.l.b16 %v1360
    %v2700 = vunpack.c.h.b16 %v1360
    %v2701 = vunpack.c.l.b16 %v1361
    %v2702 = vunpack.c.h.b16 %v1361
    %v2703 = vunpack.c.l.b16 %v1362
    %v2704 = vunpack.c.h.b16 %v1362
    %v2705 = vunpack.c.l.b16 %v1363
    %v2706 = vunpack.c.h.b16 %v1363
    %v2707 = vunpack.c.l.b16 %v1364
    %v2708 = vunpack.c.h.b16 %v1364
    %v2709 = vunpack.c.l.b16 %v1365
    %v2710 = vunpack.c.h.b16 %v1365
    %v2711 = vunpack.c.l.b16 %v1366
    %v2712 = vunpack.c.h.b16 %v1366
    %v2713 = vunpack.c.l.b16 %v1367
    %v2714 = vunpack.c.h.b16 %v1367
    %v2715 = vunpack.c.l.b16 %v1368
    %v2716 = vunpack.c.h.b16 %v1368
    %v2717 = vunpack.c.l.b16 %v1369
    %v2718 = vunpack.c.h.b16 %v1369
    %v2719 = vunpack.c.l.b16 %v1370
    %v2720 = vunpack.c.h.b16 %v1370
    %v2721 = vunpack.c.l.b16 %v1371
    %v2722 = vunpack.c.h.b16 %v1371
    %v2723 = vunpack.c.l.b16 %v1372
    %v2724 = vunpack.c.h.b16 %v1372
    %v2725 = vunpack.c.l.b16 %v1373
    %v2726 = vunpack.c.h.b16 %v1373
    %v2727 = vunpack.c.l.b16 %v1374
    %v2728 = vunpack.c.h.b16 %v1374
    %v2729 = vunpack.c.l.b16 %v1375
    %v2730 = vunpack.c.h.b16 %v1375
    %v2731 = vunpack.c.l.b16 %v1376
    %v2732 = vunpack.c.h.b16 %v1376
    %v2733 = vunpack.c.l.b16 %v1377
    %v2734 = vunpack.c.h.b16 %v1377
    %v2735 = vunpack.c.l.b16 %v1378
    %v2736 = vunpack.c.h.b16 %v1378
    %v2737 = vunpack.c.l.b16 %v1379
    %v2738 = vunpack.c.h.b16 %v1379
    %v2739 = vunpack.c.l.b16 %v1380
    %v2740 = vunpack.c.h.b16 %v1380
    %v2741 = vunpack.c.l.b16 %v1381
    %v2742 = vunpack.c.h.b16 %v1381
    %v2743 = vunpack.c.l.b16 %v1382
    %v2744 = vunpack.c.h.b16 %v1382
    %v2745 = vunpack.c.l.b16 %v1383
    %v2746 = vunpack.c.h.b16 %v1383
    %v2747 = vunpack.c.l.b16 %v1384
    %v2748 = vunpack.c.h.b16 %v1384
    %v2749 = vunpack.c.l.b16 %v1385
    %v2750 = vunpack.c.h.b16 %v1385
    %v2751 = vunpack.c.l.b16 %v1386
    %v2752 = vunpack.c.h.b16 %v1386
    %v2753 = vunpack.c.l.b16 %v1387
    %v2754 = vunpack.c.h.b16 %v1387
    %v2755 = vunpack.c.l.b16 %v1388
    %v2756 = vunpack.c.h.b16 %v1388
    %v2757 = vunpack.c.l.b16 %v1389
    %v2758 = vunpack.c.h.b16 %v1389
    %v2759 = vunpack.c.l.b16 %v1390
    %v2760 = vunpack.c.h.b16 %v1390
    %v2761 = vunpack.c.l.b16 %v1391
    %v2762 = vunpack.c.h.b16 %v1391
    %v2763 = vunpack.c.l.b16 %v1392
    %v2764 = vunpack.c.h.b16 %v1392
    %v2765 = vunpack.c.l.b16 %v1393
    %v2766 = vunpack.c.h.b16 %v1393
    %v2767 = vunpack.c.l.b16 %v1394
    %v2768 = vunpack.c.h.b16 %v1394
    %v2769 = vunpack.c.l.b16 %v1395
    %v2770 = vunpack.c.h.b16 %v1395
    %v2771 = vunpack.c.l.b16 %v1396
    %v2772 = vunpack.c.h.b16 %v1396
    %v2773 = vunpack.c.l.b16 %v1397
    %v2774 = vunpack.c.h.b16 %v1397
    %v2775 = vunpack.c.l.b16 %v1398
    %v2776 = vunpack.c.h.b16 %v1398
    %v2777 = vunpack.c.l.b16 %v1399
    %v2778 = vunpack.c.h.b16 %v1399
    %v2779 = vunpack.c.l.b16 %v1400
    %v2780 = vunpack.c.h.b16 %v1400
    %v2781 = vunpack.c.l.b16 %v1401
    %v2782 = vunpack.c.h.b16 %v1401
    %v2783 = vunpack.c.l.b16 %v1402
    %v2784 = vunpack.c.h.b16 %v1402
    %v2785 = vunpack.c.l.b16 %v1403
    %v2786 = vunpack.c.h.b16 %v1403
    %v2787 = vunpack.c.l.b16 %v1404
    %v2788 = vunpack.c.h.b16 %v1404
    %v2789 = vunpack.c.l.b16 %v1405
    %v2790 = vunpack.c.h.b16 %v1405
    %v2791 = vunpack.c.l.b16 %v1406
    %v2792 = vunpack.c.h.b16 %v1406
    %v2793 = vunpack.c.l.b16 %v1407
    %v2794 = vunpack.c.h.b16 %v1407
    %v2795 = vunpack.c.l.b16 %v1408
    %v2796 = vunpack.c.h.b16 %v1408
    %v2797 = vunpack.c.l.b16 %v1409
    %v2798 = vunpack.c.h.b16 %v1409
    %v2799 = vunpack.c.l.b16 %v1410
    %v2800 = vunpack.c.h.b16 %v1410
    %v2801 = vunpack.c.l.b16 %v1411
    %v2802 = vunpack.c.h.b16 %v1411
    %v2803 = vunpack.c.l.b16 %v1412
    %v2804 = vunpack.c.h.b16 %v1412
    %v2805 = vunpack.c.l.b16 %v1413
    %v2806 = vunpack.c.h.b16 %v1413
    %v2807 = vunpack.c.l.b16 %v1414
    %v2808 = vunpack.c.h.b16 %v1414
    %v2809 = vunpack.c.l.b16 %v1415
    %v2810 = vunpack.c.h.b16 %v1415
    %v2811 = vunpack.c.l.b16 %v1416
    %v2812 = vunpack.c.h.b16 %v1416
    %v2813 = vunpack.c.l.b16 %v1417
    %v2814 = vunpack.c.h.b16 %v1417
    %v2815 = vunpack.c.l.b16 %v1418
    %v2816 = vunpack.c.h.b16 %v1418
    %v2817 = vunpack.c.l.b16 %v1419
    %v2818 = vunpack.c.h.b16 %v1419
    %v2819 = vunpack.c.l.b16 %v1420
    %v2820 = vunpack.c.h.b16 %v1420
    %v2821 = vunpack.c.l.b16 %v1421
    %v2822 = vunpack.c.h.b16 %v1421
    %v2823 = vunpack.c.l.b16 %v1422
    %v2824 = vunpack.c.h.b16 %v1422
    %v2825 = vunpack.c.l.b16 %v1423
    %v2826 = vunpack.c.h.b16 %v1423
    %v2827 = vunpack.c.l.b16 %v1424
    %v2828 = vunpack.c.h.b16 %v1424
    %v2829 = vunpack.c.l.b16 %v1425
    %v2830 = vunpack.c.h.b16 %v1425
    %v2831 = vunpack.c.l.b16 %v1426
    %v2832 = vunpack.c.h.b16 %v1426
    %v2833 = vunpack.c.l.b16 %v1427
    %v2834 = vunpack.c.h.b16 %v1427
    %v2835 = vunpack.c.l.b16 %v1428
    %v2836 = vunpack.c.h.b16 %v1428
    %v2837 = vunpack.c.l.b16 %v1429
    %v2838 = vunpack.c.h.b16 %v1429
    %v2839 = vunpack.c.l.b16 %v1430
    %v2840 = vunpack.c.h.b16 %v1430
    %v2841 = vunpack.c.l.b16 %v1431
    %v2842 = vunpack.c.h.b16 %v1431
    %v2843 = vunpack.c.l.b16 %v1432
    %v2844 = vunpack.c.h.b16 %v1432
    %v2845 = vunpack.c.l.b16 %v1433
    %v2846 = vunpack.c.h.b16 %v1433
    %v2847 = vunpack.c.l.b16 %v1434
    %v2848 = vunpack.c.h.b16 %v1434
    %v2849 = vunpack.c.l.b16 %v1435
    %v2850 = vunpack.c.h.b16 %v1435
    %v2851 = vunpack.c.l.b16 %v1436
    %v2852 = vunpack.c.h.b16 %v1436
    %v2853 = vunpack.c.l.b16 %v1437
    %v2854 = vunpack.c.h.b16 %v1437
    %v2855 = vunpack.c.l.b16 %v1438
    %v2856 = vunpack.c.h.b16 %v1438
    %v2857 = vunpack.c.l.b16 %v1439
    %v2858 = vunpack.c.h.b16 %v1439
    %v2859 = vunpack.c.l.b16 %v1440
    %v2860 = vunpack.c.h.b16 %v1440
    %v2861 = vunpack.c.l.b16 %v1441
    %v2862 = vunpack.c.h.b16 %v1441
    %v2863 = vunpack.c.l.b16 %v1442
    %v2864 = vunpack.c.h.b16 %v1442
    %v2865 = vunpack.c.l.b16 %v1443
    %v2866 = vunpack.c.h.b16 %v1443
    %v2867 = vunpack.c.l.b16 %v1444
    %v2868 = vunpack.c.h.b16 %v1444
    %v2869 = vunpack.c.l.b16 %v1445
    %v2870 = vunpack.c.h.b16 %v1445
    %v2871 = vunpack.c.l.b16 %v1446
    %v2872 = vunpack.c.h.b16 %v1446
    %v2873 = vunpack.c.l.b16 %v1447
    %v2874 = vunpack.c.h.b16 %v1447
    %v2875 = vunpack.c.l.b16 %v1448
    %v2876 = vunpack.c.h.b16 %v1448
    %v2877 = vunpack.c.l.b16 %v1449
    %v2878 = vunpack.c.h.b16 %v1449
    %v2879 = vunpack.c.l.b16 %v1450
    %v2880 = vunpack.c.h.b16 %v1450
    %v2881 = vunpack.c.l.b16 %v1451
    %v2882 = vunpack.c.h.b16 %v1451
    %v2883 = vunpack.c.l.b16 %v1452
    %v2884 = vunpack.c.h.b16 %v1452
    %v2885 = vunpack.c.l.b16 %v1453
    %v2886 = vunpack.c.h.b16 %v1453
    %v2887 = vunpack.c.l.b16 %v1454
    %v2888 = vunpack.c.h.b16 %v1454
    %v2889 = vunpack.c.l.b16 %v1455
    %v2890 = vunpack.c.h.b16 %v1455
    %v2891 = vunpack.c.l.b16 %v1456
    %v2892 = vunpack.c.h.b16 %v1456
    %v2893 = vunpack.c.l.b16 %v1457
    %v2894 = vunpack.c.h.b16 %v1457
    %v2895 = vunpack.c.l.b16 %v1458
    %v2896 = vunpack.c.h.b16 %v1458
    %v2897 = vunpack.c.l.b16 %v1459
    %v2898 = vunpack.c.h.b16 %v1459
    %v2899 = vunpack.c.l.b16 %v1460
    %v2900 = vunpack.c.h.b16 %v1460
    %v2901 = vunpack.c.l.b16 %v1461
    %v2902 = vunpack.c.h.b16 %v1461
    %v2903 = vunpack.c.l.b16 %v1462
    %v2904 = vunpack.c.h.b16 %v1462
    %v2905 = vunpack.c.l.b16 %v1463
    %v2906 = vunpack.c.h.b16 %v1463
    %v2907 = vunpack.c.l.b16 %v1464
    %v2908 = vunpack.c.h.b16 %v1464
    %v2909 = vunpack.c.l.b16 %v1465
    %v2910 = vunpack.c.h.b16 %v1465
    %v2911 = vunpack.c.l.b16 %v1466
    %v2912 = vunpack.c.h.b16 %v1466
    %v2913 = vunpack.c.l.b16 %v1467
    %v2914 = vunpack.c.h.b16 %v1467
    %v2915 = vunpack.c.l.b16 %v1468
    %v2916 = vunpack.c.h.b16 %v1468
    %v2917 = vunpack.c.l.b16 %v1469
    %v2918 = vunpack.c.h.b16 %v1469
    %v2919 = vunpack.c.l.b16 %v1470
    %v2920 = vunpack.c.h.b16 %v1470
    %v2921 = vunpack.c.l.b16 %v1471
    %v2922 = vunpack.c.h.b16 %v1471
    %v2923 = vunpack.c.l.b16 %v1472
    %v2924 = vunpack.c.h.b16 %v1472
    %v2925 = vunpack.c.l.b16 %v1473
    %v2926 = vunpack.c.h.b16 %v1473
    %v2927 = vunpack.c.l.b16 %v1474
    %v2928 = vunpack.c.h.b16 %v1474
    %v2929 = vunpack.c.l.b16 %v1475
    %v2930 = vunpack.c.h.b16 %v1475
    %v2931 = vunpack.c.l.b16 %v1476
    %v2932 = vunpack.c.h.b16 %v1476
    %v2933 = vunpack.c.l.b16 %v1477
    %v2934 = vunpack.c.h.b16 %v1477
    %v2935 = vunpack.c.l.b16 %v1478
    %v2936 = vunpack.c.h.b16 %v1478
    %v2937 = vunpack.c.l.b16 %v1479
    %v2938 = vunpack.c.h.b16 %v1479
    %v2939 = vunpack.c.l.b16 %v1480
    %v2940 = vunpack.c.h.b16 %v1480
    %v2941 = vunpack.c.l.b16 %v1481
    %v2942 = vunpack.c.h.b16 %v1481
    %v2943 = vunpack.c.l.b16 %v1482
    %v2944 = vunpack.c.h.b16 %v1482
    %v2945 = vunpack.c.l.b16 %v1483
    %v2946 = vunpack.c.h.b16 %v1483
    %v2947 = vunpack.c.l.b16 %v1484
    %v2948 = vunpack.c.h.b16 %v1484
    %v2949 = vunpack.c.l.b16 %v1485
    %v2950 = vunpack.c.h.b16 %v1485
    %v2951 = vunpack.c.l.b16 %v1486
    %v2952 = vunpack.c.h.b16 %v1486
    %v2953 = vunpack.c.l.b16 %v1487
    %v2954 = vunpack.c.h.b16 %v1487
    %v2955 = vunpack.c.l.b16 %v1488
    %v2956 = vunpack.c.h.b16 %v1488
    %v2957 = vunpack.c.l.b16 %v1489
    %v2958 = vunpack.c.h.b16 %v1489
    %v2959 = vunpack.c.l.b16 %v1490
    %v2960 = vunpack.c.h.b16 %v1490
    %v2961 = vunpack.c.l.b16 %v1491
    %v2962 = vunpack.c.h.b16 %v1491
    %v2963 = vunpack.c.l.b16 %v1492
    %v2964 = vunpack.c.h.b16 %v1492
    %v2965 = vunpack.c.l.b16 %v1493
    %v2966 = vunpack.c.h.b16 %v1493
    %v2967 = vunpack.c.l.b16 %v1494
    %v2968 = vunpack.c.h.b16 %v1494
    %v2969 = vunpack.c.l.b16 %v1495
    %v2970 = vunpack.c.h.b16 %v1495
    %v2971 = vunpack.c.l.b16 %v1496
    %v2972 = vunpack.c.h.b16 %v1496
    %v2973 = vunpack.c.l.b16 %v1497
    %v2974 = vunpack.c.h.b16 %v1497
    %v2975 = vunpack.c.l.b16 %v1498
    %v2976 = vunpack.c.h.b16 %v1498
    %v2977 = vunpack.c.l.b16 %v1499
    %v2978 = vunpack.c.h.b16 %v1499
    %v2979 = vunpack.c.l.b16 %v1500
    %v2980 = vunpack.c.h.b16 %v1500
    %v2981 = vunpack.c.l.b16 %v1501
    %v2982 = vunpack.c.h.b16 %v1501
    %v2983 = vunpack.c.l.b16 %v1502
    %v2984 = vunpack.c.h.b16 %v1502
    %v2985 = vunpack.c.l.b16 %v1503
    %v2986 = vunpack.c.h.b16 %v1503
    %v2987 = vunpack.c.l.b16 %v1504
    %v2988 = vunpack.c.h.b16 %v1504
    %v2989 = vunpack.c.l.b16 %v1505
    %v2990 = vunpack.c.h.b16 %v1505
    %v2991 = vunpack.c.l.b16 %v1506
    %v2992 = vunpack.c.h.b16 %v1506
    %v2993 = vunpack.c.l.b16 %v1507
    %v2994 = vunpack.c.h.b16 %v1507
    %v2995 = vunpack.c.l.b16 %v1508
    %v2996 = vunpack.c.h.b16 %v1508
    %v2997 = vunpack.c.l.b16 %v1509
    %v2998 = vunpack.c.h.b16 %v1509
    %v2999 = vunpack.c.l.b16 %v1510
    %v3000 = vunpack.c.h.b16 %v1510
    %v3001 = vunpack.c.l.b16 %v1511
    %v3002 = vunpack.c.h.b16 %v1511
    %v3003 = vunpack.c.l.b16 %v1512
    %v3004 = vunpack.c.h.b16 %v1512
    %v3005 = vunpack.c.l.b16 %v1513
    %v3006 = vunpack.c.h.b16 %v1513
    %v3007 = vunpack.c.l.b16 %v1514
    %v3008 = vunpack.c.h.b16 %v1514
    %v3009 = vunpack.c.l.b16 %v1515
    %v3010 = vunpack.c.h.b16 %v1515
    %v3011 = vunpack.c.l.b16 %v1516
    %v3012 = vunpack.c.h.b16 %v1516
    %v3013 = vunpack.c.l.b16 %v1517
    %v3014 = vunpack.c.h.b16 %v1517
    %v3015 = vunpack.c.l.b16 %v1518
    %v3016 = vunpack.c.h.b16 %v1518
    %v3017 = vunpack.c.l.b16 %v1519
    %v3018 = vunpack.c.h.b16 %v1519
    %v3019 = vunpack.c.l.b16 %v1520
    %v3020 = vunpack.c.h.b16 %v1520
    %v3021 = vunpack.c.l.b16 %v1521
    %v3022 = vunpack.c.h.b16 %v1521
    %v3023 = vunpack.c.l.b16 %v1522
    %v3024 = vunpack.c.h.b16 %v1522
    %v3025 = vunpack.c.l.b16 %v1523
    %v3026 = vunpack.c.h.b16 %v1523
    %v3027 = vunpack.c.l.b16 %v1524
    %v3028 = vunpack.c.h.b16 %v1524
    %v3029 = vunpack.c.l.b16 %v1525
    %v3030 = vunpack.c.h.b16 %v1525
    %v3031 = vunpack.c.l.b16 %v1526
    %v3032 = vunpack.c.h.b16 %v1526
    %v3033 = vunpack.c.l.b16 %v1527
    %v3034 = vunpack.c.h.b16 %v1527
    %v3035 = vunpack.c.l.b16 %v1528
    %v3036 = vunpack.c.h.b16 %v1528
    %v3037 = vunpack.c.l.b16 %v1529
    %v3038 = vunpack.c.h.b16 %v1529
    %v3039 = vunpack.c.l.b16 %v1530
    %v3040 = vunpack.c.h.b16 %v1530
    %v3041 = vunpack.c.l.b16 %v1531
    %v3042 = vunpack.c.h.b16 %v1531
    %v3043 = vunpack.c.l.b16 %v1532
    %v3044 = vunpack.c.h.b16 %v1532
    %v3045 = vunpack.c.l.b16 %v1533
    %v3046 = vunpack.c.h.b16 %v1533
    %v3047 = vunpack.c.l.b16 %v1534
    %v3048 = vunpack.c.h.b16 %v1534
    %v3049 = vunpack.c.l.b16 %v1535
    %v3050 = vunpack.c.h.b16 %v1535
    %v3051 = vunpack.c.l.b16 %v1536
    %v3052 = vunpack.c.h.b16 %v1536
    %v3053 = vunpack.c.l.b16 %v1537
    %v3054 = vunpack.c.h.b16 %v1537
    %v3055 = vunpack.c.l.b16 %v1538
    %v3056 = vunpack.c.h.b16 %v1538
    %v3057 = vunpack.c.l.b16 %v1539
    %v3058 = vunpack.c.h.b16 %v1539
    %v3059 = vunpack.c.l.b16 %v1540
    %v3060 = vunpack.c.h.b16 %v1540
    %v3061 = vunpack.c.l.b16 %v1541
    %v3062 = vunpack.c.h.b16 %v1541
    %v3063 = vunpack.c.l.b16 %v1542
    %v3064 = vunpack.c.h.b16 %v1542
    %v3065 = vunpack.c.l.b16 %v1543
    %v3066 = vunpack.c.h.b16 %v1543
    %v3067 = vunpack.c.l.b16 %v1544
    %v3068 = vunpack.c.h.b16 %v1544
    %v3069 = vunpack.c.l.b16 %v1545
    %v3070 = vunpack.c.h.b16 %v1545
    %v3071 = vunpack.c.l.b16 %v1546
    %v3072 = vunpack.c.h.b16 %v1546
    %v3073 = vunpack.c.l.b16 %v1547
    %v3074 = vunpack.c.h.b16 %v1547
    %v3075 = vunpack.c.l.b16 %v1548
    %v3076 = vunpack.c.h.b16 %v1548
    %v3077 = vunpack.c.l.b16 %v1549
    %v3078 = vunpack.c.h.b16 %v1549
    %v3079 = vunpack.c.l.b16 %v1550
    %v3080 = vunpack.c.h.b16 %v1550
    %v3081 = vunpack.c.l.b16 %v1551
    %v3082 = vunpack.c.h.b16 %v1551
    %v3083 = vunpack.c.l.b16 %v1552
    %v3084 = vunpack.c.h.b16 %v1552
    %v3085 = vunpack.c.l.b16 %v1553
    %v3086 = vunpack.c.h.b16 %v1553
    %v3087 = vunpack.c.l.b16 %v1554
    %v3088 = vunpack.c.h.b16 %v1554
    %v3089 = vunpack.c.l.b16 %v1555
    %v3090 = vunpack.c.h.b16 %v1555
    %v3091 = vunpack.c.l.b16 %v1556
    %v3092 = vunpack.c.h.b16 %v1556
    %v3093 = vunpack.c.l.b16 %v1557
    %v3094 = vunpack.c.h.b16 %v1557
    %v3095 = vunpack.c.l.b16 %v1558
    %v3096 = vunpack.c.h.b16 %v1558
    %v3097 = vunpack.c.l.b16 %v1559
    %v3098 = vunpack.c.h.b16 %v1559
    %v3099 = vunpack.c.l.b16 %v1560
    %v3100 = vunpack.c.h.b16 %v1560
    %v3101 = vunpack.c.l.b16 %v1561
    %v3102 = vunpack.c.h.b16 %v1561
    %v3103 = vunpack.c.l.b16 %v1562
    %v3104 = vunpack.c.h.b16 %v1562
    %v3105 = vunpack.c.l.b16 %v1563
    %v3106 = vunpack.c.h.b16 %v1563
    %v3107 = vunpack.c.l.b16 %v1564
    %v3108 = vunpack.c.h.b16 %v1564
    %v3109 = vunpack.c.l.b16 %v1565
    %v3110 = vunpack.c.h.b16 %v1565
    %v3111 = vunpack.c.l.b16 %v1566
    %v3112 = vunpack.c.h.b16 %v1566
    %v3113 = vunpack.c.l.b16 %v1567
    %v3114 = vunpack.c.h.b16 %v1567
    %v3115 = vunpack.c.l.b16 %v1568
    %v3116 = vunpack.c.h.b16 %v1568
    %v3117 = vunpack.c.l.b16 %v1569
    %v3118 = vunpack.c.h.b16 %v1569
    %v3119 = vunpack.c.l.b16 %v1570
    %v3120 = vunpack.c.h.b16 %v1570
    %v3121 = vunpack.c.l.b16 %v1571
    %v3122 = vunpack.c.h.b16 %v1571
    %v3123 = vunpack.c.l.b16 %v1572
    %v3124 = vunpack.c.h.b16 %v1572
    %v3125 = vunpack.c.l.b16 %v1573
    %v3126 = vunpack.c.h.b16 %v1573
    %v3127 = vunpack.c.l.b16 %v1574
    %v3128 = vunpack.c.h.b16 %v1574
    %v3129 = vpack.c.b16 %v2113, %v2105
    %v3130 = vpack.c.b16 %v2114, %v2106
    %v3131 = vpack.c.b16 %v2115, %v2107
    %v3132 = vpack.c.b16 %v2116, %v2108
    %v3133 = vpack.c.b16 %v2117, %v2109
    %v3134 = vpack.c.b16 %v2118, %v2110
    %v3135 = vpack.c.b16 %v2119, %v2111
    %v3136 = vpack.c.b16 %v2120, %v2112
    %v3137 = vpack.c.b16 %v2129, %v2121
    %v3138 = vpack.c.b16 %v2130, %v2122
    %v3139 = vpack.c.b16 %v2131, %v2123
    %v3140 = vpack.c.b16 %v2132, %v2124
    %v3141 = vpack.c.b16 %v2133, %v2125
    %v3142 = vpack.c.b16 %v2134, %v2126
    %v3143 = vpack.c.b16 %v2135, %v2127
    %v3144 = vpack.c.b16 %v2136, %v2128
    %v3145 = vpack.c.b16 %v2145, %v2137
    %v3146 = vpack.c.b16 %v2146, %v2138
    %v3147 = vpack.c.b16 %v2147, %v2139
    %v3148 = vpack.c.b16 %v2148, %v2140
    %v3149 = vpack.c.b16 %v2149, %v2141
    %v3150 = vpack.c.b16 %v2150, %v2142
    %v3151 = vpack.c.b16 %v2151, %v2143
    %v3152 = vpack.c.b16 %v2152, %v2144
    %v3153 = vpack.c.b16 %v2161, %v2153
    %v3154 = vpack.c.b16 %v2162, %v2154
    %v3155 = vpack.c.b16 %v2163, %v2155
    %v3156 = vpack.c.b16 %v2164, %v2156
    %v3157 = vpack.c.b16 %v2165, %v2157
    %v3158 = vpack.c.b16 %v2166, %v2158
    %v3159 = vpack.c.b16 %v2167, %v2159
    %v3160 = vpack.c.b16 %v2168, %v2160
    %v3161 = vpack.c.b16 %v2177, %v2169
    %v3162 = vpack.c.b16 %v2178, %v2170
    %v3163 = vpack.c.b16 %v2179, %v2171
    %v3164 = vpack.c.b16 %v2180, %v2172
    %v3165 = vpack.c.b16 %v2181, %v2173
    %v3166 = vpack.c.b16 %v2182, %v2174
    %v3167 = vpack.c.b16 %v2183, %v2175
    %v3168 = vpack.c.b16 %v2184, %v2176
    %v3169 = vpack.c.b16 %v2193, %v2185
    %v3170 = vpack.c.b16 %v2194, %v2186
    %v3171 = vpack.c.b16 %v2195, %v2187
    %v3172 = vpack.c.b16 %v2196, %v2188
    %v3173 = vpack.c.b16 %v2197, %v2189
    %v3174 = vpack.c.b16 %v2198, %v2190
    %v3175 = vpack.c.b16 %v2199, %v2191
    %v3176 = vpack.c.b16 %v2200, %v2192
    %v3177 = vpack.c.b16 %v2209, %v2201
    %v3178 = vpack.c.b16 %v2210, %v2202
    %v3179 = vpack.c.b16 %v2211, %v2203
    %v3180 = vpack.c.b16 %v2212, %v2204
    %v3181 = vpack.c.b16 %v2213, %v2205
    %v3182 = vpack.c.b16 %v2214, %v2206
    %v3183 = vpack.c.b16 %v2215, %v2207
    %v3184 = vpack.c.b16 %v2216, %v2208
    %v3185 = vpack.c.b16 %v2225, %v2217
    %v3186 = vpack.c.b16 %v2226, %v2218
    %v3187 = vpack.c.b16 %v2227, %v2219
    %v3188 = vpack.c.b16 %v2228, %v2220
    %v3189 = vpack.c.b16 %v2229, %v2221
    %v3190 = vpack.c.b16 %v2230, %v2222
    %v3191 = vpack.c.b16 %v2231, %v2223
    %v3192 = vpack.c.b16 %v2232, %v2224
    %v3193 = vpack.c.b16 %v2241, %v2233
    %v3194 = vpack.c.b16 %v2242, %v2234
    %v3195 = vpack.c.b16 %v2243, %v2235
    %v3196 = vpack.c.b16 %v2244, %v2236
    %v3197 = vpack.c.b16 %v2245, %v2237
    %v3198 = vpack.c.b16 %v2246, %v2238
    %v3199 = vpack.c.b16 %v2247, %v2239
    %v3200 = vpack.c.b16 %v2248, %v2240
    %v3201 = vpack.c.b16 %v2257, %v2249
    %v3202 = vpack.c.b16 %v2258, %v2250
    %v3203 = vpack.c.b16 %v2259, %v2251
    %v3204 = vpack.c.b16 %v2260, %v2252
    %v3205 = vpack.c.b16 %v2261, %v2253
    %v3206 = vpack.c.b16 %v2262, %v2254
    %v3207 = vpack.c.b16 %v2263, %v2255
    %v3208 = vpack.c.b16 %v2264, %v2256
    %v3209 = vpack.c.b16 %v2273, %v2265
    %v3210 = vpack.c.b16 %v2274, %v2266
    %v3211 = vpack.c.b16 %v2275, %v2267
    %v3212 = vpack.c.b16 %v2276, %v2268
    %v3213 = vpack.c.b16 %v2277, %v2269
    %v3214 = vpack.c.b16 %v2278, %v2270
    %v3215 = vpack.c.b16 %v2279, %v2271
    %v3216 = vpack.c.b16 %v2280, %v2272
    %v3217 = vpack.c.b16 %v2289, %v2281
    %v3218 = vpack.c.b16 %v2290, %v2282
    %v3219 = vpack.c.b16 %v2291, %v2283
    %v3220 = vpack.c.b16 %v2292, %v2284
    %v3221 = vpack.c.b16 %v2293, %v2285
    %v3222 = vpack.c.b16 %v2294, %v2286
    %v3223 = vpack.c.b16 %v2295, %v2287
    %v3224 = vpack.c.b16 %v2296, %v2288
    %v3225 = vpack.c.b16 %v2305, %v2297
    %v3226 = vpack.c.b16 %v2306, %v2298
    %v3227 = vpack.c.b16 %v2307, %v2299
    %v3228 = vpack.c.b16 %v2308, %v2300
    %v3229 = vpack.c.b16 %v2309, %v2301
    %v3230 = vpack.c.b16 %v2310, %v2302
    %v3231 = vpack.c.b16 %v2311, %v2303
    %v3232 = vpack.c.b16 %v2312, %v2304
    %v3233 = vpack.c.b16 %v2321, %v2313
    %v3234 = vpack.c.b16 %v2322, %v2314
    %v3235 = vpack.c.b16 %v2323, %v2315
    %v3236 = vpack.c.b16 %v2324, %v2316
    %v3237 = vpack.c.b16 %v2325, %v2317
    %v3238 = vpack.c.b16 %v2326, %v2318
    %v3239 = vpack.c.b16 %v2327, %v2319
    %v3240 = vpack.c.b16 %v2328, %v2320
    %v3241 = vpack.c.b16 %v2337, %v2329
    %v3242 = vpack.c.b16 %v2338, %v2330
    %v3243 = vpack.c.b16 %v2339, %v2331
    %v3244 = vpack.c.b16 %v2340, %v2332
    %v3245 = vpack.c.b16 %v2341, %v2333
    %v3246 = vpack.c.b16 %v2342, %v2334
    %v3247 = vpack.c.b16 %v2343, %v2335
    %v3248 = vpack.c.b16 %v2344, %v2336
    %v3249 = vpack.c.b16 %v2353, %v2345
    %v3250 = vpack.c.b16 %v2354, %v2346
    %v3251 = vpack.c.b16 %v2355, %v2347
    %v3252 = vpack.c.b16 %v2356, %v2348
    %v3253 = vpack.c.b16 %v2357, %v2349
    %v3254 = vpack.c.b16 %v2358, %v2350
    %v3255 = vpack.c.b16 %v2359, %v2351
    %v3256 = vpack.c.b16 %v2360, %v2352
    %v3257 = vpack.c.b16 %v2369, %v2361
    %v3258 = vpack.c.b16 %v2370, %v2362
    %v3259 = vpack.c.b16 %v2371, %v2363
    %v3260 = vpack.c.b16 %v2372, %v2364
    %v3261 = vpack.c.b16 %v2373, %v2365
    %v3262 = vpack.c.b16 %v2374, %v2366
    %v3263 = vpack.c.b16 %v2375, %v2367
    %v3264 = vpack.c.b16 %v2376, %v2368
    %v3265 = vpack.c.b16 %v2385, %v2377
    %v3266 = vpack.c.b16 %v2386, %v2378
    %v3267 = vpack.c.b16 %v2387, %v2379
    %v3268 = vpack.c.b16 %v2388, %v2380
    %v3269 = vpack.c.b16 %v2389, %v2381
    %v3270 = vpack.c.b16 %v2390, %v2382
    %v3271 = vpack.c.b16 %v2391, %v2383
    %v3272 = vpack.c.b16 %v2392, %v2384
    %v3273 = vpack.c.b16 %v2401, %v2393
    %v3274 = vpack.c.b16 %v2402, %v2394
    %v3275 = vpack.c.b16 %v2403, %v2395
    %v3276 = vpack.c.b16 %v2404, %v2396
    %v3277 = vpack.c.b16 %v2405, %v2397
    %v3278 = vpack.c.b16 %v2406, %v2398
    %v3279 = vpack.c.b16 %v2407, %v2399
    %v3280 = vpack.c.b16 %v2408, %v2400
    %v3281 = vpack.c.b16 %v2417, %v2409
    %v3282 = vpack.c.b16 %v2418, %v2410
    %v3283 = vpack.c.b16 %v2419, %v2411
    %v3284 = vpack.c.b16 %v2420, %v2412
    %v3285 = vpack.c.b16 %v2421, %v2413
    %v3286 = vpack.c.b16 %v2422, %v2414
    %v3287 = vpack.c.b16 %v2423, %v2415
    %v3288 = vpack.c.b16 %v2424, %v2416
    %v3289 = vpack.c.b16 %v2433, %v2425
    %v3290 = vpack.c.b16 %v2434, %v2426
    %v3291 = vpack.c.b16 %v2435, %v2427
    %v3292 = vpack.c.b16 %v2436, %v2428
    %v3293 = vpack.c.b16 %v2437, %v2429
    %v3294 = vpack.c.b16 %v2438, %v2430
    %v3295 = vpack.c.b16 %v2439, %v2431
    %v3296 = vpack.c.b16 %v2440, %v2432
    %v3297 = vpack.c.b16 %v2449, %v2441
    %v3298 = vpack.c.b16 %v2450, %v2442
    %v3299 = vpack.c.b16 %v2451, %v2443
    %v3300 = vpack.c.b16 %v2452, %v2444
    %v3301 = vpack.c.b16 %v2453, %v2445
    %v3302 = vpack.c.b16 %v2454, %v2446
    %v3303 = vpack.c.b16 %v2455, %v2447
    %v3304 = vpack.c.b16 %v2456, %v2448
    %v3305 = vpack.c.b16 %v2465, %v2457
    %v3306 = vpack.c.b16 %v2466, %v2458
    %v3307 = vpack.c.b16 %v2467, %v2459
    %v3308 = vpack.c.b16 %v2468, %v2460
    %v3309 = vpack.c.b16 %v2469, %v2461
    %v3310 = vpack.c.b16 %v2470, %v2462
    %v3311 = vpack.c.b16 %v2471, %v2463
    %v3312 = vpack.c.b16 %v2472, %v2464
    %v3313 = vpack.c.b16 %v2481, %v2473
    %v3314 = vpack.c.b16 %v2482, %v2474
    %v3315 = vpack.c.b16 %v2483, %v2475
    %v3316 = vpack.c.b16 %v2484, %v2476
    %v3317 = vpack.c.b16 %v2485, %v2477
    %v3318 = vpack.c.b16 %v2486, %v2478
    %v3319 = vpack.c.b16 %v2487, %v2479
    %v3320 = vpack.c.b16 %v2488, %v2480
    %v3321 = vpack.c.b16 %v2497, %v2489
    %v3322 = vpack.c.b16 %v2498, %v2490
    %v3323 = vpack.c.b16 %v2499, %v2491
    %v3324 = vpack.c.b16 %v2500, %v2492
    %v3325 = vpack.c.b16 %v2501, %v2493
    %v3326 = vpack.c.b16 %v2502, %v2494
    %v3327 = vpack.c.b16 %v2503, %v2495
    %v3328 = vpack.c.b16 %v2504, %v2496
    %v3329 = vpack.c.b16 %v2513, %v2505
    %v3330 = vpack.c.b16 %v2514, %v2506
    %v3331 = vpack.c.b16 %v2515, %v2507
    %v3332 = vpack.c.b16 %v2516, %v2508
    %v3333 = vpack.c.b16 %v2517, %v2509
    %v3334 = vpack.c.b16 %v2518, %v2510
    %v3335 = vpack.c.b16 %v2519, %v2511
    %v3336 = vpack.c.b16 %v2520, %v2512
    %v3337 = vpack.c.b16 %v2529, %v2521
    %v3338 = vpack.c.b16 %v2530, %v2522
    %v3339 = vpack.c.b16 %v2531, %v2523
    %v3340 = vpack.c.b16 %v2532, %v2524
    %v3341 = vpack.c.b16 %v2533, %v2525
    %v3342 = vpack.c.b16 %v2534, %v2526
    %v3343 = vpack.c.b16 %v2535, %v2527
    %v3344 = vpack.c.b16 %v2536, %v2528
    %v3345 = vpack.c.b16 %v2545, %v2537
    %v3346 = vpack.c.b16 %v2546, %v2538
    %v3347 = vpack.c.b16 %v2547, %v2539
    %v3348 = vpack.c.b16 %v2548, %v2540
    %v3349 = vpack.c.b16 %v2549, %v2541
    %v3350 = vpack.c.b16 %v2550, %v2542
    %v3351 = vpack.c.b16 %v2551, %v2543
    %v3352 = vpack.c.b16 %v2552, %v2544
    %v3353 = vpack.c.b16 %v2561, %v2553
    %v3354 = vpack.c.b16 %v2562, %v2554
    %v3355 = vpack.c.b16 %v2563, %v2555
    %v3356 = vpack.c.b16 %v2564, %v2556
    %v3357 = vpack.c.b16 %v2565, %v2557
    %v3358 = vpack.c.b16 %v2566, %v2558
    %v3359 = vpack.c.b16 %v2567, %v2559
    %v3360 = vpack.c.b16 %v2568, %v2560
    %v3361 = vpack.c.b16 %v2577, %v2569
    %v3362 = vpack.c.b16 %v2578, %v2570
    %v3363 = vpack.c.b16 %v2579, %v2571
    %v3364 = vpack.c.b16 %v2580, %v2572
    %v3365 = vpack.c.b16 %v2581, %v2573
    %v3366 = vpack.c.b16 %v2582, %v2574
    %v3367 = vpack.c.b16 %v2583, %v2575
    %v3368 = vpack.c.b16 %v2584, %v2576
    %v3369 = vpack.c.b16 %v2593, %v2585
    %v3370 = vpack.c.b16 %v2594, %v2586
    %v3371 = vpack.c.b16 %v2595, %v2587
    %v3372 = vpack.c.b16 %v2596, %v2588
    %v3373 = vpack.c.b16 %v2597, %v2589
    %v3374 = vpack.c.b16 %v2598, %v2590
    %v3375 = vpack.c.b16 %v2599, %v2591
    %v3376 = vpack.c.b16 %v2600, %v2592
    %v3377 = vpack.c.b16 %v2609, %v2601
    %v3378 = vpack.c.b16 %v2610, %v2602
    %v3379 = vpack.c.b16 %v2611, %v2603
    %v3380 = vpack.c.b16 %v2612, %v2604
    %v3381 = vpack.c.b16 %v2613, %v2605
    %v3382 = vpack.c.b16 %v2614, %v2606
    %v3383 = vpack.c.b16 %v2615, %v2607
    %v3384 = vpack.c.b16 %v2616, %v2608
    %v3385 = vpack.c.b16 %v2625, %v2617
    %v3386 = vpack.c.b16 %v2626, %v2618
    %v3387 = vpack.c.b16 %v2627, %v2619
    %v3388 = vpack.c.b16 %v2628, %v2620
    %v3389 = vpack.c.b16 %v2629, %v2621
    %v3390 = vpack.c.b16 %v2630, %v2622
    %v3391 = vpack.c.b16 %v2631, %v2623
    %v3392 = vpack.c.b16 %v2632, %v2624
    %v3393 = vpack.c.b16 %v2641, %v2633
    %v3394 = vpack.c.b16 %v2642, %v2634
    %v3395 = vpack.c.b16 %v2643, %v2635
    %v3396 = vpack.c.b16 %v2644, %v2636
    %v3397 = vpack.c.b16 %v2645, %v2637
    %v3398 = vpack.c.b16 %v2646, %v2638
    %v3399 = vpack.c.b16 %v2647, %v2639
    %v3400 = vpack.c.b16 %v2648, %v2640
    %v3401 = vpack.c.b16 %v2657, %v2649
    %v3402 = vpack.c.b16 %v2658, %v2650
    %v3403 = vpack.c.b16 %v2659, %v2651
    %v3404 = vpack.c.b16 %v2660, %v2652
    %v3405 = vpack.c.b16 %v2661, %v2653
    %v3406 = vpack.c.b16 %v2662, %v2654
    %v3407 = vpack.c.b16 %v2663, %v2655
    %v3408 = vpack.c.b16 %v2664, %v2656
    %v3409 = vpack.c.b16 %v2673, %v2665
    %v3410 = vpack.c.b16 %v2674, %v2666
    %v3411 = vpack.c.b16 %v2675, %v2667
    %v3412 = vpack.c.b16 %v2676, %v2668
    %v3413 = vpack.c.b16 %v2677, %v2669
    %v3414 = vpack.c.b16 %v2678, %v2670
    %v3415 = vpack.c.b16 %v2679, %v2671
    %v3416 = vpack.c.b16 %v2680, %v2672
    %v3417 = vpack.c.b16 %v2689, %v2681
    %v3418 = vpack.c.b16 %v2690, %v2682
    %v3419 = vpack.c.b16 %v2691, %v2683
    %v3420 = vpack.c.b16 %v2692, %v2684
    %v3421 = vpack.c.b16 %v2693, %v2685
    %v3422 = vpack.c.b16 %v2694, %v2686
    %v3423 = vpack.c.b16 %v2695, %v2687
    %v3424 = vpack.c.b16 %v2696, %v2688
    %v3425 = vpack.c.b16 %v2705, %v2697
    %v3426 = vpack.c.b16 %v2706, %v2698
    %v3427 = vpack.c.b16 %v2707, %v2699
    %v3428 = vpack.c.b16 %v2708, %v2700
    %v3429 = vpack.c.b16 %v2709, %v2701
    %v3430 = vpack.c.b16 %v2710, %v2702
    %v3431 = vpack.c.b16 %v2711, %v2703
    %v3432 = vpack.c.b16 %v2712, %v2704
    %v3433 = vpack.c.b16 %v2721, %v2713
    %v3434 = vpack.c.b16 %v2722, %v2714
    %v3435 = vpack.c.b16 %v2723, %v2715
    %v3436 = vpack.c.b16 %v2724, %v2716
    %v3437 = vpack.c.b16 %v2725, %v2717
    %v3438 = vpack.c.b16 %v2726, %v2718
    %v3439 = vpack.c.b16 %v2727, %v2719
    %v3440 = vpack.c.b16 %v2728, %v2720
    %v3441 = vpack.c.b16 %v2737, %v2729
    %v3442 = vpack.c.b16 %v2738, %v2730
    %v3443 = vpack.c.b16 %v2739, %v2731
    %v3444 = vpack.c.b16 %v2740, %v2732
    %v3445 = vpack.c.b16 %v2741, %v2733
    %v3446 = vpack.c.b16 %v2742, %v2734
    %v3447 = vpack.c.b16 %v2743, %v2735
    %v3448 = vpack.c.b16 %v2744, %v2736
    %v3449 = vpack.c.b16 %v2753, %v2745
    %v3450 = vpack.c.b16 %v2754, %v2746
    %v3451 = vpack.c.b16 %v2755, %v2747
    %v3452 = vpack.c.b16 %v2756, %v2748
    %v3453 = vpack.c.b16 %v2757, %v2749
    %v3454 = vpack.c.b16 %v2758, %v2750
    %v3455 = vpack.c.b16 %v2759, %v2751
    %v3456 = vpack.c.b16 %v2760, %v2752
    %v3457 = vpack.c.b16 %v2769, %v2761
    %v3458 = vpack.c.b16 %v2770, %v2762
    %v3459 = vpack.c.b16 %v2771, %v2763
    %v3460 = vpack.c.b16 %v2772, %v2764
    %v3461 = vpack.c.b16 %v2773, %v2765
    %v3462 = vpack.c.b16 %v2774, %v2766
    %v3463 = vpack.c.b16 %v2775, %v2767
    %v3464 = vpack.c.b16 %v2776, %v2768
    %v3465 = vpack.c.b16 %v2785, %v2777
    %v3466 = vpack.c.b16 %v2786, %v2778
    %v3467 = vpack.c.b16 %v2787, %v2779
    %v3468 = vpack.c.b16 %v2788, %v2780
    %v3469 = vpack.c.b16 %v2789, %v2781
    %v3470 = vpack.c.b16 %v2790, %v2782
    %v3471 = vpack.c.b16 %v2791, %v2783
    %v3472 = vpack.c.b16 %v2792, %v2784
    %v3473 = vpack.c.b16 %v2801, %v2793
    %v3474 = vpack.c.b16 %v2802, %v2794
    %v3475 = vpack.c.b16 %v2803, %v2795
    %v3476 = vpack.c.b16 %v2804, %v2796
    %v3477 = vpack.c.b16 %v2805, %v2797
    %v3478 = vpack.c.b16 %v2806, %v2798
    %v3479 = vpack.c.b16 %v2807, %v2799
    %v3480 = vpack.c.b16 %v2808, %v2800
    %v3481 = vpack.c.b16 %v2817, %v2809
    %v3482 = vpack.c.b16 %v2818, %v2810
    %v3483 = vpack.c.b16 %v2819, %v2811
    %v3484 = vpack.c.b16 %v2820, %v2812
    %v3485 = vpack.c.b16 %v2821, %v2813
    %v3486 = vpack.c.b16 %v2822, %v2814
    %v3487 = vpack.c.b16 %v2823, %v2815
    %v3488 = vpack.c.b16 %v2824, %v2816
    %v3489 = vpack.c.b16 %v2833, %v2825
    %v3490 = vpack.c.b16 %v2834, %v2826
    %v3491 = vpack.c.b16 %v2835, %v2827
    %v3492 = vpack.c.b16 %v2836, %v2828
    %v3493 = vpack.c.b16 %v2837, %v2829
    %v3494 = vpack.c.b16 %v2838, %v2830
    %v3495 = vpack.c.b16 %v2839, %v2831
    %v3496 = vpack.c.b16 %v2840, %v2832
    %v3497 = vpack.c.b16 %v2849, %v2841
    %v3498 = vpack.c.b16 %v2850, %v2842
    %v3499 = vpack.c.b16 %v2851, %v2843
    %v3500 = vpack.c.b16 %v2852, %v2844
    %v3501 = vpack.c.b16 %v2853, %v2845
    %v3502 = vpack.c.b16 %v2854, %v2846
    %v3503 = vpack.c.b16 %v2855, %v2847
    %v3504 = vpack.c.b16 %v2856, %v2848
    %v3505 = vpack.c.b16 %v2865, %v2857
    %v3506 = vpack.c.b16 %v2866, %v2858
    %v3507 = vpack.c.b16 %v2867, %v2859
    %v3508 = vpack.c.b16 %v2868, %v2860
    %v3509 = vpack.c.b16 %v2869, %v2861
    %v3510 = vpack.c.b16 %v2870, %v2862
    %v3511 = vpack.c.b16 %v2871, %v2863
    %v3512 = vpack.c.b16 %v2872, %v2864
    %v3513 = vpack.c.b16 %v2881, %v2873
    %v3514 = vpack.c.b16 %v2882, %v2874
    %v3515 = vpack.c.b16 %v2883, %v2875
    %v3516 = vpack.c.b16 %v2884, %v2876
    %v3517 = vpack.c.b16 %v2885, %v2877
    %v3518 = vpack.c.b16 %v2886, %v2878
    %v3519 = vpack.c.b16 %v2887, %v2879
    %v3520 = vpack.c.b16 %v2888, %v2880
    %v3521 = vpack.c.b16 %v2897, %v2889
    %v3522 = vpack.c.b16 %v2898, %v2890
    %v3523 = vpack.c.b16 %v2899, %v2891
    %v3524 = vpack.c.b16 %v2900, %v2892
    %v3525 = vpack.c.b16 %v2901, %v2893
    %v3526 = vpack.c.b16 %v2902, %v2894
    %v3527 = vpack.c.b16 %v2903, %v2895
    %v3528 = vpack.c.b16 %v2904, %v2896
    %v3529 = vpack.c.b16 %v2913, %v2905
    %v3530 = vpack.c.b16 %v2914, %v2906
    %v3531 = vpack.c.b16 %v2915, %v2907
    %v3532 = vpack.c.b16 %v2916, %v2908
    %v3533 = vpack.c.b16 %v2917, %v2909
    %v3534 = vpack.c.b16 %v2918, %v2910
    %v3535 = vpack.c.b16 %v2919, %v2911
    %v3536 = vpack.c.b16 %v2920, %v2912
    %v3537 = vpack.c.b16 %v2929, %v2921
    %v3538 = vpack.c.b16 %v2930, %v2922
    %v3539 = vpack.c.b16 %v2931, %v2923
    %v3540 = vpack.c.b16 %v2932, %v2924
    %v3541 = vpack.c.b16 %v2933, %v2925
    %v3542 = vpack.c.b16 %v2934, %v2926
    %v3543 = vpack.c.b16 %v2935, %v2927
    %v3544 = vpack.c.b16 %v2936, %v2928
    %v3545 = vpack.c.b16 %v2945, %v2937
    %v3546 = vpack.c.b16 %v2946, %v2938
    %v3547 = vpack.c.b16 %v2947, %v2939
    %v3548 = vpack.c.b16 %v2948, %v2940
    %v3549 = vpack.c.b16 %v2949, %v2941
    %v3550 = vpack.c.b16 %v2950, %v2942
    %v3551 = vpack.c.b16 %v2951, %v2943
    %v3552 = vpack.c.b16 %v2952, %v2944
    %v3553 = vpack.c.b16 %v2961, %v2953
    %v3554 = vpack.c.b16 %v2962, %v2954
    %v3555 = vpack.c.b16 %v2963, %v2955
    %v3556 = vpack.c.b16 %v2964, %v2956
    %v3557 = vpack.c.b16 %v2965, %v2957
    %v3558 = vpack.c.b16 %v2966, %v2958
    %v3559 = vpack.c.b16 %v2967, %v2959
    %v3560 = vpack.c.b16 %v2968, %v2960
    %v3561 = vpack.c.b16 %v2977, %v2969
    %v3562 = vpack.c.b16 %v2978, %v2970
    %v3563 = vpack.c.b16 %v2979, %v2971
    %v3564 = vpack.c.b16 %v2980, %v2972
    %v3565 = vpack.c.b16 %v2981, %v2973
    %v3566 = vpack.c.b16 %v2982, %v2974
    %v3567 = vpack.c.b16 %v2983, %v2975
    %v3568 = vpack.c.b16 %v2984, %v2976
    %v3569 = vpack.c.b16 %v2993, %v2985
    %v3570 = vpack.c.b16 %v2994, %v2986
    %v3571 = vpack.c.b16 %v2995, %v2987
    %v3572 = vpack.c.b16 %v2996, %v2988
    %v3573 = vpack.c.b16 %v2997, %v2989
    %v3574 = vpack.c.b16 %v2998, %v2990
    %v3575 = vpack.c.b16 %v2999, %v2991
    %v3576 = vpack.c.b16 %v3000, %v2992
    %v3577 = vpack.c.b16 %v3009, %v3001
    %v3578 = vpack.c.b16 %v3010, %v3002
    %v3579 = vpack.c.b16 %v3011, %v3003
    %v3580 = vpack.c.b16 %v3012, %v3004
    %v3581 = vpack.c.b16 %v3013, %v3005
    %v3582 = vpack.c.b16 %v3014, %v3006
    %v3583 = vpack.c.b16 %v3015, %v3007
    %v3584 = vpack.c.b16 %v3016, %v3008
    %v3585 = vpack.c.b16 %v3025, %v3017
    %v3586 = vpack.c.b16 %v3026, %v3018
    %v3587 = vpack.c.b16 %v3027, %v3019
    %v3588 = vpack.c.b16 %v3028, %v3020
    %v3589 = vpack.c.b16 %v3029, %v3021
    %v3590 = vpack.c.b16 %v3030, %v3022
    %v3591 = vpack.c.b16 %v3031, %v3023
    %v3592 = vpack.c.b16 %v3032, %v3024
    %v3593 = vpack.c.b16 %v3041, %v3033
    %v3594 = vpack.c.b16 %v3042, %v3034
    %v3595 = vpack.c.b16 %v3043, %v3035
    %v3596 = vpack.c.b16 %v3044, %v3036
    %v3597 = vpack.c.b16 %v3045, %v3037
    %v3598 = vpack.c.b16 %v3046, %v3038
    %v3599 = vpack.c.b16 %v3047, %v3039
    %v3600 = vpack.c.b16 %v3048, %v3040
    %v3601 = vpack.c.b16 %v3057, %v3049
    %v3602 = vpack.c.b16 %v3058, %v3050
    %v3603 = vpack.c.b16 %v3059, %v3051
    %v3604 = vpack.c.b16 %v3060, %v3052
    %v3605 = vpack.c.b16 %v3061, %v3053
    %v3606 = vpack.c.b16 %v3062, %v3054
    %v3607 = vpack.c.b16 %v3063, %v3055
    %v3608 = vpack.c.b16 %v3064, %v3056
    %v3609 = vpack.c.b16 %v3073, %v3065
    %v3610 = vpack.c.b16 %v3074, %v3066
    %v3611 = vpack.c.b16 %v3075, %v3067
    %v3612 = vpack.c.b16 %v3076, %v3068
    %v3613 = vpack.c.b16 %v3077, %v3069
    %v3614 = vpack.c.b16 %v3078, %v3070
    %v3615 = vpack.c.b16 %v3079, %v3071
    %v3616 = vpack.c.b16 %v3080, %v3072
    %v3617 = vpack.c.b16 %v3089, %v3081
    %v3618 = vpack.c.b16 %v3090, %v3082
    %v3619 = vpack.c.b16 %v3091, %v3083
    %v3620 = vpack.c.b16 %v3092, %v3084
    %v3621 = vpack.c.b16 %v3093, %v3085
    %v3622 = vpack.c.b16 %v3094, %v3086
    %v3623 = vpack.c.b16 %v3095, %v3087
    %v3624 = vpack.c.b16 %v3096, %v3088
    %v3625 = vpack.c.b16 %v3105, %v3097
    %v3626 = vpack.c.b16 %v3106, %v3098
    %v3627 = vpack.c.b16 %v3107, %v3099
    %v3628 = vpack.c.b16 %v3108, %v3100
    %v3629 = vpack.c.b16 %v3109, %v3101
    %v3630 = vpack.c.b16 %v3110, %v3102
    %v3631 = vpack.c.b16 %v3111, %v3103
    %v3632 = vpack.c.b16 %v3112, %v3104
    %v3633 = vpack.c.b16 %v3121, %v3113
    %v3634 = vpack.c.b16 %v3122, %v3114
    %v3635 = vpack.c.b16 %v3123, %v3115
    %v3636 = vpack.c.b16 %v3124, %v3116
    %v3637 = vpack.c.b16 %v3125, %v3117
    %v3638 = vpack.c.b16 %v3126, %v3118
    %v3639 = vpack.c.b16 %v3127, %v3119
    %v3640 = vpack.c.b16 %v3128, %v3120
    %4153 = vmatpush.bf16.msra.mxu0 %v3185
    %4154 = vmatpush.bf16.msra.mxu0 %v3177
    %4155 = vmatpush.bf16.msra.mxu0 %v3169
    %4156 = vmatpush.bf16.msra.mxu0 %v3161
    %4157 = vmatpush.bf16.msra.mxu0 %v3153
    %4158 = vmatpush.bf16.msra.mxu0 %v3145
    %4159 = vmatpush.bf16.msra.mxu0 %v3137
    %4160 = vmatpush.bf16.msra.mxu0 %v3129
    %4161 = vmatmul.bf16.gmra.mxu0 %v1055
    %v4162 = vpop.f32.mrf.mxu0
    %v4163 = vadd.f32 %v1577, %v4162
    %v4164 = vpop.f32.mrf.mxu0
    %4165 = vdwg.mxu0
    %4166 = vmatpush.bf16.msra.mxu0 %v3249
    %4167 = vmatpush.bf16.msra.mxu0 %v3241
    %4168 = vmatpush.bf16.msra.mxu0 %v3233
    %4169 = vmatpush.bf16.msra.mxu0 %v3225
    %4170 = vmatpush.bf16.msra.mxu0 %v3217
    %4171 = vmatpush.bf16.msra.mxu0 %v3209
    %4172 = vmatpush.bf16.msra.mxu0 %v3201
    %4173 = vmatpush.bf16.msra.mxu0 %v3193
    %4174 = vmatmul.bf16.gmra.mxu0 %v1056
    %v4175 = vpop.f32.mrf.mxu0
    %v4176 = vadd.f32 %v4163, %v4175
    %v4177 = vpop.f32.mrf.mxu0
    %4178 = vdwg.mxu0
    %4179 = vmatpush.bf16.msra.mxu0 %v3313
    %4180 = vmatpush.bf16.msra.mxu0 %v3305
    %4181 = vmatpush.bf16.msra.mxu0 %v3297
    %4182 = vmatpush.bf16.msra.mxu0 %v3289
    %4183 = vmatpush.bf16.msra.mxu0 %v3281
    %4184 = vmatpush.bf16.msra.mxu0 %v3273
    %4185 = vmatpush.bf16.msra.mxu0 %v3265
    %4186 = vmatpush.bf16.msra.mxu0 %v3257
    %4187 = vmatmul.bf16.gmra.mxu0 %v1057
    %v4188 = vpop.f32.mrf.mxu0
    %v4189 = vadd.f32 %v4176, %v4188
    %v4190 = vpop.f32.mrf.mxu0
    %4191 = vdwg.mxu0
    %4192 = vmatpush.bf16.msra.mxu0 %v3377
    %4193 = vmatpush.bf16.msra.mxu0 %v3369
    %4194 = vmatpush.bf16.msra.mxu0 %v3361
    %4195 = vmatpush.bf16.msra.mxu0 %v3353
    %4196 = vmatpush.bf16.msra.mxu0 %v3345
    %4197 = vmatpush.bf16.msra.mxu0 %v3337
    %4198 = vmatpush.bf16.msra.mxu0 %v3329
    %4199 = vmatpush.bf16.msra.mxu0 %v3321
    %4200 = vmatmul.bf16.gmra.mxu0 %v1058
    %v4201 = vpop.f32.mrf.mxu0
    %v4202 = vadd.f32 %v4189, %v4201
    %v4203 = vpop.f32.mrf.mxu0
    %4204 = vdwg.mxu0
    %4205 = vmatpush.bf16.msra.mxu0 %v3441
    %4206 = vmatpush.bf16.msra.mxu0 %v3433
    %4207 = vmatpush.bf16.msra.mxu0 %v3425
    %4208 = vmatpush.bf16.msra.mxu0 %v3417
    %4209 = vmatpush.bf16.msra.mxu0 %v3409
    %4210 = vmatpush.bf16.msra.mxu0 %v3401
    %4211 = vmatpush.bf16.msra.mxu0 %v3393
    %4212 = vmatpush.bf16.msra.mxu0 %v3385
    %4213 = vmatmul.bf16.gmra.mxu0 %v1059
    %v4214 = vpop.f32.mrf.mxu0
    %v4215 = vadd.f32 %v4202, %v4214
    %v4216 = vpop.f32.mrf.mxu0
    %4217 = vdwg.mxu0
    %4218 = vmatpush.bf16.msra.mxu0 %v3505
    %4219 = vmatpush.bf16.msra.mxu0 %v3497
    %4220 = vmatpush.bf16.msra.mxu0 %v3489
    %4221 = vmatpush.bf16.msra.mxu0 %v3481
    %4222 = vmatpush.bf16.msra.mxu0 %v3473
    %4223 = vmatpush.bf16.msra.mxu0 %v3465
    %4224 = vmatpush.bf16.msra.mxu0 %v3457
    %4225 = vmatpush.bf16.msra.mxu0 %v3449
    %4226 = vmatmul.bf16.gmra.mxu0 %v1060
    %v4227 = vpop.f32.mrf.mxu0
    %v4228 = vadd.f32 %v4215, %v4227
    %v4229 = vpop.f32.mrf.mxu0
    %4230 = vdwg.mxu0
    %4231 = vmatpush.bf16.msra.mxu0 %v3569
    %4232 = vmatpush.bf16.msra.mxu0 %v3561
    %4233 = vmatpush.bf16.msra.mxu0 %v3553
    %4234 = vmatpush.bf16.msra.mxu0 %v3545
    %4235 = vmatpush.bf16.msra.mxu0 %v3537
    %4236 = vmatpush.bf16.msra.mxu0 %v3529
    %4237 = vmatpush.bf16.msra.mxu0 %v3521
    %4238 = vmatpush.bf16.msra.mxu0 %v3513
    %4239 = vmatmul.bf16.gmra.mxu0 %v1061
    %v4240 = vpop.f32.mrf.mxu0
    %v4241 = vadd.f32 %v4228, %v4240
    %v4242 = vpop.f32.mrf.mxu0
    %4243 = vdwg.mxu0
    %4244 = vmatpush.bf16.msra.mxu0 %v3633
    %4245 = vmatpush.bf16.msra.mxu0 %v3625
    %4246 = vmatpush.bf16.msra.mxu0 %v3617
    %4247 = vmatpush.bf16.msra.mxu0 %v3609
    %4248 = vmatpush.bf16.msra.mxu0 %v3601
    %4249 = vmatpush.bf16.msra.mxu0 %v3593
    %4250 = vmatpush.bf16.msra.mxu0 %v3585
    %4251 = vmatpush.bf16.msra.mxu0 %v3577
    %4252 = vmatmul.bf16.gmra.mxu0 %v1062
    %v4253 = vpop.f32.mrf.mxu0
    %v4254 = vadd.f32 %v4241, %v4253
    %v4255 = vpop.f32.mrf.mxu0
    %4256 = vdwg.mxu0
    %4257 = vmatpush.bf16.msra.mxu0 %v3186
    %4258 = vmatpush.bf16.msra.mxu0 %v3178
    %4259 = vmatpush.bf16.msra.mxu0 %v3170
    %4260 = vmatpush.bf16.msra.mxu0 %v3162
    %4261 = vmatpush.bf16.msra.mxu0 %v3154
    %4262 = vmatpush.bf16.msra.mxu0 %v3146
    %4263 = vmatpush.bf16.msra.mxu0 %v3138
    %4264 = vmatpush.bf16.msra.mxu0 %v3130
    %4265 = vmatmul.bf16.gmra.mxu0 %v1055
    %v4266 = vpop.f32.mrf.mxu0
    %v4267 = vadd.f32 %v1578, %v4266
    %v4268 = vpop.f32.mrf.mxu0
    %4269 = vdwg.mxu0
    %4270 = vmatpush.bf16.msra.mxu0 %v3250
    %4271 = vmatpush.bf16.msra.mxu0 %v3242
    %4272 = vmatpush.bf16.msra.mxu0 %v3234
    %4273 = vmatpush.bf16.msra.mxu0 %v3226
    %4274 = vmatpush.bf16.msra.mxu0 %v3218
    %4275 = vmatpush.bf16.msra.mxu0 %v3210
    %4276 = vmatpush.bf16.msra.mxu0 %v3202
    %4277 = vmatpush.bf16.msra.mxu0 %v3194
    %4278 = vmatmul.bf16.gmra.mxu0 %v1056
    %v4279 = vpop.f32.mrf.mxu0
    %v4280 = vadd.f32 %v4267, %v4279
    %v4281 = vpop.f32.mrf.mxu0
    %4282 = vdwg.mxu0
    %4283 = vmatpush.bf16.msra.mxu0 %v3314
    %4284 = vmatpush.bf16.msra.mxu0 %v3306
    %4285 = vmatpush.bf16.msra.mxu0 %v3298
    %4286 = vmatpush.bf16.msra.mxu0 %v3290
    %4287 = vmatpush.bf16.msra.mxu0 %v3282
    %4288 = vmatpush.bf16.msra.mxu0 %v3274
    %4289 = vmatpush.bf16.msra.mxu0 %v3266
    %4290 = vmatpush.bf16.msra.mxu0 %v3258
    %4291 = vmatmul.bf16.gmra.mxu0 %v1057
    %v4292 = vpop.f32.mrf.mxu0
    %v4293 = vadd.f32 %v4280, %v4292
    %v4294 = vpop.f32.mrf.mxu0
    %4295 = vdwg.mxu0
    %4296 = vmatpush.bf16.msra.mxu0 %v3378
    %4297 = vmatpush.bf16.msra.mxu0 %v3370
    %4298 = vmatpush.bf16.msra.mxu0 %v3362
    %4299 = vmatpush.bf16.msra.mxu0 %v3354
    %4300 = vmatpush.bf16.msra.mxu0 %v3346
    %4301 = vmatpush.bf16.msra.mxu0 %v3338
    %4302 = vmatpush.bf16.msra.mxu0 %v3330
    %4303 = vmatpush.bf16.msra.mxu0 %v3322
    %4304 = vmatmul.bf16.gmra.mxu0 %v1058
    %v4305 = vpop.f32.mrf.mxu0
    %v4306 = vadd.f32 %v4293, %v4305
    %v4307 = vpop.f32.mrf.mxu0
    %4308 = vdwg.mxu0
    %4309 = vmatpush.bf16.msra.mxu0 %v3442
    %4310 = vmatpush.bf16.msra.mxu0 %v3434
    %4311 = vmatpush.bf16.msra.mxu0 %v3426
    %4312 = vmatpush.bf16.msra.mxu0 %v3418
    %4313 = vmatpush.bf16.msra.mxu0 %v3410
    %4314 = vmatpush.bf16.msra.mxu0 %v3402
    %4315 = vmatpush.bf16.msra.mxu0 %v3394
    %4316 = vmatpush.bf16.msra.mxu0 %v3386
    %4317 = vmatmul.bf16.gmra.mxu0 %v1059
    %v4318 = vpop.f32.mrf.mxu0
    %v4319 = vadd.f32 %v4306, %v4318
    %v4320 = vpop.f32.mrf.mxu0
    %4321 = vdwg.mxu0
    %4322 = vmatpush.bf16.msra.mxu0 %v3506
    %4323 = vmatpush.bf16.msra.mxu0 %v3498
    %4324 = vmatpush.bf16.msra.mxu0 %v3490
    %4325 = vmatpush.bf16.msra.mxu0 %v3482
    %4326 = vmatpush.bf16.msra.mxu0 %v3474
    %4327 = vmatpush.bf16.msra.mxu0 %v3466
    %4328 = vmatpush.bf16.msra.mxu0 %v3458
    %4329 = vmatpush.bf16.msra.mxu0 %v3450
    %4330 = vmatmul.bf16.gmra.mxu0 %v1060
    %v4331 = vpop.f32.mrf.mxu0
    %v4332 = vadd.f32 %v4319, %v4331
    %v4333 = vpop.f32.mrf.mxu0
    %4334 = vdwg.mxu0
    %4335 = vmatpush.bf16.msra.mxu0 %v3570
    %4336 = vmatpush.bf16.msra.mxu0 %v3562
    %4337 = vmatpush.bf16.msra.mxu0 %v3554
    %4338 = vmatpush.bf16.msra.mxu0 %v3546
    %4339 = vmatpush.bf16.msra.mxu0 %v3538
    %4340 = vmatpush.bf16.msra.mxu0 %v3530
    %4341 = vmatpush.bf16.msra.mxu0 %v3522
    %4342 = vmatpush.bf16.msra.mxu0 %v3514
    %4343 = vmatmul.bf16.gmra.mxu0 %v1061
    %v4344 = vpop.f32.mrf.mxu0
    %v4345 = vadd.f32 %v4332, %v4344
    %v4346 = vpop.f32.mrf.mxu0
    %4347 = vdwg.mxu0
    %4348 = vmatpush.bf16.msra.mxu0 %v3634
    %4349 = vmatpush.bf16.msra.mxu0 %v3626
    %4350 = vmatpush.bf16.msra.mxu0 %v3618
    %4351 = vmatpush.bf16.msra.mxu0 %v3610
    %4352 = vmatpush.bf16.msra.mxu0 %v3602
    %4353 = vmatpush.bf16.msra.mxu0 %v3594
    %4354 = vmatpush.bf16.msra.mxu0 %v3586
    %4355 = vmatpush.bf16.msra.mxu0 %v3578
    %4356 = vmatmul.bf16.gmra.mxu0 %v1062
    %v4357 = vpop.f32.mrf.mxu0
    %v4358 = vadd.f32 %v4345, %v4357
    %v4359 = vpop.f32.mrf.mxu0
    %4360 = vdwg.mxu0
    %4361 = vmatpush.bf16.msra.mxu0 %v3187
    %4362 = vmatpush.bf16.msra.mxu0 %v3179
    %4363 = vmatpush.bf16.msra.mxu0 %v3171
    %4364 = vmatpush.bf16.msra.mxu0 %v3163
    %4365 = vmatpush.bf16.msra.mxu0 %v3155
    %4366 = vmatpush.bf16.msra.mxu0 %v3147
    %4367 = vmatpush.bf16.msra.mxu0 %v3139
    %4368 = vmatpush.bf16.msra.mxu0 %v3131
    %4369 = vmatmul.bf16.gmra.mxu0 %v1055
    %v4370 = vpop.f32.mrf.mxu0
    %v4371 = vadd.f32 %v1579, %v4370
    %v4372 = vpop.f32.mrf.mxu0
    %4373 = vdwg.mxu0
    %4374 = vmatpush.bf16.msra.mxu0 %v3251
    %4375 = vmatpush.bf16.msra.mxu0 %v3243
    %4376 = vmatpush.bf16.msra.mxu0 %v3235
    %4377 = vmatpush.bf16.msra.mxu0 %v3227
    %4378 = vmatpush.bf16.msra.mxu0 %v3219
    %4379 = vmatpush.bf16.msra.mxu0 %v3211
    %4380 = vmatpush.bf16.msra.mxu0 %v3203
    %4381 = vmatpush.bf16.msra.mxu0 %v3195
    %4382 = vmatmul.bf16.gmra.mxu0 %v1056
    %v4383 = vpop.f32.mrf.mxu0
    %v4384 = vadd.f32 %v4371, %v4383
    %v4385 = vpop.f32.mrf.mxu0
    %4386 = vdwg.mxu0
    %4387 = vmatpush.bf16.msra.mxu0 %v3315
    %4388 = vmatpush.bf16.msra.mxu0 %v3307
    %4389 = vmatpush.bf16.msra.mxu0 %v3299
    %4390 = vmatpush.bf16.msra.mxu0 %v3291
    %4391 = vmatpush.bf16.msra.mxu0 %v3283
    %4392 = vmatpush.bf16.msra.mxu0 %v3275
    %4393 = vmatpush.bf16.msra.mxu0 %v3267
    %4394 = vmatpush.bf16.msra.mxu0 %v3259
    %4395 = vmatmul.bf16.gmra.mxu0 %v1057
    %v4396 = vpop.f32.mrf.mxu0
    %v4397 = vadd.f32 %v4384, %v4396
    %v4398 = vpop.f32.mrf.mxu0
    %4399 = vdwg.mxu0
    %4400 = vmatpush.bf16.msra.mxu0 %v3379
    %4401 = vmatpush.bf16.msra.mxu0 %v3371
    %4402 = vmatpush.bf16.msra.mxu0 %v3363
    %4403 = vmatpush.bf16.msra.mxu0 %v3355
    %4404 = vmatpush.bf16.msra.mxu0 %v3347
    %4405 = vmatpush.bf16.msra.mxu0 %v3339
    %4406 = vmatpush.bf16.msra.mxu0 %v3331
    %4407 = vmatpush.bf16.msra.mxu0 %v3323
    %4408 = vmatmul.bf16.gmra.mxu0 %v1058
    %v4409 = vpop.f32.mrf.mxu0
    %v4410 = vadd.f32 %v4397, %v4409
    %v4411 = vpop.f32.mrf.mxu0
    %4412 = vdwg.mxu0
    %4413 = vmatpush.bf16.msra.mxu0 %v3443
    %4414 = vmatpush.bf16.msra.mxu0 %v3435
    %4415 = vmatpush.bf16.msra.mxu0 %v3427
    %4416 = vmatpush.bf16.msra.mxu0 %v3419
    %4417 = vmatpush.bf16.msra.mxu0 %v3411
    %4418 = vmatpush.bf16.msra.mxu0 %v3403
    %4419 = vmatpush.bf16.msra.mxu0 %v3395
    %4420 = vmatpush.bf16.msra.mxu0 %v3387
    %4421 = vmatmul.bf16.gmra.mxu0 %v1059
    %v4422 = vpop.f32.mrf.mxu0
    %v4423 = vadd.f32 %v4410, %v4422
    %v4424 = vpop.f32.mrf.mxu0
    %4425 = vdwg.mxu0
    %4426 = vmatpush.bf16.msra.mxu0 %v3507
    %4427 = vmatpush.bf16.msra.mxu0 %v3499
    %4428 = vmatpush.bf16.msra.mxu0 %v3491
    %4429 = vmatpush.bf16.msra.mxu0 %v3483
    %4430 = vmatpush.bf16.msra.mxu0 %v3475
    %4431 = vmatpush.bf16.msra.mxu0 %v3467
    %4432 = vmatpush.bf16.msra.mxu0 %v3459
    %4433 = vmatpush.bf16.msra.mxu0 %v3451
    %4434 = vmatmul.bf16.gmra.mxu0 %v1060
    %v4435 = vpop.f32.mrf.mxu0
    %v4436 = vadd.f32 %v4423, %v4435
    %v4437 = vpop.f32.mrf.mxu0
    %4438 = vdwg.mxu0
    %4439 = vmatpush.bf16.msra.mxu0 %v3571
    %4440 = vmatpush.bf16.msra.mxu0 %v3563
    %4441 = vmatpush.bf16.msra.mxu0 %v3555
    %4442 = vmatpush.bf16.msra.mxu0 %v3547
    %4443 = vmatpush.bf16.msra.mxu0 %v3539
    %4444 = vmatpush.bf16.msra.mxu0 %v3531
    %4445 = vmatpush.bf16.msra.mxu0 %v3523
    %4446 = vmatpush.bf16.msra.mxu0 %v3515
    %4447 = vmatmul.bf16.gmra.mxu0 %v1061
    %v4448 = vpop.f32.mrf.mxu0
    %v4449 = vadd.f32 %v4436, %v4448
    %v4450 = vpop.f32.mrf.mxu0
    %4451 = vdwg.mxu0
    %4452 = vmatpush.bf16.msra.mxu0 %v3635
    %4453 = vmatpush.bf16.msra.mxu0 %v3627
    %4454 = vmatpush.bf16.msra.mxu0 %v3619
    %4455 = vmatpush.bf16.msra.mxu0 %v3611
    %4456 = vmatpush.bf16.msra.mxu0 %v3603
    %4457 = vmatpush.bf16.msra.mxu0 %v3595
    %4458 = vmatpush.bf16.msra.mxu0 %v3587
    %4459 = vmatpush.bf16.msra.mxu0 %v3579
    %4460 = vmatmul.bf16.gmra.mxu0 %v1062
    %v4461 = vpop.f32.mrf.mxu0
    %v4462 = vadd.f32 %v4449, %v4461
    %v4463 = vpop.f32.mrf.mxu0
    %4464 = vdwg.mxu0
    %4465 = vmatpush.bf16.msra.mxu0 %v3188
    %4466 = vmatpush.bf16.msra.mxu0 %v3180
    %4467 = vmatpush.bf16.msra.mxu0 %v3172
    %4468 = vmatpush.bf16.msra.mxu0 %v3164
    %4469 = vmatpush.bf16.msra.mxu0 %v3156
    %4470 = vmatpush.bf16.msra.mxu0 %v3148
    %4471 = vmatpush.bf16.msra.mxu0 %v3140
    %4472 = vmatpush.bf16.msra.mxu0 %v3132
    %4473 = vmatmul.bf16.gmra.mxu0 %v1055
    %v4474 = vpop.f32.mrf.mxu0
    %v4475 = vadd.f32 %v1580, %v4474
    %v4476 = vpop.f32.mrf.mxu0
    %4477 = vdwg.mxu0
    %4478 = vmatpush.bf16.msra.mxu0 %v3252
    %4479 = vmatpush.bf16.msra.mxu0 %v3244
    %4480 = vmatpush.bf16.msra.mxu0 %v3236
    %4481 = vmatpush.bf16.msra.mxu0 %v3228
    %4482 = vmatpush.bf16.msra.mxu0 %v3220
    %4483 = vmatpush.bf16.msra.mxu0 %v3212
    %4484 = vmatpush.bf16.msra.mxu0 %v3204
    %4485 = vmatpush.bf16.msra.mxu0 %v3196
    %4486 = vmatmul.bf16.gmra.mxu0 %v1056
    %v4487 = vpop.f32.mrf.mxu0
    %v4488 = vadd.f32 %v4475, %v4487
    %v4489 = vpop.f32.mrf.mxu0
    %4490 = vdwg.mxu0
    %4491 = vmatpush.bf16.msra.mxu0 %v3316
    %4492 = vmatpush.bf16.msra.mxu0 %v3308
    %4493 = vmatpush.bf16.msra.mxu0 %v3300
    %4494 = vmatpush.bf16.msra.mxu0 %v3292
    %4495 = vmatpush.bf16.msra.mxu0 %v3284
    %4496 = vmatpush.bf16.msra.mxu0 %v3276
    %4497 = vmatpush.bf16.msra.mxu0 %v3268
    %4498 = vmatpush.bf16.msra.mxu0 %v3260
    %4499 = vmatmul.bf16.gmra.mxu0 %v1057
    %v4500 = vpop.f32.mrf.mxu0
    %v4501 = vadd.f32 %v4488, %v4500
    %v4502 = vpop.f32.mrf.mxu0
    %4503 = vdwg.mxu0
    %4504 = vmatpush.bf16.msra.mxu0 %v3380
    %4505 = vmatpush.bf16.msra.mxu0 %v3372
    %4506 = vmatpush.bf16.msra.mxu0 %v3364
    %4507 = vmatpush.bf16.msra.mxu0 %v3356
    %4508 = vmatpush.bf16.msra.mxu0 %v3348
    %4509 = vmatpush.bf16.msra.mxu0 %v3340
    %4510 = vmatpush.bf16.msra.mxu0 %v3332
    %4511 = vmatpush.bf16.msra.mxu0 %v3324
    %4512 = vmatmul.bf16.gmra.mxu0 %v1058
    %v4513 = vpop.f32.mrf.mxu0
    %v4514 = vadd.f32 %v4501, %v4513
    %v4515 = vpop.f32.mrf.mxu0
    %4516 = vdwg.mxu0
    %4517 = vmatpush.bf16.msra.mxu0 %v3444
    %4518 = vmatpush.bf16.msra.mxu0 %v3436
    %4519 = vmatpush.bf16.msra.mxu0 %v3428
    %4520 = vmatpush.bf16.msra.mxu0 %v3420
    %4521 = vmatpush.bf16.msra.mxu0 %v3412
    %4522 = vmatpush.bf16.msra.mxu0 %v3404
    %4523 = vmatpush.bf16.msra.mxu0 %v3396
    %4524 = vmatpush.bf16.msra.mxu0 %v3388
    %4525 = vmatmul.bf16.gmra.mxu0 %v1059
    %v4526 = vpop.f32.mrf.mxu0
    %v4527 = vadd.f32 %v4514, %v4526
    %v4528 = vpop.f32.mrf.mxu0
    %4529 = vdwg.mxu0
    %4530 = vmatpush.bf16.msra.mxu0 %v3508
    %4531 = vmatpush.bf16.msra.mxu0 %v3500
    %4532 = vmatpush.bf16.msra.mxu0 %v3492
    %4533 = vmatpush.bf16.msra.mxu0 %v3484
    %4534 = vmatpush.bf16.msra.mxu0 %v3476
    %4535 = vmatpush.bf16.msra.mxu0 %v3468
    %4536 = vmatpush.bf16.msra.mxu0 %v3460
    %4537 = vmatpush.bf16.msra.mxu0 %v3452
    %4538 = vmatmul.bf16.gmra.mxu0 %v1060
    %v4539 = vpop.f32.mrf.mxu0
    %v4540 = vadd.f32 %v4527, %v4539
    %v4541 = vpop.f32.mrf.mxu0
    %4542 = vdwg.mxu0
    %4543 = vmatpush.bf16.msra.mxu0 %v3572
    %4544 = vmatpush.bf16.msra.mxu0 %v3564
    %4545 = vmatpush.bf16.msra.mxu0 %v3556
    %4546 = vmatpush.bf16.msra.mxu0 %v3548
    %4547 = vmatpush.bf16.msra.mxu0 %v3540
    %4548 = vmatpush.bf16.msra.mxu0 %v3532
    %4549 = vmatpush.bf16.msra.mxu0 %v3524
    %4550 = vmatpush.bf16.msra.mxu0 %v3516
    %4551 = vmatmul.bf16.gmra.mxu0 %v1061
    %v4552 = vpop.f32.mrf.mxu0
    %v4553 = vadd.f32 %v4540, %v4552
    %v4554 = vpop.f32.mrf.mxu0
    %4555 = vdwg.mxu0
    %4556 = vmatpush.bf16.msra.mxu0 %v3636
    %4557 = vmatpush.bf16.msra.mxu0 %v3628
    %4558 = vmatpush.bf16.msra.mxu0 %v3620
    %4559 = vmatpush.bf16.msra.mxu0 %v3612
    %4560 = vmatpush.bf16.msra.mxu0 %v3604
    %4561 = vmatpush.bf16.msra.mxu0 %v3596
    %4562 = vmatpush.bf16.msra.mxu0 %v3588
    %4563 = vmatpush.bf16.msra.mxu0 %v3580
    %4564 = vmatmul.bf16.gmra.mxu0 %v1062
    %v4565 = vpop.f32.mrf.mxu0
    %v4566 = vadd.f32 %v4553, %v4565
    %v4567 = vpop.f32.mrf.mxu0
    %4568 = vdwg.mxu0
    %4569 = vmatpush.bf16.msra.mxu0 %v3189
    %4570 = vmatpush.bf16.msra.mxu0 %v3181
    %4571 = vmatpush.bf16.msra.mxu0 %v3173
    %4572 = vmatpush.bf16.msra.mxu0 %v3165
    %4573 = vmatpush.bf16.msra.mxu0 %v3157
    %4574 = vmatpush.bf16.msra.mxu0 %v3149
    %4575 = vmatpush.bf16.msra.mxu0 %v3141
    %4576 = vmatpush.bf16.msra.mxu0 %v3133
    %4577 = vmatmul.bf16.gmra.mxu0 %v1055
    %v4578 = vpop.f32.mrf.mxu0
    %v4579 = vadd.f32 %v1581, %v4578
    %v4580 = vpop.f32.mrf.mxu0
    %4581 = vdwg.mxu0
    %4582 = vmatpush.bf16.msra.mxu0 %v3253
    %4583 = vmatpush.bf16.msra.mxu0 %v3245
    %4584 = vmatpush.bf16.msra.mxu0 %v3237
    %4585 = vmatpush.bf16.msra.mxu0 %v3229
    %4586 = vmatpush.bf16.msra.mxu0 %v3221
    %4587 = vmatpush.bf16.msra.mxu0 %v3213
    %4588 = vmatpush.bf16.msra.mxu0 %v3205
    %4589 = vmatpush.bf16.msra.mxu0 %v3197
    %4590 = vmatmul.bf16.gmra.mxu0 %v1056
    %v4591 = vpop.f32.mrf.mxu0
    %v4592 = vadd.f32 %v4579, %v4591
    %v4593 = vpop.f32.mrf.mxu0
    %4594 = vdwg.mxu0
    %4595 = vmatpush.bf16.msra.mxu0 %v3317
    %4596 = vmatpush.bf16.msra.mxu0 %v3309
    %4597 = vmatpush.bf16.msra.mxu0 %v3301
    %4598 = vmatpush.bf16.msra.mxu0 %v3293
    %4599 = vmatpush.bf16.msra.mxu0 %v3285
    %4600 = vmatpush.bf16.msra.mxu0 %v3277
    %4601 = vmatpush.bf16.msra.mxu0 %v3269
    %4602 = vmatpush.bf16.msra.mxu0 %v3261
    %4603 = vmatmul.bf16.gmra.mxu0 %v1057
    %v4604 = vpop.f32.mrf.mxu0
    %v4605 = vadd.f32 %v4592, %v4604
    %v4606 = vpop.f32.mrf.mxu0
    %4607 = vdwg.mxu0
    %4608 = vmatpush.bf16.msra.mxu0 %v3381
    %4609 = vmatpush.bf16.msra.mxu0 %v3373
    %4610 = vmatpush.bf16.msra.mxu0 %v3365
    %4611 = vmatpush.bf16.msra.mxu0 %v3357
    %4612 = vmatpush.bf16.msra.mxu0 %v3349
    %4613 = vmatpush.bf16.msra.mxu0 %v3341
    %4614 = vmatpush.bf16.msra.mxu0 %v3333
    %4615 = vmatpush.bf16.msra.mxu0 %v3325
    %4616 = vmatmul.bf16.gmra.mxu0 %v1058
    %v4617 = vpop.f32.mrf.mxu0
    %v4618 = vadd.f32 %v4605, %v4617
    %v4619 = vpop.f32.mrf.mxu0
    %4620 = vdwg.mxu0
    %4621 = vmatpush.bf16.msra.mxu0 %v3445
    %4622 = vmatpush.bf16.msra.mxu0 %v3437
    %4623 = vmatpush.bf16.msra.mxu0 %v3429
    %4624 = vmatpush.bf16.msra.mxu0 %v3421
    %4625 = vmatpush.bf16.msra.mxu0 %v3413
    %4626 = vmatpush.bf16.msra.mxu0 %v3405
    %4627 = vmatpush.bf16.msra.mxu0 %v3397
    %4628 = vmatpush.bf16.msra.mxu0 %v3389
    %4629 = vmatmul.bf16.gmra.mxu0 %v1059
    %v4630 = vpop.f32.mrf.mxu0
    %v4631 = vadd.f32 %v4618, %v4630
    %v4632 = vpop.f32.mrf.mxu0
    %4633 = vdwg.mxu0
    %4634 = vmatpush.bf16.msra.mxu0 %v3509
    %4635 = vmatpush.bf16.msra.mxu0 %v3501
    %4636 = vmatpush.bf16.msra.mxu0 %v3493
    %4637 = vmatpush.bf16.msra.mxu0 %v3485
    %4638 = vmatpush.bf16.msra.mxu0 %v3477
    %4639 = vmatpush.bf16.msra.mxu0 %v3469
    %4640 = vmatpush.bf16.msra.mxu0 %v3461
    %4641 = vmatpush.bf16.msra.mxu0 %v3453
    %4642 = vmatmul.bf16.gmra.mxu0 %v1060
    %v4643 = vpop.f32.mrf.mxu0
    %v4644 = vadd.f32 %v4631, %v4643
    %v4645 = vpop.f32.mrf.mxu0
    %4646 = vdwg.mxu0
    %4647 = vmatpush.bf16.msra.mxu0 %v3573
    %4648 = vmatpush.bf16.msra.mxu0 %v3565
    %4649 = vmatpush.bf16.msra.mxu0 %v3557
    %4650 = vmatpush.bf16.msra.mxu0 %v3549
    %4651 = vmatpush.bf16.msra.mxu0 %v3541
    %4652 = vmatpush.bf16.msra.mxu0 %v3533
    %4653 = vmatpush.bf16.msra.mxu0 %v3525
    %4654 = vmatpush.bf16.msra.mxu0 %v3517
    %4655 = vmatmul.bf16.gmra.mxu0 %v1061
    %v4656 = vpop.f32.mrf.mxu0
    %v4657 = vadd.f32 %v4644, %v4656
    %v4658 = vpop.f32.mrf.mxu0
    %4659 = vdwg.mxu0
    %4660 = vmatpush.bf16.msra.mxu0 %v3637
    %4661 = vmatpush.bf16.msra.mxu0 %v3629
    %4662 = vmatpush.bf16.msra.mxu0 %v3621
    %4663 = vmatpush.bf16.msra.mxu0 %v3613
    %4664 = vmatpush.bf16.msra.mxu0 %v3605
    %4665 = vmatpush.bf16.msra.mxu0 %v3597
    %4666 = vmatpush.bf16.msra.mxu0 %v3589
    %4667 = vmatpush.bf16.msra.mxu0 %v3581
    %4668 = vmatmul.bf16.gmra.mxu0 %v1062
    %v4669 = vpop.f32.mrf.mxu0
    %v4670 = vadd.f32 %v4657, %v4669
    %v4671 = vpop.f32.mrf.mxu0
    %4672 = vdwg.mxu0
    %4673 = vmatpush.bf16.msra.mxu0 %v3190
    %4674 = vmatpush.bf16.msra.mxu0 %v3182
    %4675 = vmatpush.bf16.msra.mxu0 %v3174
    %4676 = vmatpush.bf16.msra.mxu0 %v3166
    %4677 = vmatpush.bf16.msra.mxu0 %v3158
    %4678 = vmatpush.bf16.msra.mxu0 %v3150
    %4679 = vmatpush.bf16.msra.mxu0 %v3142
    %4680 = vmatpush.bf16.msra.mxu0 %v3134
    %4681 = vmatmul.bf16.gmra.mxu0 %v1055
    %v4682 = vpop.f32.mrf.mxu0
    %v4683 = vadd.f32 %v1582, %v4682
    %v4684 = vpop.f32.mrf.mxu0
    %4685 = vdwg.mxu0
    %4686 = vmatpush.bf16.msra.mxu0 %v3254
    %4687 = vmatpush.bf16.msra.mxu0 %v3246
    %4688 = vmatpush.bf16.msra.mxu0 %v3238
    %4689 = vmatpush.bf16.msra.mxu0 %v3230
    %4690 = vmatpush.bf16.msra.mxu0 %v3222
    %4691 = vmatpush.bf16.msra.mxu0 %v3214
    %4692 = vmatpush.bf16.msra.mxu0 %v3206
    %4693 = vmatpush.bf16.msra.mxu0 %v3198
    %4694 = vmatmul.bf16.gmra.mxu0 %v1056
    %v4695 = vpop.f32.mrf.mxu0
    %v4696 = vadd.f32 %v4683, %v4695
    %v4697 = vpop.f32.mrf.mxu0
    %4698 = vdwg.mxu0
    %4699 = vmatpush.bf16.msra.mxu0 %v3318
    %4700 = vmatpush.bf16.msra.mxu0 %v3310
    %4701 = vmatpush.bf16.msra.mxu0 %v3302
    %4702 = vmatpush.bf16.msra.mxu0 %v3294
    %4703 = vmatpush.bf16.msra.mxu0 %v3286
    %4704 = vmatpush.bf16.msra.mxu0 %v3278
    %4705 = vmatpush.bf16.msra.mxu0 %v3270
    %4706 = vmatpush.bf16.msra.mxu0 %v3262
    %4707 = vmatmul.bf16.gmra.mxu0 %v1057
    %v4708 = vpop.f32.mrf.mxu0
    %v4709 = vadd.f32 %v4696, %v4708
    %v4710 = vpop.f32.mrf.mxu0
    %4711 = vdwg.mxu0
    %4712 = vmatpush.bf16.msra.mxu0 %v3382
    %4713 = vmatpush.bf16.msra.mxu0 %v3374
    %4714 = vmatpush.bf16.msra.mxu0 %v3366
    %4715 = vmatpush.bf16.msra.mxu0 %v3358
    %4716 = vmatpush.bf16.msra.mxu0 %v3350
    %4717 = vmatpush.bf16.msra.mxu0 %v3342
    %4718 = vmatpush.bf16.msra.mxu0 %v3334
    %4719 = vmatpush.bf16.msra.mxu0 %v3326
    %4720 = vmatmul.bf16.gmra.mxu0 %v1058
    %v4721 = vpop.f32.mrf.mxu0
    %v4722 = vadd.f32 %v4709, %v4721
    %v4723 = vpop.f32.mrf.mxu0
    %4724 = vdwg.mxu0
    %4725 = vmatpush.bf16.msra.mxu0 %v3446
    %4726 = vmatpush.bf16.msra.mxu0 %v3438
    %4727 = vmatpush.bf16.msra.mxu0 %v3430
    %4728 = vmatpush.bf16.msra.mxu0 %v3422
    %4729 = vmatpush.bf16.msra.mxu0 %v3414
    %4730 = vmatpush.bf16.msra.mxu0 %v3406
    %4731 = vmatpush.bf16.msra.mxu0 %v3398
    %4732 = vmatpush.bf16.msra.mxu0 %v3390
    %4733 = vmatmul.bf16.gmra.mxu0 %v1059
    %v4734 = vpop.f32.mrf.mxu0
    %v4735 = vadd.f32 %v4722, %v4734
    %v4736 = vpop.f32.mrf.mxu0
    %4737 = vdwg.mxu0
    %4738 = vmatpush.bf16.msra.mxu0 %v3510
    %4739 = vmatpush.bf16.msra.mxu0 %v3502
    %4740 = vmatpush.bf16.msra.mxu0 %v3494
    %4741 = vmatpush.bf16.msra.mxu0 %v3486
    %4742 = vmatpush.bf16.msra.mxu0 %v3478
    %4743 = vmatpush.bf16.msra.mxu0 %v3470
    %4744 = vmatpush.bf16.msra.mxu0 %v3462
    %4745 = vmatpush.bf16.msra.mxu0 %v3454
    %4746 = vmatmul.bf16.gmra.mxu0 %v1060
    %v4747 = vpop.f32.mrf.mxu0
    %v4748 = vadd.f32 %v4735, %v4747
    %v4749 = vpop.f32.mrf.mxu0
    %4750 = vdwg.mxu0
    %4751 = vmatpush.bf16.msra.mxu0 %v3574
    %4752 = vmatpush.bf16.msra.mxu0 %v3566
    %4753 = vmatpush.bf16.msra.mxu0 %v3558
    %4754 = vmatpush.bf16.msra.mxu0 %v3550
    %4755 = vmatpush.bf16.msra.mxu0 %v3542
    %4756 = vmatpush.bf16.msra.mxu0 %v3534
    %4757 = vmatpush.bf16.msra.mxu0 %v3526
    %4758 = vmatpush.bf16.msra.mxu0 %v3518
    %4759 = vmatmul.bf16.gmra.mxu0 %v1061
    %v4760 = vpop.f32.mrf.mxu0
    %v4761 = vadd.f32 %v4748, %v4760
    %v4762 = vpop.f32.mrf.mxu0
    %4763 = vdwg.mxu0
    %4764 = vmatpush.bf16.msra.mxu0 %v3638
    %4765 = vmatpush.bf16.msra.mxu0 %v3630
    %4766 = vmatpush.bf16.msra.mxu0 %v3622
    %4767 = vmatpush.bf16.msra.mxu0 %v3614
    %4768 = vmatpush.bf16.msra.mxu0 %v3606
    %4769 = vmatpush.bf16.msra.mxu0 %v3598
    %4770 = vmatpush.bf16.msra.mxu0 %v3590
    %4771 = vmatpush.bf16.msra.mxu0 %v3582
    %4772 = vmatmul.bf16.gmra.mxu0 %v1062
    %v4773 = vpop.f32.mrf.mxu0
    %v4774 = vadd.f32 %v4761, %v4773
    %v4775 = vpop.f32.mrf.mxu0
    %4776 = vdwg.mxu0
    %4777 = vmatpush.bf16.msra.mxu0 %v3191
    %4778 = vmatpush.bf16.msra.mxu0 %v3183
    %4779 = vmatpush.bf16.msra.mxu0 %v3175
    %4780 = vmatpush.bf16.msra.mxu0 %v3167
    %4781 = vmatpush.bf16.msra.mxu0 %v3159
    %4782 = vmatpush.bf16.msra.mxu0 %v3151
    %4783 = vmatpush.bf16.msra.mxu0 %v3143
    %4784 = vmatpush.bf16.msra.mxu0 %v3135
    %4785 = vmatmul.bf16.gmra.mxu0 %v1055
    %v4786 = vpop.f32.mrf.mxu0
    %v4787 = vadd.f32 %v1583, %v4786
    %v4788 = vpop.f32.mrf.mxu0
    %4789 = vdwg.mxu0
    %4790 = vmatpush.bf16.msra.mxu0 %v3255
    %4791 = vmatpush.bf16.msra.mxu0 %v3247
    %4792 = vmatpush.bf16.msra.mxu0 %v3239
    %4793 = vmatpush.bf16.msra.mxu0 %v3231
    %4794 = vmatpush.bf16.msra.mxu0 %v3223
    %4795 = vmatpush.bf16.msra.mxu0 %v3215
    %4796 = vmatpush.bf16.msra.mxu0 %v3207
    %4797 = vmatpush.bf16.msra.mxu0 %v3199
    %4798 = vmatmul.bf16.gmra.mxu0 %v1056
    %v4799 = vpop.f32.mrf.mxu0
    %v4800 = vadd.f32 %v4787, %v4799
    %v4801 = vpop.f32.mrf.mxu0
    %4802 = vdwg.mxu0
    %4803 = vmatpush.bf16.msra.mxu0 %v3319
    %4804 = vmatpush.bf16.msra.mxu0 %v3311
    %4805 = vmatpush.bf16.msra.mxu0 %v3303
    %4806 = vmatpush.bf16.msra.mxu0 %v3295
    %4807 = vmatpush.bf16.msra.mxu0 %v3287
    %4808 = vmatpush.bf16.msra.mxu0 %v3279
    %4809 = vmatpush.bf16.msra.mxu0 %v3271
    %4810 = vmatpush.bf16.msra.mxu0 %v3263
    %4811 = vmatmul.bf16.gmra.mxu0 %v1057
    %v4812 = vpop.f32.mrf.mxu0
    %v4813 = vadd.f32 %v4800, %v4812
    %v4814 = vpop.f32.mrf.mxu0
    %4815 = vdwg.mxu0
    %4816 = vmatpush.bf16.msra.mxu0 %v3383
    %4817 = vmatpush.bf16.msra.mxu0 %v3375
    %4818 = vmatpush.bf16.msra.mxu0 %v3367
    %4819 = vmatpush.bf16.msra.mxu0 %v3359
    %4820 = vmatpush.bf16.msra.mxu0 %v3351
    %4821 = vmatpush.bf16.msra.mxu0 %v3343
    %4822 = vmatpush.bf16.msra.mxu0 %v3335
    %4823 = vmatpush.bf16.msra.mxu0 %v3327
    %4824 = vmatmul.bf16.gmra.mxu0 %v1058
    %v4825 = vpop.f32.mrf.mxu0
    %v4826 = vadd.f32 %v4813, %v4825
    %v4827 = vpop.f32.mrf.mxu0
    %4828 = vdwg.mxu0
    %4829 = vmatpush.bf16.msra.mxu0 %v3447
    %4830 = vmatpush.bf16.msra.mxu0 %v3439
    %4831 = vmatpush.bf16.msra.mxu0 %v3431
    %4832 = vmatpush.bf16.msra.mxu0 %v3423
    %4833 = vmatpush.bf16.msra.mxu0 %v3415
    %4834 = vmatpush.bf16.msra.mxu0 %v3407
    %4835 = vmatpush.bf16.msra.mxu0 %v3399
    %4836 = vmatpush.bf16.msra.mxu0 %v3391
    %4837 = vmatmul.bf16.gmra.mxu0 %v1059
    %v4838 = vpop.f32.mrf.mxu0
    %v4839 = vadd.f32 %v4826, %v4838
    %v4840 = vpop.f32.mrf.mxu0
    %4841 = vdwg.mxu0
    %4842 = vmatpush.bf16.msra.mxu0 %v3511
    %4843 = vmatpush.bf16.msra.mxu0 %v3503
    %4844 = vmatpush.bf16.msra.mxu0 %v3495
    %4845 = vmatpush.bf16.msra.mxu0 %v3487
    %4846 = vmatpush.bf16.msra.mxu0 %v3479
    %4847 = vmatpush.bf16.msra.mxu0 %v3471
    %4848 = vmatpush.bf16.msra.mxu0 %v3463
    %4849 = vmatpush.bf16.msra.mxu0 %v3455
    %4850 = vmatmul.bf16.gmra.mxu0 %v1060
    %v4851 = vpop.f32.mrf.mxu0
    %v4852 = vadd.f32 %v4839, %v4851
    %v4853 = vpop.f32.mrf.mxu0
    %4854 = vdwg.mxu0
    %4855 = vmatpush.bf16.msra.mxu0 %v3575
    %4856 = vmatpush.bf16.msra.mxu0 %v3567
    %4857 = vmatpush.bf16.msra.mxu0 %v3559
    %4858 = vmatpush.bf16.msra.mxu0 %v3551
    %4859 = vmatpush.bf16.msra.mxu0 %v3543
    %4860 = vmatpush.bf16.msra.mxu0 %v3535
    %4861 = vmatpush.bf16.msra.mxu0 %v3527
    %4862 = vmatpush.bf16.msra.mxu0 %v3519
    %4863 = vmatmul.bf16.gmra.mxu0 %v1061
    %v4864 = vpop.f32.mrf.mxu0
    %v4865 = vadd.f32 %v4852, %v4864
    %v4866 = vpop.f32.mrf.mxu0
    %4867 = vdwg.mxu0
    %4868 = vmatpush.bf16.msra.mxu0 %v3639
    %4869 = vmatpush.bf16.msra.mxu0 %v3631
    %4870 = vmatpush.bf16.msra.mxu0 %v3623
    %4871 = vmatpush.bf16.msra.mxu0 %v3615
    %4872 = vmatpush.bf16.msra.mxu0 %v3607
    %4873 = vmatpush.bf16.msra.mxu0 %v3599
    %4874 = vmatpush.bf16.msra.mxu0 %v3591
    %4875 = vmatpush.bf16.msra.mxu0 %v3583
    %4876 = vmatmul.bf16.gmra.mxu0 %v1062
    %v4877 = vpop.f32.mrf.mxu0
    %v4878 = vadd.f32 %v4865, %v4877
    %v4879 = vpop.f32.mrf.mxu0
    %4880 = vdwg.mxu0
    %4881 = vmatpush.bf16.msra.mxu0 %v3192
    %4882 = vmatpush.bf16.msra.mxu0 %v3184
    %4883 = vmatpush.bf16.msra.mxu0 %v3176
    %4884 = vmatpush.bf16.msra.mxu0 %v3168
    %4885 = vmatpush.bf16.msra.mxu0 %v3160
    %4886 = vmatpush.bf16.msra.mxu0 %v3152
    %4887 = vmatpush.bf16.msra.mxu0 %v3144
    %4888 = vmatpush.bf16.msra.mxu0 %v3136
    %4889 = vmatmul.bf16.gmra.mxu0 %v1055
    %v4890 = vpop.f32.mrf.mxu0
    %v4891 = vadd.f32 %v1584, %v4890
    %v4892 = vpop.f32.mrf.mxu0
    %4893 = vdwg.mxu0
    %4894 = vmatpush.bf16.msra.mxu0 %v3256
    %4895 = vmatpush.bf16.msra.mxu0 %v3248
    %4896 = vmatpush.bf16.msra.mxu0 %v3240
    %4897 = vmatpush.bf16.msra.mxu0 %v3232
    %4898 = vmatpush.bf16.msra.mxu0 %v3224
    %4899 = vmatpush.bf16.msra.mxu0 %v3216
    %4900 = vmatpush.bf16.msra.mxu0 %v3208
    %4901 = vmatpush.bf16.msra.mxu0 %v3200
    %4902 = vmatmul.bf16.gmra.mxu0 %v1056
    %v4903 = vpop.f32.mrf.mxu0
    %v4904 = vadd.f32 %v4891, %v4903
    %v4905 = vpop.f32.mrf.mxu0
    %4906 = vdwg.mxu0
    %4907 = vmatpush.bf16.msra.mxu0 %v3320
    %4908 = vmatpush.bf16.msra.mxu0 %v3312
    %4909 = vmatpush.bf16.msra.mxu0 %v3304
    %4910 = vmatpush.bf16.msra.mxu0 %v3296
    %4911 = vmatpush.bf16.msra.mxu0 %v3288
    %4912 = vmatpush.bf16.msra.mxu0 %v3280
    %4913 = vmatpush.bf16.msra.mxu0 %v3272
    %4914 = vmatpush.bf16.msra.mxu0 %v3264
    %4915 = vmatmul.bf16.gmra.mxu0 %v1057
    %v4916 = vpop.f32.mrf.mxu0
    %v4917 = vadd.f32 %v4904, %v4916
    %v4918 = vpop.f32.mrf.mxu0
    %4919 = vdwg.mxu0
    %4920 = vmatpush.bf16.msra.mxu0 %v3384
    %4921 = vmatpush.bf16.msra.mxu0 %v3376
    %4922 = vmatpush.bf16.msra.mxu0 %v3368
    %4923 = vmatpush.bf16.msra.mxu0 %v3360
    %4924 = vmatpush.bf16.msra.mxu0 %v3352
    %4925 = vmatpush.bf16.msra.mxu0 %v3344
    %4926 = vmatpush.bf16.msra.mxu0 %v3336
    %4927 = vmatpush.bf16.msra.mxu0 %v3328
    %4928 = vmatmul.bf16.gmra.mxu0 %v1058
    %v4929 = vpop.f32.mrf.mxu0
    %v4930 = vadd.f32 %v4917, %v4929
    %v4931 = vpop.f32.mrf.mxu0
    %4932 = vdwg.mxu0
    %4933 = vmatpush.bf16.msra.mxu0 %v3448
    %4934 = vmatpush.bf16.msra.mxu0 %v3440
    %4935 = vmatpush.bf16.msra.mxu0 %v3432
    %4936 = vmatpush.bf16.msra.mxu0 %v3424
    %4937 = vmatpush.bf16.msra.mxu0 %v3416
    %4938 = vmatpush.bf16.msra.mxu0 %v3408
    %4939 = vmatpush.bf16.msra.mxu0 %v3400
    %4940 = vmatpush.bf16.msra.mxu0 %v3392
    %4941 = vmatmul.bf16.gmra.mxu0 %v1059
    %v4942 = vpop.f32.mrf.mxu0
    %v4943 = vadd.f32 %v4930, %v4942
    %v4944 = vpop.f32.mrf.mxu0
    %4945 = vdwg.mxu0
    %4946 = vmatpush.bf16.msra.mxu0 %v3512
    %4947 = vmatpush.bf16.msra.mxu0 %v3504
    %4948 = vmatpush.bf16.msra.mxu0 %v3496
    %4949 = vmatpush.bf16.msra.mxu0 %v3488
    %4950 = vmatpush.bf16.msra.mxu0 %v3480
    %4951 = vmatpush.bf16.msra.mxu0 %v3472
    %4952 = vmatpush.bf16.msra.mxu0 %v3464
    %4953 = vmatpush.bf16.msra.mxu0 %v3456
    %4954 = vmatmul.bf16.gmra.mxu0 %v1060
    %v4955 = vpop.f32.mrf.mxu0
    %v4956 = vadd.f32 %v4943, %v4955
    %v4957 = vpop.f32.mrf.mxu0
    %4958 = vdwg.mxu0
    %4959 = vmatpush.bf16.msra.mxu0 %v3576
    %4960 = vmatpush.bf16.msra.mxu0 %v3568
    %4961 = vmatpush.bf16.msra.mxu0 %v3560
    %4962 = vmatpush.bf16.msra.mxu0 %v3552
    %4963 = vmatpush.bf16.msra.mxu0 %v3544
    %4964 = vmatpush.bf16.msra.mxu0 %v3536
    %4965 = vmatpush.bf16.msra.mxu0 %v3528
    %4966 = vmatpush.bf16.msra.mxu0 %v3520
    %4967 = vmatmul.bf16.gmra.mxu0 %v1061
    %v4968 = vpop.f32.mrf.mxu0
    %v4969 = vadd.f32 %v4956, %v4968
    %v4970 = vpop.f32.mrf.mxu0
    %4971 = vdwg.mxu0
    %4972 = vmatpush.bf16.msra.mxu0 %v3640
    %4973 = vmatpush.bf16.msra.mxu0 %v3632
    %4974 = vmatpush.bf16.msra.mxu0 %v3624
    %4975 = vmatpush.bf16.msra.mxu0 %v3616
    %4976 = vmatpush.bf16.msra.mxu0 %v3608
    %4977 = vmatpush.bf16.msra.mxu0 %v3600
    %4978 = vmatpush.bf16.msra.mxu0 %v3592
    %4979 = vmatpush.bf16.msra.mxu0 %v3584
    %4980 = vmatmul.bf16.gmra.mxu0 %v1062
    %v4981 = vpop.f32.mrf.mxu0
    %v4982 = vadd.f32 %v4969, %v4981
    %v4983 = vpop.f32.mrf.mxu0
    %4984 = vdwg.mxu0
    %v4985 = vmax.f32 %v4254, 0.0
    %v4986 = vmax.f32 %v4358, 0.0
    %v4987 = vmax.f32 %v4462, 0.0
    %v4988 = vmax.f32 %v4566, 0.0
    %v4989 = vmax.f32 %v4670, 0.0
    %v4990 = vmax.f32 %v4774, 0.0
    %v4991 = vmax.f32 %v4878, 0.0
    %v4992 = vmax.f32 %v4982, 0.0
    %v4993 = vpack.c.bf16 %v4985, %v4985
    %v4994 = vpack.c.bf16 %v4986, %v4986
    %v4995 = vpack.c.bf16 %v4987, %v4987
    %v4996 = vpack.c.bf16 %v4988, %v4988
    %v4997 = vpack.c.bf16 %v4989, %v4989
    %v4998 = vpack.c.bf16 %v4990, %v4990
    %v4999 = vpack.c.bf16 %v4991, %v4991
    %v5000 = vpack.c.bf16 %v4992, %v4992
    %v5001 = vld [vmem:[#allocation6] sm:$0xff]
    %v5002 = vld [vmem:[#allocation6 + $0x8] sm:$0xff]
    %v5003 = vld [vmem:[#allocation6 + $0x10] sm:$0xff]
    %v5004 = vld [vmem:[#allocation6 + $0x18] sm:$0xff]
    %v5005 = vld [vmem:[#allocation6 + $0x20] sm:$0xff]
    %v5006 = vld [vmem:[#allocation6 + $0x28] sm:$0xff]
    %v5007 = vld [vmem:[#allocation6 + $0x30] sm:$0xff]
    %v5008 = vld [vmem:[#allocation6 + $0x38] sm:$0xff]
    %v5009 = vld [vmem:[#allocation6 + $0x40] sm:$0xff]
    %v5010 = vld [vmem:[#allocation6 + $0x48] sm:$0xff]
    %v5011 = vld [vmem:[#allocation6 + $0x50] sm:$0xff]
    %v5012 = vld [vmem:[#allocation6 + $0x58] sm:$0xff]
    %v5013 = vld [vmem:[#allocation6 + $0x60] sm:$0xff]
    %v5014 = vld [vmem:[#allocation6 + $0x68] sm:$0xff]
    %v5015 = vld [vmem:[#allocation6 + $0x70] sm:$0xff]
    %v5016 = vld [vmem:[#allocation6 + $0x78] sm:$0xff]
    %v5017 = vld [vmem:[#allocation6 + $0x80] sm:$0xff]
    %v5018 = vld [vmem:[#allocation6 + $0x88] sm:$0xff]
    %v5019 = vld [vmem:[#allocation6 + $0x90] sm:$0xff]
    %v5020 = vld [vmem:[#allocation6 + $0x98] sm:$0xff]
    %v5021 = vld [vmem:[#allocation6 + $0xa0] sm:$0xff]
    %v5022 = vld [vmem:[#allocation6 + $0xa8] sm:$0xff]
    %v5023 = vld [vmem:[#allocation6 + $0xb0] sm:$0xff]
    %v5024 = vld [vmem:[#allocation6 + $0xb8] sm:$0xff]
    %v5025 = vld [vmem:[#allocation6 + $0xc0] sm:$0xff]
    %v5026 = vld [vmem:[#allocation6 + $0xc8] sm:$0xff]
    %v5027 = vld [vmem:[#allocation6 + $0xd0] sm:$0xff]
    %v5028 = vld [vmem:[#allocation6 + $0xd8] sm:$0xff]
    %v5029 = vld [vmem:[#allocation6 + $0xe0] sm:$0xff]
    %v5030 = vld [vmem:[#allocation6 + $0xe8] sm:$0xff]
    %v5031 = vld [vmem:[#allocation6 + $0xf0] sm:$0xff]
    %v5032 = vld [vmem:[#allocation6 + $0xf8] sm:$0xff]
    %v5033 = vld [vmem:[#allocation6 + $0x100] sm:$0xff]
    %v5034 = vld [vmem:[#allocation6 + $0x108] sm:$0xff]
    %v5035 = vld [vmem:[#allocation6 + $0x110] sm:$0xff]
    %v5036 = vld [vmem:[#allocation6 + $0x118] sm:$0xff]
    %v5037 = vld [vmem:[#allocation6 + $0x120] sm:$0xff]
    %v5038 = vld [vmem:[#allocation6 + $0x128] sm:$0xff]
    %v5039 = vld [vmem:[#allocation6 + $0x130] sm:$0xff]
    %v5040 = vld [vmem:[#allocation6 + $0x138] sm:$0xff]
    %v5041 = vld [vmem:[#allocation6 + $0x140] sm:$0xff]
    %v5042 = vld [vmem:[#allocation6 + $0x148] sm:$0xff]
    %v5043 = vld [vmem:[#allocation6 + $0x150] sm:$0xff]
    %v5044 = vld [vmem:[#allocation6 + $0x158] sm:$0xff]
    %v5045 = vld [vmem:[#allocation6 + $0x160] sm:$0xff]
    %v5046 = vld [vmem:[#allocation6 + $0x168] sm:$0xff]
    %v5047 = vld [vmem:[#allocation6 + $0x170] sm:$0xff]
    %v5048 = vld [vmem:[#allocation6 + $0x178] sm:$0xff]
    %v5049 = vld [vmem:[#allocation6 + $0x180] sm:$0xff]
    %v5050 = vld [vmem:[#allocation6 + $0x188] sm:$0xff]
    %v5051 = vld [vmem:[#allocation6 + $0x190] sm:$0xff]
    %v5052 = vld [vmem:[#allocation6 + $0x198] sm:$0xff]
    %v5053 = vld [vmem:[#allocation6 + $0x1a0] sm:$0xff]
    %v5054 = vld [vmem:[#allocation6 + $0x1a8] sm:$0xff]
    %v5055 = vld [vmem:[#allocation6 + $0x1b0] sm:$0xff]
    %v5056 = vld [vmem:[#allocation6 + $0x1b8] sm:$0xff]
    %v5057 = vld [vmem:[#allocation6 + $0x1c0] sm:$0xff]
    %v5058 = vld [vmem:[#allocation6 + $0x1c8] sm:$0xff]
    %v5059 = vld [vmem:[#allocation6 + $0x1d0] sm:$0xff]
    %v5060 = vld [vmem:[#allocation6 + $0x1d8] sm:$0xff]
    %v5061 = vld [vmem:[#allocation6 + $0x1e0] sm:$0xff]
    %v5062 = vld [vmem:[#allocation6 + $0x1e8] sm:$0xff]
    %v5063 = vld [vmem:[#allocation6 + $0x1f0] sm:$0xff]
    %v5064 = vld [vmem:[#allocation6 + $0x1f8] sm:$0xff]
    %v5065 = vld [vmem:[#allocation6 + $0x200] sm:$0xff]
    %v5066 = vld [vmem:[#allocation6 + $0x208] sm:$0xff]
    %v5067 = vld [vmem:[#allocation6 + $0x210] sm:$0xff]
    %v5068 = vld [vmem:[#allocation6 + $0x218] sm:$0xff]
    %v5069 = vld [vmem:[#allocation6 + $0x220] sm:$0xff]
    %v5070 = vld [vmem:[#allocation6 + $0x228] sm:$0xff]
    %v5071 = vld [vmem:[#allocation6 + $0x230] sm:$0xff]
    %v5072 = vld [vmem:[#allocation6 + $0x238] sm:$0xff]
    %v5073 = vld [vmem:[#allocation6 + $0x240] sm:$0xff]
    %v5074 = vld [vmem:[#allocation6 + $0x248] sm:$0xff]
    %v5075 = vld [vmem:[#allocation6 + $0x250] sm:$0xff]
    %v5076 = vld [vmem:[#allocation6 + $0x258] sm:$0xff]
    %v5077 = vld [vmem:[#allocation6 + $0x260] sm:$0xff]
    %v5078 = vld [vmem:[#allocation6 + $0x268] sm:$0xff]
    %v5079 = vld [vmem:[#allocation6 + $0x270] sm:$0xff]
    %v5080 = vld [vmem:[#allocation6 + $0x278] sm:$0xff]
    %v5081 = vld [vmem:[#allocation6 + $0x280] sm:$0xff]
    %v5082 = vld [vmem:[#allocation6 + $0x288] sm:$0xff]
    %v5083 = vld [vmem:[#allocation6 + $0x290] sm:$0xff]
    %v5084 = vld [vmem:[#allocation6 + $0x298] sm:$0xff]
    %v5085 = vld [vmem:[#allocation6 + $0x2a0] sm:$0xff]
    %v5086 = vld [vmem:[#allocation6 + $0x2a8] sm:$0xff]
    %v5087 = vld [vmem:[#allocation6 + $0x2b0] sm:$0xff]
    %v5088 = vld [vmem:[#allocation6 + $0x2b8] sm:$0xff]
    %v5089 = vld [vmem:[#allocation6 + $0x2c0] sm:$0xff]
    %v5090 = vld [vmem:[#allocation6 + $0x2c8] sm:$0xff]
    %v5091 = vld [vmem:[#allocation6 + $0x2d0] sm:$0xff]
    %v5092 = vld [vmem:[#allocation6 + $0x2d8] sm:$0xff]
    %v5093 = vld [vmem:[#allocation6 + $0x2e0] sm:$0xff]
    %v5094 = vld [vmem:[#allocation6 + $0x2e8] sm:$0xff]
    %v5095 = vld [vmem:[#allocation6 + $0x2f0] sm:$0xff]
    %v5096 = vld [vmem:[#allocation6 + $0x2f8] sm:$0xff]
    %v5097 = vld [vmem:[#allocation6 + $0x300] sm:$0xff]
    %v5098 = vld [vmem:[#allocation6 + $0x308] sm:$0xff]
    %v5099 = vld [vmem:[#allocation6 + $0x310] sm:$0xff]
    %v5100 = vld [vmem:[#allocation6 + $0x318] sm:$0xff]
    %v5101 = vld [vmem:[#allocation6 + $0x320] sm:$0xff]
    %v5102 = vld [vmem:[#allocation6 + $0x328] sm:$0xff]
    %v5103 = vld [vmem:[#allocation6 + $0x330] sm:$0xff]
    %v5104 = vld [vmem:[#allocation6 + $0x338] sm:$0xff]
    %v5105 = vld [vmem:[#allocation6 + $0x340] sm:$0xff]
    %v5106 = vld [vmem:[#allocation6 + $0x348] sm:$0xff]
    %v5107 = vld [vmem:[#allocation6 + $0x350] sm:$0xff]
    %v5108 = vld [vmem:[#allocation6 + $0x358] sm:$0xff]
    %v5109 = vld [vmem:[#allocation6 + $0x360] sm:$0xff]
    %v5110 = vld [vmem:[#allocation6 + $0x368] sm:$0xff]
    %v5111 = vld [vmem:[#allocation6 + $0x370] sm:$0xff]
    %v5112 = vld [vmem:[#allocation6 + $0x378] sm:$0xff]
    %v5113 = vld [vmem:[#allocation6 + $0x380] sm:$0xff]
    %v5114 = vld [vmem:[#allocation6 + $0x388] sm:$0xff]
    %v5115 = vld [vmem:[#allocation6 + $0x390] sm:$0xff]
    %v5116 = vld [vmem:[#allocation6 + $0x398] sm:$0xff]
    %v5117 = vld [vmem:[#allocation6 + $0x3a0] sm:$0xff]
    %v5118 = vld [vmem:[#allocation6 + $0x3a8] sm:$0xff]
    %v5119 = vld [vmem:[#allocation6 + $0x3b0] sm:$0xff]
    %v5120 = vld [vmem:[#allocation6 + $0x3b8] sm:$0xff]
    %v5121 = vld [vmem:[#allocation6 + $0x3c0] sm:$0xff]
    %v5122 = vld [vmem:[#allocation6 + $0x3c8] sm:$0xff]
    %v5123 = vld [vmem:[#allocation6 + $0x3d0] sm:$0xff]
    %v5124 = vld [vmem:[#allocation6 + $0x3d8] sm:$0xff]
    %v5125 = vld [vmem:[#allocation6 + $0x3e0] sm:$0xff]
    %v5126 = vld [vmem:[#allocation6 + $0x3e8] sm:$0xff]
    %v5127 = vld [vmem:[#allocation6 + $0x3f0] sm:$0xff]
    %v5128 = vld [vmem:[#allocation6 + $0x3f8] sm:$0xff]
    %v5129 = vld [vmem:[#allocation12 + $0x10] sm:$0x3]
    %v5131 = vperm.slane %v5129, 0
    %v5132 = vperm.slane %v5129, 1
    %v5263 = vunpack.c.l.b16 %v5001
    %v5264 = vunpack.c.h.b16 %v5001
    %v5265 = vunpack.c.l.b16 %v5002
    %v5266 = vunpack.c.h.b16 %v5002
    %v5267 = vunpack.c.l.b16 %v5003
    %v5268 = vunpack.c.h.b16 %v5003
    %v5269 = vunpack.c.l.b16 %v5004
    %v5270 = vunpack.c.h.b16 %v5004
    %v5271 = vunpack.c.l.b16 %v5005
    %v5272 = vunpack.c.h.b16 %v5005
    %v5273 = vunpack.c.l.b16 %v5006
    %v5274 = vunpack.c.h.b16 %v5006
    %v5275 = vunpack.c.l.b16 %v5007
    %v5276 = vunpack.c.h.b16 %v5007
    %v5277 = vunpack.c.l.b16 %v5008
    %v5278 = vunpack.c.h.b16 %v5008
    %v5279 = vunpack.c.l.b16 %v5009
    %v5280 = vunpack.c.h.b16 %v5009
    %v5281 = vunpack.c.l.b16 %v5010
    %v5282 = vunpack.c.h.b16 %v5010
    %v5283 = vunpack.c.l.b16 %v5011
    %v5284 = vunpack.c.h.b16 %v5011
    %v5285 = vunpack.c.l.b16 %v5012
    %v5286 = vunpack.c.h.b16 %v5012
    %v5287 = vunpack.c.l.b16 %v5013
    %v5288 = vunpack.c.h.b16 %v5013
    %v5289 = vunpack.c.l.b16 %v5014
    %v5290 = vunpack.c.h.b16 %v5014
    %v5291 = vunpack.c.l.b16 %v5015
    %v5292 = vunpack.c.h.b16 %v5015
    %v5293 = vunpack.c.l.b16 %v5016
    %v5294 = vunpack.c.h.b16 %v5016
    %v5295 = vunpack.c.l.b16 %v5017
    %v5296 = vunpack.c.h.b16 %v5017
    %v5297 = vunpack.c.l.b16 %v5018
    %v5298 = vunpack.c.h.b16 %v5018
    %v5299 = vunpack.c.l.b16 %v5019
    %v5300 = vunpack.c.h.b16 %v5019
    %v5301 = vunpack.c.l.b16 %v5020
    %v5302 = vunpack.c.h.b16 %v5020
    %v5303 = vunpack.c.l.b16 %v5021
    %v5304 = vunpack.c.h.b16 %v5021
    %v5305 = vunpack.c.l.b16 %v5022
    %v5306 = vunpack.c.h.b16 %v5022
    %v5307 = vunpack.c.l.b16 %v5023
    %v5308 = vunpack.c.h.b16 %v5023
    %v5309 = vunpack.c.l.b16 %v5024
    %v5310 = vunpack.c.h.b16 %v5024
    %v5311 = vunpack.c.l.b16 %v5025
    %v5312 = vunpack.c.h.b16 %v5025
    %v5313 = vunpack.c.l.b16 %v5026
    %v5314 = vunpack.c.h.b16 %v5026
    %v5315 = vunpack.c.l.b16 %v5027
    %v5316 = vunpack.c.h.b16 %v5027
    %v5317 = vunpack.c.l.b16 %v5028
    %v5318 = vunpack.c.h.b16 %v5028
    %v5319 = vunpack.c.l.b16 %v5029
    %v5320 = vunpack.c.h.b16 %v5029
    %v5321 = vunpack.c.l.b16 %v5030
    %v5322 = vunpack.c.h.b16 %v5030
    %v5323 = vunpack.c.l.b16 %v5031
    %v5324 = vunpack.c.h.b16 %v5031
    %v5325 = vunpack.c.l.b16 %v5032
    %v5326 = vunpack.c.h.b16 %v5032
    %v5327 = vunpack.c.l.b16 %v5033
    %v5328 = vunpack.c.h.b16 %v5033
    %v5329 = vunpack.c.l.b16 %v5034
    %v5330 = vunpack.c.h.b16 %v5034
    %v5331 = vunpack.c.l.b16 %v5035
    %v5332 = vunpack.c.h.b16 %v5035
    %v5333 = vunpack.c.l.b16 %v5036
    %v5334 = vunpack.c.h.b16 %v5036
    %v5335 = vunpack.c.l.b16 %v5037
    %v5336 = vunpack.c.h.b16 %v5037
    %v5337 = vunpack.c.l.b16 %v5038
    %v5338 = vunpack.c.h.b16 %v5038
    %v5339 = vunpack.c.l.b16 %v5039
    %v5340 = vunpack.c.h.b16 %v5039
    %v5341 = vunpack.c.l.b16 %v5040
    %v5342 = vunpack.c.h.b16 %v5040
    %v5343 = vunpack.c.l.b16 %v5041
    %v5344 = vunpack.c.h.b16 %v5041
    %v5345 = vunpack.c.l.b16 %v5042
    %v5346 = vunpack.c.h.b16 %v5042
    %v5347 = vunpack.c.l.b16 %v5043
    %v5348 = vunpack.c.h.b16 %v5043
    %v5349 = vunpack.c.l.b16 %v5044
    %v5350 = vunpack.c.h.b16 %v5044
    %v5351 = vunpack.c.l.b16 %v5045
    %v5352 = vunpack.c.h.b16 %v5045
    %v5353 = vunpack.c.l.b16 %v5046
    %v5354 = vunpack.c.h.b16 %v5046
    %v5355 = vunpack.c.l.b16 %v5047
    %v5356 = vunpack.c.h.b16 %v5047
    %v5357 = vunpack.c.l.b16 %v5048
    %v5358 = vunpack.c.h.b16 %v5048
    %v5359 = vunpack.c.l.b16 %v5049
    %v5360 = vunpack.c.h.b16 %v5049
    %v5361 = vunpack.c.l.b16 %v5050
    %v5362 = vunpack.c.h.b16 %v5050
    %v5363 = vunpack.c.l.b16 %v5051
    %v5364 = vunpack.c.h.b16 %v5051
    %v5365 = vunpack.c.l.b16 %v5052
    %v5366 = vunpack.c.h.b16 %v5052
    %v5367 = vunpack.c.l.b16 %v5053
    %v5368 = vunpack.c.h.b16 %v5053
    %v5369 = vunpack.c.l.b16 %v5054
    %v5370 = vunpack.c.h.b16 %v5054
    %v5371 = vunpack.c.l.b16 %v5055
    %v5372 = vunpack.c.h.b16 %v5055
    %v5373 = vunpack.c.l.b16 %v5056
    %v5374 = vunpack.c.h.b16 %v5056
    %v5375 = vunpack.c.l.b16 %v5057
    %v5376 = vunpack.c.h.b16 %v5057
    %v5377 = vunpack.c.l.b16 %v5058
    %v5378 = vunpack.c.h.b16 %v5058
    %v5379 = vunpack.c.l.b16 %v5059
    %v5380 = vunpack.c.h.b16 %v5059
    %v5381 = vunpack.c.l.b16 %v5060
    %v5382 = vunpack.c.h.b16 %v5060
    %v5383 = vunpack.c.l.b16 %v5061
    %v5384 = vunpack.c.h.b16 %v5061
    %v5385 = vunpack.c.l.b16 %v5062
    %v5386 = vunpack.c.h.b16 %v5062
    %v5387 = vunpack.c.l.b16 %v5063
    %v5388 = vunpack.c.h.b16 %v5063
    %v5389 = vunpack.c.l.b16 %v5064
    %v5390 = vunpack.c.h.b16 %v5064
    %v5391 = vunpack.c.l.b16 %v5065
    %v5392 = vunpack.c.h.b16 %v5065
    %v5393 = vunpack.c.l.b16 %v5066
    %v5394 = vunpack.c.h.b16 %v5066
    %v5395 = vunpack.c.l.b16 %v5067
    %v5396 = vunpack.c.h.b16 %v5067
    %v5397 = vunpack.c.l.b16 %v5068
    %v5398 = vunpack.c.h.b16 %v5068
    %v5399 = vunpack.c.l.b16 %v5069
    %v5400 = vunpack.c.h.b16 %v5069
    %v5401 = vunpack.c.l.b16 %v5070
    %v5402 = vunpack.c.h.b16 %v5070
    %v5403 = vunpack.c.l.b16 %v5071
    %v5404 = vunpack.c.h.b16 %v5071
    %v5405 = vunpack.c.l.b16 %v5072
    %v5406 = vunpack.c.h.b16 %v5072
    %v5407 = vunpack.c.l.b16 %v5073
    %v5408 = vunpack.c.h.b16 %v5073
    %v5409 = vunpack.c.l.b16 %v5074
    %v5410 = vunpack.c.h.b16 %v5074
    %v5411 = vunpack.c.l.b16 %v5075
    %v5412 = vunpack.c.h.b16 %v5075
    %v5413 = vunpack.c.l.b16 %v5076
    %v5414 = vunpack.c.h.b16 %v5076
    %v5415 = vunpack.c.l.b16 %v5077
    %v5416 = vunpack.c.h.b16 %v5077
    %v5417 = vunpack.c.l.b16 %v5078
    %v5418 = vunpack.c.h.b16 %v5078
    %v5419 = vunpack.c.l.b16 %v5079
    %v5420 = vunpack.c.h.b16 %v5079
    %v5421 = vunpack.c.l.b16 %v5080
    %v5422 = vunpack.c.h.b16 %v5080
    %v5423 = vunpack.c.l.b16 %v5081
    %v5424 = vunpack.c.h.b16 %v5081
    %v5425 = vunpack.c.l.b16 %v5082
    %v5426 = vunpack.c.h.b16 %v5082
    %v5427 = vunpack.c.l.b16 %v5083
    %v5428 = vunpack.c.h.b16 %v5083
    %v5429 = vunpack.c.l.b16 %v5084
    %v5430 = vunpack.c.h.b16 %v5084
    %v5431 = vunpack.c.l.b16 %v5085
    %v5432 = vunpack.c.h.b16 %v5085
    %v5433 = vunpack.c.l.b16 %v5086
    %v5434 = vunpack.c.h.b16 %v5086
    %v5435 = vunpack.c.l.b16 %v5087
    %v5436 = vunpack.c.h.b16 %v5087
    %v5437 = vunpack.c.l.b16 %v5088
    %v5438 = vunpack.c.h.b16 %v5088
    %v5439 = vunpack.c.l.b16 %v5089
    %v5440 = vunpack.c.h.b16 %v5089
    %v5441 = vunpack.c.l.b16 %v5090
    %v5442 = vunpack.c.h.b16 %v5090
    %v5443 = vunpack.c.l.b16 %v5091
    %v5444 = vunpack.c.h.b16 %v5091
    %v5445 = vunpack.c.l.b16 %v5092
    %v5446 = vunpack.c.h.b16 %v5092
    %v5447 = vunpack.c.l.b16 %v5093
    %v5448 = vunpack.c.h.b16 %v5093
    %v5449 = vunpack.c.l.b16 %v5094
    %v5450 = vunpack.c.h.b16 %v5094
    %v5451 = vunpack.c.l.b16 %v5095
    %v5452 = vunpack.c.h.b16 %v5095
    %v5453 = vunpack.c.l.b16 %v5096
    %v5454 = vunpack.c.h.b16 %v5096
    %v5455 = vunpack.c.l.b16 %v5097
    %v5456 = vunpack.c.h.b16 %v5097
    %v5457 = vunpack.c.l.b16 %v5098
    %v5458 = vunpack.c.h.b16 %v5098
    %v5459 = vunpack.c.l.b16 %v5099
    %v5460 = vunpack.c.h.b16 %v5099
    %v5461 = vunpack.c.l.b16 %v5100
    %v5462 = vunpack.c.h.b16 %v5100
    %v5463 = vunpack.c.l.b16 %v5101
    %v5464 = vunpack.c.h.b16 %v5101
    %v5465 = vunpack.c.l.b16 %v5102
    %v5466 = vunpack.c.h.b16 %v5102
    %v5467 = vunpack.c.l.b16 %v5103
    %v5468 = vunpack.c.h.b16 %v5103
    %v5469 = vunpack.c.l.b16 %v5104
    %v5470 = vunpack.c.h.b16 %v5104
    %v5471 = vunpack.c.l.b16 %v5105
    %v5472 = vunpack.c.h.b16 %v5105
    %v5473 = vunpack.c.l.b16 %v5106
    %v5474 = vunpack.c.h.b16 %v5106
    %v5475 = vunpack.c.l.b16 %v5107
    %v5476 = vunpack.c.h.b16 %v5107
    %v5477 = vunpack.c.l.b16 %v5108
    %v5478 = vunpack.c.h.b16 %v5108
    %v5479 = vunpack.c.l.b16 %v5109
    %v5480 = vunpack.c.h.b16 %v5109
    %v5481 = vunpack.c.l.b16 %v5110
    %v5482 = vunpack.c.h.b16 %v5110
    %v5483 = vunpack.c.l.b16 %v5111
    %v5484 = vunpack.c.h.b16 %v5111
    %v5485 = vunpack.c.l.b16 %v5112
    %v5486 = vunpack.c.h.b16 %v5112
    %v5487 = vunpack.c.l.b16 %v5113
    %v5488 = vunpack.c.h.b16 %v5113
    %v5489 = vunpack.c.l.b16 %v5114
    %v5490 = vunpack.c.h.b16 %v5114
    %v5491 = vunpack.c.l.b16 %v5115
    %v5492 = vunpack.c.h.b16 %v5115
    %v5493 = vunpack.c.l.b16 %v5116
    %v5494 = vunpack.c.h.b16 %v5116
    %v5495 = vunpack.c.l.b16 %v5117
    %v5496 = vunpack.c.h.b16 %v5117
    %v5497 = vunpack.c.l.b16 %v5118
    %v5498 = vunpack.c.h.b16 %v5118
    %v5499 = vunpack.c.l.b16 %v5119
    %v5500 = vunpack.c.h.b16 %v5119
    %v5501 = vunpack.c.l.b16 %v5120
    %v5502 = vunpack.c.h.b16 %v5120
    %v5503 = vunpack.c.l.b16 %v5121
    %v5504 = vunpack.c.h.b16 %v5121
    %v5505 = vunpack.c.l.b16 %v5122
    %v5506 = vunpack.c.h.b16 %v5122
    %v5507 = vunpack.c.l.b16 %v5123
    %v5508 = vunpack.c.h.b16 %v5123
    %v5509 = vunpack.c.l.b16 %v5124
    %v5510 = vunpack.c.h.b16 %v5124
    %v5511 = vunpack.c.l.b16 %v5125
    %v5512 = vunpack.c.h.b16 %v5125
    %v5513 = vunpack.c.l.b16 %v5126
    %v5514 = vunpack.c.h.b16 %v5126
    %v5515 = vunpack.c.l.b16 %v5127
    %v5516 = vunpack.c.h.b16 %v5127
    %v5517 = vunpack.c.l.b16 %v5128
    %v5518 = vunpack.c.h.b16 %v5128
    %v5519 = vpack.c.b16 %v5265, %v5263
    %v5520 = vpack.c.b16 %v5266, %v5264
    %v5521 = vpack.c.b16 %v5269, %v5267
    %v5522 = vpack.c.b16 %v5270, %v5268
    %v5523 = vpack.c.b16 %v5273, %v5271
    %v5524 = vpack.c.b16 %v5274, %v5272
    %v5525 = vpack.c.b16 %v5277, %v5275
    %v5526 = vpack.c.b16 %v5278, %v5276
    %v5527 = vpack.c.b16 %v5281, %v5279
    %v5528 = vpack.c.b16 %v5282, %v5280
    %v5529 = vpack.c.b16 %v5285, %v5283
    %v5530 = vpack.c.b16 %v5286, %v5284
    %v5531 = vpack.c.b16 %v5289, %v5287
    %v5532 = vpack.c.b16 %v5290, %v5288
    %v5533 = vpack.c.b16 %v5293, %v5291
    %v5534 = vpack.c.b16 %v5294, %v5292
    %v5535 = vpack.c.b16 %v5297, %v5295
    %v5536 = vpack.c.b16 %v5298, %v5296
    %v5537 = vpack.c.b16 %v5301, %v5299
    %v5538 = vpack.c.b16 %v5302, %v5300
    %v5539 = vpack.c.b16 %v5305, %v5303
    %v5540 = vpack.c.b16 %v5306, %v5304
    %v5541 = vpack.c.b16 %v5309, %v5307
    %v5542 = vpack.c.b16 %v5310, %v5308
    %v5543 = vpack.c.b16 %v5313, %v5311
    %v5544 = vpack.c.b16 %v5314, %v5312
    %v5545 = vpack.c.b16 %v5317, %v5315
    %v5546 = vpack.c.b16 %v5318, %v5316
    %v5547 = vpack.c.b16 %v5321, %v5319
    %v5548 = vpack.c.b16 %v5322, %v5320
    %v5549 = vpack.c.b16 %v5325, %v5323
    %v5550 = vpack.c.b16 %v5326, %v5324
    %v5551 = vpack.c.b16 %v5329, %v5327
    %v5552 = vpack.c.b16 %v5330, %v5328
    %v5553 = vpack.c.b16 %v5333, %v5331
    %v5554 = vpack.c.b16 %v5334, %v5332
    %v5555 = vpack.c.b16 %v5337, %v5335
    %v5556 = vpack.c.b16 %v5338, %v5336
    %v5557 = vpack.c.b16 %v5341, %v5339
    %v5558 = vpack.c.b16 %v5342, %v5340
    %v5559 = vpack.c.b16 %v5345, %v5343
    %v5560 = vpack.c.b16 %v5346, %v5344
    %v5561 = vpack.c.b16 %v5349, %v5347
    %v5562 = vpack.c.b16 %v5350, %v5348
    %v5563 = vpack.c.b16 %v5353, %v5351
    %v5564 = vpack.c.b16 %v5354, %v5352
    %v5565 = vpack.c.b16 %v5357, %v5355
    %v5566 = vpack.c.b16 %v5358, %v5356
    %v5567 = vpack.c.b16 %v5361, %v5359
    %v5568 = vpack.c.b16 %v5362, %v5360
    %v5569 = vpack.c.b16 %v5365, %v5363
    %v5570 = vpack.c.b16 %v5366, %v5364
    %v5571 = vpack.c.b16 %v5369, %v5367
    %v5572 = vpack.c.b16 %v5370, %v5368
    %v5573 = vpack.c.b16 %v5373, %v5371
    %v5574 = vpack.c.b16 %v5374, %v5372
    %v5575 = vpack.c.b16 %v5377, %v5375
    %v5576 = vpack.c.b16 %v5378, %v5376
    %v5577 = vpack.c.b16 %v5381, %v5379
    %v5578 = vpack.c.b16 %v5382, %v5380
    %v5579 = vpack.c.b16 %v5385, %v5383
    %v5580 = vpack.c.b16 %v5386, %v5384
    %v5581 = vpack.c.b16 %v5389, %v5387
    %v5582 = vpack.c.b16 %v5390, %v5388
    %v5583 = vpack.c.b16 %v5393, %v5391
    %v5584 = vpack.c.b16 %v5394, %v5392
    %v5585 = vpack.c.b16 %v5397, %v5395
    %v5586 = vpack.c.b16 %v5398, %v5396
    %v5587 = vpack.c.b16 %v5401, %v5399
    %v5588 = vpack.c.b16 %v5402, %v5400
    %v5589 = vpack.c.b16 %v5405, %v5403
    %v5590 = vpack.c.b16 %v5406, %v5404
    %v5591 = vpack.c.b16 %v5409, %v5407
    %v5592 = vpack.c.b16 %v5410, %v5408
    %v5593 = vpack.c.b16 %v5413, %v5411
    %v5594 = vpack.c.b16 %v5414, %v5412
    %v5595 = vpack.c.b16 %v5417, %v5415
    %v5596 = vpack.c.b16 %v5418, %v5416
    %v5597 = vpack.c.b16 %v5421, %v5419
    %v5598 = vpack.c.b16 %v5422, %v5420
    %v5599 = vpack.c.b16 %v5425, %v5423
    %v5600 = vpack.c.b16 %v5426, %v5424
    %v5601 = vpack.c.b16 %v5429, %v5427
    %v5602 = vpack.c.b16 %v5430, %v5428
    %v5603 = vpack.c.b16 %v5433, %v5431
    %v5604 = vpack.c.b16 %v5434, %v5432
    %v5605 = vpack.c.b16 %v5437, %v5435
    %v5606 = vpack.c.b16 %v5438, %v5436
    %v5607 = vpack.c.b16 %v5441, %v5439
    %v5608 = vpack.c.b16 %v5442, %v5440
    %v5609 = vpack.c.b16 %v5445, %v5443
    %v5610 = vpack.c.b16 %v5446, %v5444
    %v5611 = vpack.c.b16 %v5449, %v5447
    %v5612 = vpack.c.b16 %v5450, %v5448
    %v5613 = vpack.c.b16 %v5453, %v5451
    %v5614 = vpack.c.b16 %v5454, %v5452
    %v5615 = vpack.c.b16 %v5457, %v5455
    %v5616 = vpack.c.b16 %v5458, %v5456
    %v5617 = vpack.c.b16 %v5461, %v5459
    %v5618 = vpack.c.b16 %v5462, %v5460
    %v5619 = vpack.c.b16 %v5465, %v5463
    %v5620 = vpack.c.b16 %v5466, %v5464
    %v5621 = vpack.c.b16 %v5469, %v5467
    %v5622 = vpack.c.b16 %v5470, %v5468
    %v5623 = vpack.c.b16 %v5473, %v5471
    %v5624 = vpack.c.b16 %v5474, %v5472
    %v5625 = vpack.c.b16 %v5477, %v5475
    %v5626 = vpack.c.b16 %v5478, %v5476
    %v5627 = vpack.c.b16 %v5481, %v5479
    %v5628 = vpack.c.b16 %v5482, %v5480
    %v5629 = vpack.c.b16 %v5485, %v5483
    %v5630 = vpack.c.b16 %v5486, %v5484
    %v5631 = vpack.c.b16 %v5489, %v5487
    %v5632 = vpack.c.b16 %v5490, %v5488
    %v5633 = vpack.c.b16 %v5493, %v5491
    %v5634 = vpack.c.b16 %v5494, %v5492
    %v5635 = vpack.c.b16 %v5497, %v5495
    %v5636 = vpack.c.b16 %v5498, %v5496
    %v5637 = vpack.c.b16 %v5501, %v5499
    %v5638 = vpack.c.b16 %v5502, %v5500
    %v5639 = vpack.c.b16 %v5505, %v5503
    %v5640 = vpack.c.b16 %v5506, %v5504
    %v5641 = vpack.c.b16 %v5509, %v5507
    %v5642 = vpack.c.b16 %v5510, %v5508
    %v5643 = vpack.c.b16 %v5513, %v5511
    %v5644 = vpack.c.b16 %v5514, %v5512
    %v5645 = vpack.c.b16 %v5517, %v5515
    %v5646 = vpack.c.b16 %v5518, %v5516
    %5775 = vmatpush.bf16.msra.mxu0 %v5533
    %5776 = vmatpush.bf16.msra.mxu0 %v5531
    %5777 = vmatpush.bf16.msra.mxu0 %v5529
    %5778 = vmatpush.bf16.msra.mxu0 %v5527
    %5779 = vmatpush.bf16.msra.mxu0 %v5525
    %5780 = vmatpush.bf16.msra.mxu0 %v5523
    %5781 = vmatpush.bf16.msra.mxu0 %v5521
    %5782 = vmatpush.bf16.msra.mxu0 %v5519
    %5783 = vmatmul.bf16.gmra.mxu0 %v4993
    %v5784 = vpop.f32.mrf.mxu0
    %v5785 = vadd.f32 %v5131, %v5784
    %v5786 = vpop.f32.mrf.mxu0
    %5787 = vdwg.mxu0
    %5788 = vmatpush.bf16.msra.mxu0 %v5549
    %5789 = vmatpush.bf16.msra.mxu0 %v5547
    %5790 = vmatpush.bf16.msra.mxu0 %v5545
    %5791 = vmatpush.bf16.msra.mxu0 %v5543
    %5792 = vmatpush.bf16.msra.mxu0 %v5541
    %5793 = vmatpush.bf16.msra.mxu0 %v5539
    %5794 = vmatpush.bf16.msra.mxu0 %v5537
    %5795 = vmatpush.bf16.msra.mxu0 %v5535
    %5796 = vmatmul.bf16.gmra.mxu0 %v4994
    %v5797 = vpop.f32.mrf.mxu0
    %v5798 = vadd.f32 %v5785, %v5797
    %v5799 = vpop.f32.mrf.mxu0
    %5800 = vdwg.mxu0
    %5801 = vmatpush.bf16.msra.mxu0 %v5565
    %5802 = vmatpush.bf16.msra.mxu0 %v5563
    %5803 = vmatpush.bf16.msra.mxu0 %v5561
    %5804 = vmatpush.bf16.msra.mxu0 %v5559
    %5805 = vmatpush.bf16.msra.mxu0 %v5557
    %5806 = vmatpush.bf16.msra.mxu0 %v5555
    %5807 = vmatpush.bf16.msra.mxu0 %v5553
    %5808 = vmatpush.bf16.msra.mxu0 %v5551
    %5809 = vmatmul.bf16.gmra.mxu0 %v4995
    %v5810 = vpop.f32.mrf.mxu0
    %v5811 = vadd.f32 %v5798, %v5810
    %v5812 = vpop.f32.mrf.mxu0
    %5813 = vdwg.mxu0
    %5814 = vmatpush.bf16.msra.mxu0 %v5581
    %5815 = vmatpush.bf16.msra.mxu0 %v5579
    %5816 = vmatpush.bf16.msra.mxu0 %v5577
    %5817 = vmatpush.bf16.msra.mxu0 %v5575
    %5818 = vmatpush.bf16.msra.mxu0 %v5573
    %5819 = vmatpush.bf16.msra.mxu0 %v5571
    %5820 = vmatpush.bf16.msra.mxu0 %v5569
    %5821 = vmatpush.bf16.msra.mxu0 %v5567
    %5822 = vmatmul.bf16.gmra.mxu0 %v4996
    %v5823 = vpop.f32.mrf.mxu0
    %v5824 = vadd.f32 %v5811, %v5823
    %v5825 = vpop.f32.mrf.mxu0
    %5826 = vdwg.mxu0
    %5827 = vmatpush.bf16.msra.mxu0 %v5597
    %5828 = vmatpush.bf16.msra.mxu0 %v5595
    %5829 = vmatpush.bf16.msra.mxu0 %v5593
    %5830 = vmatpush.bf16.msra.mxu0 %v5591
    %5831 = vmatpush.bf16.msra.mxu0 %v5589
    %5832 = vmatpush.bf16.msra.mxu0 %v5587
    %5833 = vmatpush.bf16.msra.mxu0 %v5585
    %5834 = vmatpush.bf16.msra.mxu0 %v5583
    %5835 = vmatmul.bf16.gmra.mxu0 %v4997
    %v5836 = vpop.f32.mrf.mxu0
    %v5837 = vadd.f32 %v5824, %v5836
    %v5838 = vpop.f32.mrf.mxu0
    %5839 = vdwg.mxu0
    %5840 = vmatpush.bf16.msra.mxu0 %v5613
    %5841 = vmatpush.bf16.msra.mxu0 %v5611
    %5842 = vmatpush.bf16.msra.mxu0 %v5609
    %5843 = vmatpush.bf16.msra.mxu0 %v5607
    %5844 = vmatpush.bf16.msra.mxu0 %v5605
    %5845 = vmatpush.bf16.msra.mxu0 %v5603
    %5846 = vmatpush.bf16.msra.mxu0 %v5601
    %5847 = vmatpush.bf16.msra.mxu0 %v5599
    %5848 = vmatmul.bf16.gmra.mxu0 %v4998
    %v5849 = vpop.f32.mrf.mxu0
    %v5850 = vadd.f32 %v5837, %v5849
    %v5851 = vpop.f32.mrf.mxu0
    %5852 = vdwg.mxu0
    %5853 = vmatpush.bf16.msra.mxu0 %v5629
    %5854 = vmatpush.bf16.msra.mxu0 %v5627
    %5855 = vmatpush.bf16.msra.mxu0 %v5625
    %5856 = vmatpush.bf16.msra.mxu0 %v5623
    %5857 = vmatpush.bf16.msra.mxu0 %v5621
    %5858 = vmatpush.bf16.msra.mxu0 %v5619
    %5859 = vmatpush.bf16.msra.mxu0 %v5617
    %5860 = vmatpush.bf16.msra.mxu0 %v5615
    %5861 = vmatmul.bf16.gmra.mxu0 %v4999
    %v5862 = vpop.f32.mrf.mxu0
    %v5863 = vadd.f32 %v5850, %v5862
    %v5864 = vpop.f32.mrf.mxu0
    %5865 = vdwg.mxu0
    %5866 = vmatpush.bf16.msra.mxu0 %v5645
    %5867 = vmatpush.bf16.msra.mxu0 %v5643
    %5868 = vmatpush.bf16.msra.mxu0 %v5641
    %5869 = vmatpush.bf16.msra.mxu0 %v5639
    %5870 = vmatpush.bf16.msra.mxu0 %v5637
    %5871 = vmatpush.bf16.msra.mxu0 %v5635
    %5872 = vmatpush.bf16.msra.mxu0 %v5633
    %5873 = vmatpush.bf16.msra.mxu0 %v5631
    %5874 = vmatmul.bf16.gmra.mxu0 %v5000
    %v5875 = vpop.f32.mrf.mxu0
    %v5876 = vadd.f32 %v5863, %v5875
    %v5877 = vpop.f32.mrf.mxu0
    %5878 = vdwg.mxu0
    %5879 = vmatpush.bf16.msra.mxu0 %v5534
    %5880 = vmatpush.bf16.msra.mxu0 %v5532
    %5881 = vmatpush.bf16.msra.mxu0 %v5530
    %5882 = vmatpush.bf16.msra.mxu0 %v5528
    %5883 = vmatpush.bf16.msra.mxu0 %v5526
    %5884 = vmatpush.bf16.msra.mxu0 %v5524
    %5885 = vmatpush.bf16.msra.mxu0 %v5522
    %5886 = vmatpush.bf16.msra.mxu0 %v5520
    %5887 = vmatmul.bf16.gmra.mxu0 %v4993
    %v5888 = vpop.f32.mrf.mxu0
    %v5889 = vadd.f32 %v5132, %v5888
    %v5890 = vpop.f32.mrf.mxu0
    %5891 = vdwg.mxu0
    %5892 = vmatpush.bf16.msra.mxu0 %v5550
    %5893 = vmatpush.bf16.msra.mxu0 %v5548
    %5894 = vmatpush.bf16.msra.mxu0 %v5546
    %5895 = vmatpush.bf16.msra.mxu0 %v5544
    %5896 = vmatpush.bf16.msra.mxu0 %v5542
    %5897 = vmatpush.bf16.msra.mxu0 %v5540
    %5898 = vmatpush.bf16.msra.mxu0 %v5538
    %5899 = vmatpush.bf16.msra.mxu0 %v5536
    %5900 = vmatmul.bf16.gmra.mxu0 %v4994
    %v5901 = vpop.f32.mrf.mxu0
    %v5902 = vadd.f32 %v5889, %v5901
    %v5903 = vpop.f32.mrf.mxu0
    %5904 = vdwg.mxu0
    %5905 = vmatpush.bf16.msra.mxu0 %v5566
    %5906 = vmatpush.bf16.msra.mxu0 %v5564
    %5907 = vmatpush.bf16.msra.mxu0 %v5562
    %5908 = vmatpush.bf16.msra.mxu0 %v5560
    %5909 = vmatpush.bf16.msra.mxu0 %v5558
    %5910 = vmatpush.bf16.msra.mxu0 %v5556
    %5911 = vmatpush.bf16.msra.mxu0 %v5554
    %5912 = vmatpush.bf16.msra.mxu0 %v5552
    %5913 = vmatmul.bf16.gmra.mxu0 %v4995
    %v5914 = vpop.f32.mrf.mxu0
    %v5915 = vadd.f32 %v5902, %v5914
    %v5916 = vpop.f32.mrf.mxu0
    %5917 = vdwg.mxu0
    %5918 = vmatpush.bf16.msra.mxu0 %v5582
    %5919 = vmatpush.bf16.msra.mxu0 %v5580
    %5920 = vmatpush.bf16.msra.mxu0 %v5578
    %5921 = vmatpush.bf16.msra.mxu0 %v5576
    %5922 = vmatpush.bf16.msra.mxu0 %v5574
    %5923 = vmatpush.bf16.msra.mxu0 %v5572
    %5924 = vmatpush.bf16.msra.mxu0 %v5570
    %5925 = vmatpush.bf16.msra.mxu0 %v5568
    %5926 = vmatmul.bf16.gmra.mxu0 %v4996
    %v5927 = vpop.f32.mrf.mxu0
    %v5928 = vadd.f32 %v5915, %v5927
    %v5929 = vpop.f32.mrf.mxu0
    %5930 = vdwg.mxu0
    %5931 = vmatpush.bf16.msra.mxu0 %v5598
    %5932 = vmatpush.bf16.msra.mxu0 %v5596
    %5933 = vmatpush.bf16.msra.mxu0 %v5594
    %5934 = vmatpush.bf16.msra.mxu0 %v5592
    %5935 = vmatpush.bf16.msra.mxu0 %v5590
    %5936 = vmatpush.bf16.msra.mxu0 %v5588
    %5937 = vmatpush.bf16.msra.mxu0 %v5586
    %5938 = vmatpush.bf16.msra.mxu0 %v5584
    %5939 = vmatmul.bf16.gmra.mxu0 %v4997
    %v5940 = vpop.f32.mrf.mxu0
    %v5941 = vadd.f32 %v5928, %v5940
    %v5942 = vpop.f32.mrf.mxu0
    %5943 = vdwg.mxu0
    %5944 = vmatpush.bf16.msra.mxu0 %v5614
    %5945 = vmatpush.bf16.msra.mxu0 %v5612
    %5946 = vmatpush.bf16.msra.mxu0 %v5610
    %5947 = vmatpush.bf16.msra.mxu0 %v5608
    %5948 = vmatpush.bf16.msra.mxu0 %v5606
    %5949 = vmatpush.bf16.msra.mxu0 %v5604
    %5950 = vmatpush.bf16.msra.mxu0 %v5602
    %5951 = vmatpush.bf16.msra.mxu0 %v5600
    %5952 = vmatmul.bf16.gmra.mxu0 %v4998
    %v5953 = vpop.f32.mrf.mxu0
    %v5954 = vadd.f32 %v5941, %v5953
    %v5955 = vpop.f32.mrf.mxu0
    %5956 = vdwg.mxu0
    %5957 = vmatpush.bf16.msra.mxu0 %v5630
    %5958 = vmatpush.bf16.msra.mxu0 %v5628
    %5959 = vmatpush.bf16.msra.mxu0 %v5626
    %5960 = vmatpush.bf16.msra.mxu0 %v5624
    %5961 = vmatpush.bf16.msra.mxu0 %v5622
    %5962 = vmatpush.bf16.msra.mxu0 %v5620
    %5963 = vmatpush.bf16.msra.mxu0 %v5618
    %5964 = vmatpush.bf16.msra.mxu0 %v5616
    %5965 = vmatmul.bf16.gmra.mxu0 %v4999
    %v5966 = vpop.f32.mrf.mxu0
    %v5967 = vadd.f32 %v5954, %v5966
    %v5968 = vpop.f32.mrf.mxu0
    %5969 = vdwg.mxu0
    %5970 = vmatpush.bf16.msra.mxu0 %v5646
    %5971 = vmatpush.bf16.msra.mxu0 %v5644
    %5972 = vmatpush.bf16.msra.mxu0 %v5642
    %5973 = vmatpush.bf16.msra.mxu0 %v5640
    %5974 = vmatpush.bf16.msra.mxu0 %v5638
    %5975 = vmatpush.bf16.msra.mxu0 %v5636
    %5976 = vmatpush.bf16.msra.mxu0 %v5634
    %5977 = vmatpush.bf16.msra.mxu0 %v5632
    %5978 = vmatmul.bf16.gmra.mxu0 %v5000
    %v5979 = vpop.f32.mrf.mxu0
    %v5980 = vadd.f32 %v5967, %v5979
    %v5981 = vpop.f32.mrf.mxu0
    %5982 = vdwg.mxu0
    %v5983 = vmax.f32 %v5876, 0.0
    %v5984 = vmax.f32 %v5980, 0.0
    %v5985 = vpack.c.bf16 %v5983, %v5983
    %v5986 = vpack.c.bf16 %v5984, %v5984
    %v5987 = vld [vmem:[#allocation7] sm:$0xf]
    %v5988 = vld [vmem:[#allocation7 + $0x4] sm:$0xf]
    %v5989 = vld [vmem:[#allocation7 + $0x8] sm:$0xf]
    %v5990 = vld [vmem:[#allocation7 + $0xc] sm:$0xf]
    %v5991 = vld [vmem:[#allocation7 + $0x10] sm:$0xf]
    %v5992 = vld [vmem:[#allocation7 + $0x14] sm:$0xf]
    %v5993 = vld [vmem:[#allocation7 + $0x18] sm:$0xf]
    %v5994 = vld [vmem:[#allocation7 + $0x1c] sm:$0xf]
    %v5995 = vld [vmem:[#allocation7 + $0x20] sm:$0xf]
    %v5996 = vld [vmem:[#allocation7 + $0x24] sm:$0xf]
    %v5997 = vld [vmem:[#allocation7 + $0x28] sm:$0xf]
    %v5998 = vld [vmem:[#allocation7 + $0x2c] sm:$0xf]
    %v5999 = vld [vmem:[#allocation7 + $0x30] sm:$0xf]
    %v6000 = vld [vmem:[#allocation7 + $0x34] sm:$0xf]
    %v6001 = vld [vmem:[#allocation7 + $0x38] sm:$0xf]
    %v6002 = vld [vmem:[#allocation7 + $0x3c] sm:$0xf]
    %v6003 = vld [vmem:[#allocation7 + $0x40] sm:$0xf]
    %v6004 = vld [vmem:[#allocation7 + $0x44] sm:$0xf]
    %v6005 = vld [vmem:[#allocation7 + $0x48] sm:$0xf]
    %v6006 = vld [vmem:[#allocation7 + $0x4c] sm:$0xf]
    %v6007 = vld [vmem:[#allocation7 + $0x50] sm:$0xf]
    %v6008 = vld [vmem:[#allocation7 + $0x54] sm:$0xf]
    %v6009 = vld [vmem:[#allocation7 + $0x58] sm:$0xf]
    %v6010 = vld [vmem:[#allocation7 + $0x5c] sm:$0xf]
    %v6011 = vld [vmem:[#allocation7 + $0x60] sm:$0xf]
    %v6012 = vld [vmem:[#allocation7 + $0x64] sm:$0xf]
    %v6013 = vld [vmem:[#allocation7 + $0x68] sm:$0xf]
    %v6014 = vld [vmem:[#allocation7 + $0x6c] sm:$0xf]
    %v6015 = vld [vmem:[#allocation7 + $0x70] sm:$0xf]
    %v6016 = vld [vmem:[#allocation7 + $0x74] sm:$0xf]
    %v6017 = vld [vmem:[#allocation7 + $0x78] sm:$0xf]
    %v6018 = vld [vmem:[#allocation7 + $0x7c] sm:$0xf]
    %v6019 = vld [vmem:[#allocation12 + $0x12] sm:$0x1]
    %v6021 = vperm.slane %v6019, 0
    %v6055 = vunpack.c.l.b16 %v5987
    %v6056 = vunpack.c.l.b16 %v5988
    %v6057 = vunpack.c.l.b16 %v5989
    %v6058 = vunpack.c.l.b16 %v5990
    %v6059 = vunpack.c.l.b16 %v5991
    %v6060 = vunpack.c.l.b16 %v5992
    %v6061 = vunpack.c.l.b16 %v5993
    %v6062 = vunpack.c.l.b16 %v5994
    %v6063 = vunpack.c.l.b16 %v5995
    %v6064 = vunpack.c.l.b16 %v5996
    %v6065 = vunpack.c.l.b16 %v5997
    %v6066 = vunpack.c.l.b16 %v5998
    %v6067 = vunpack.c.l.b16 %v5999
    %v6068 = vunpack.c.l.b16 %v6000
    %v6069 = vunpack.c.l.b16 %v6001
    %v6070 = vunpack.c.l.b16 %v6002
    %v6071 = vunpack.c.l.b16 %v6003
    %v6072 = vunpack.c.l.b16 %v6004
    %v6073 = vunpack.c.l.b16 %v6005
    %v6074 = vunpack.c.l.b16 %v6006
    %v6075 = vunpack.c.l.b16 %v6007
    %v6076 = vunpack.c.l.b16 %v6008
    %v6077 = vunpack.c.l.b16 %v6009
    %v6078 = vunpack.c.l.b16 %v6010
    %v6079 = vunpack.c.l.b16 %v6011
    %v6080 = vunpack.c.l.b16 %v6012
    %v6081 = vunpack.c.l.b16 %v6013
    %v6082 = vunpack.c.l.b16 %v6014
    %v6083 = vunpack.c.l.b16 %v6015
    %v6084 = vunpack.c.l.b16 %v6016
    %v6085 = vunpack.c.l.b16 %v6017
    %v6086 = vunpack.c.l.b16 %v6018
    %v6087 = vpack.c.b16 %v6056, %v6055
    %v6088 = vpack.c.b16 %v6058, %v6057
    %v6089 = vpack.c.b16 %v6060, %v6059
    %v6090 = vpack.c.b16 %v6062, %v6061
    %v6091 = vpack.c.b16 %v6064, %v6063
    %v6092 = vpack.c.b16 %v6066, %v6065
    %v6093 = vpack.c.b16 %v6068, %v6067
    %v6094 = vpack.c.b16 %v6070, %v6069
    %v6095 = vpack.c.b16 %v6072, %v6071
    %v6096 = vpack.c.b16 %v6074, %v6073
    %v6097 = vpack.c.b16 %v6076, %v6075
    %v6098 = vpack.c.b16 %v6078, %v6077
    %v6099 = vpack.c.b16 %v6080, %v6079
    %v6100 = vpack.c.b16 %v6082, %v6081
    %v6101 = vpack.c.b16 %v6084, %v6083
    %v6102 = vpack.c.b16 %v6086, %v6085
    %6119 = vmatpush.bf16.msra.mxu0 %v6094
    %6120 = vmatpush.bf16.msra.mxu0 %v6093
    %6121 = vmatpush.bf16.msra.mxu0 %v6092
    %6122 = vmatpush.bf16.msra.mxu0 %v6091
    %6123 = vmatpush.bf16.msra.mxu0 %v6090
    %6124 = vmatpush.bf16.msra.mxu0 %v6089
    %6125 = vmatpush.bf16.msra.mxu0 %v6088
    %6126 = vmatpush.bf16.msra.mxu0 %v6087
    %6127 = vmatmul.bf16.gmra.mxu0 %v5985
    %v6128 = vpop.f32.mrf.mxu0
    %v6129 = vadd.f32 %v6021, %v6128
    %v6130 = vpop.f32.mrf.mxu0
    %6131 = vdwg.mxu0
    %6132 = vmatpush.bf16.msra.mxu0 %v6102
    %6133 = vmatpush.bf16.msra.mxu0 %v6101
    %6134 = vmatpush.bf16.msra.mxu0 %v6100
    %6135 = vmatpush.bf16.msra.mxu0 %v6099
    %6136 = vmatpush.bf16.msra.mxu0 %v6098
    %6137 = vmatpush.bf16.msra.mxu0 %v6097
    %6138 = vmatpush.bf16.msra.mxu0 %v6096
    %6139 = vmatpush.bf16.msra.mxu0 %v6095
    %6140 = vmatmul.bf16.gmra.mxu0 %v5986
    %v6141 = vpop.f32.mrf.mxu0
    %v6142 = vadd.f32 %v6129, %v6141
    %v6143 = vpop.f32.mrf.mxu0
    %6144 = vdwg.mxu0
    %v6145 = vmax.f32 %v6142, 0.0
    %v6146 = vpack.c.bf16 %v6145, %v6145
    %v6147 = vld [vmem:[#allocation9] sm:$0xf]
    %v6148 = vld [vmem:[#allocation9 + $0x4] sm:$0xf]
    %v6149 = vld [vmem:[#allocation9 + $0x8] sm:$0xf]
    %v6150 = vld [vmem:[#allocation9 + $0xc] sm:$0xf]
    %v6151 = vld [vmem:[#allocation9 + $0x10] sm:$0xf]
    %v6152 = vld [vmem:[#allocation9 + $0x14] sm:$0xf]
    %v6153 = vld [vmem:[#allocation9 + $0x18] sm:$0xf]
    %v6154 = vld [vmem:[#allocation9 + $0x1c] sm:$0xf]
    %v6155 = vld [vmem:[#allocation9 + $0x20] sm:$0xf]
    %v6156 = vld [vmem:[#allocation9 + $0x24] sm:$0xf]
    %v6157 = vld [vmem:[#allocation9 + $0x28] sm:$0xf]
    %v6158 = vld [vmem:[#allocation9 + $0x2c] sm:$0xf]
    %v6159 = vld [vmem:[#allocation9 + $0x30] sm:$0xf]
    %v6160 = vld [vmem:[#allocation9 + $0x34] sm:$0xf]
    %v6161 = vld [vmem:[#allocation9 + $0x38] sm:$0xf]
    %v6162 = vld [vmem:[#allocation9 + $0x3c] sm:$0xf]
    %v6163 = vld [vmem:[#allocation12 + $0x13] sm:$0x1]
    %v6165 = vperm.slane %v6163, 0
    %v6183 = vunpack.c.l.b16 %v6147
    %v6184 = vunpack.c.l.b16 %v6148
    %v6185 = vunpack.c.l.b16 %v6149
    %v6186 = vunpack.c.l.b16 %v6150
    %v6187 = vunpack.c.l.b16 %v6151
    %v6188 = vunpack.c.l.b16 %v6152
    %v6189 = vunpack.c.l.b16 %v6153
    %v6190 = vunpack.c.l.b16 %v6154
    %v6191 = vunpack.c.l.b16 %v6155
    %v6192 = vunpack.c.l.b16 %v6156
    %v6193 = vunpack.c.l.b16 %v6157
    %v6194 = vunpack.c.l.b16 %v6158
    %v6195 = vunpack.c.l.b16 %v6159
    %v6196 = vunpack.c.l.b16 %v6160
    %v6197 = vunpack.c.l.b16 %v6161
    %v6198 = vunpack.c.l.b16 %v6162
    %v6199 = vpack.c.b16 %v6184, %v6183
    %v6200 = vpack.c.b16 %v6186, %v6185
    %v6201 = vpack.c.b16 %v6188, %v6187
    %v6202 = vpack.c.b16 %v6190, %v6189
    %v6203 = vpack.c.b16 %v6192, %v6191
    %v6204 = vpack.c.b16 %v6194, %v6193
    %v6205 = vpack.c.b16 %v6196, %v6195
    %v6206 = vpack.c.b16 %v6198, %v6197
    %6215 = vmatpush.bf16.msra.mxu0 %v6206
    %6216 = vmatpush.bf16.msra.mxu0 %v6205
    %6217 = vmatpush.bf16.msra.mxu0 %v6204
    %6218 = vmatpush.bf16.msra.mxu0 %v6203
    %6219 = vmatpush.bf16.msra.mxu0 %v6202
    %6220 = vmatpush.bf16.msra.mxu0 %v6201
    %6221 = vmatpush.bf16.msra.mxu0 %v6200
    %6222 = vmatpush.bf16.msra.mxu0 %v6199
    %6223 = vmatmul.bf16.gmra.mxu0 %v6146
    %v6224 = vpop.f32.mrf.mxu0
    %v6225 = vadd.f32 %v6165, %v6224
    %v6226 = vpop.f32.mrf.mxu0
    %6227 = vdwg.mxu0
    %v6228 = vmax.f32 %v6225, 0.0
    %v6229 = vpack.c.bf16 %v6228, %v6228
    %v6230 = vld [vmem:[#allocation10] sm:$0xf]
    %v6231 = vld [vmem:[#allocation10 + $0x4] sm:$0xf]
    %v6232 = vld [vmem:[#allocation10 + $0x8] sm:$0xf]
    %v6233 = vld [vmem:[#allocation10 + $0xc] sm:$0xf]
    %v6234 = vld [vmem:[#allocation10 + $0x10] sm:$0xf]
    %v6235 = vld [vmem:[#allocation10 + $0x14] sm:$0xf]
    %v6236 = vld [vmem:[#allocation10 + $0x18] sm:$0xf]
    %v6237 = vld [vmem:[#allocation10 + $0x1c] sm:$0xf]
    %v6238 = vld [vmem:[#allocation10 + $0x20] sm:$0xf]
    %v6239 = vld [vmem:[#allocation10 + $0x24] sm:$0xf]
    %v6240 = vld [vmem:[#allocation10 + $0x28] sm:$0xf]
    %v6241 = vld [vmem:[#allocation10 + $0x2c] sm:$0xf]
    %v6242 = vld [vmem:[#allocation10 + $0x30] sm:$0xf]
    %v6243 = vld [vmem:[#allocation10 + $0x34] sm:$0xf]
    %v6244 = vld [vmem:[#allocation10 + $0x38] sm:$0xf]
    %v6245 = vld [vmem:[#allocation10 + $0x3c] sm:$0xf]
    %v6246 = vld [vmem:[#allocation12 + $0x14] sm:$0x1]
    %v6248 = vperm.slane %v6246, 0
    %v6266 = vunpack.c.l.b16 %v6230
    %v6267 = vunpack.c.l.b16 %v6231
    %v6268 = vunpack.c.l.b16 %v6232
    %v6269 = vunpack.c.l.b16 %v6233
    %v6270 = vunpack.c.l.b16 %v6234
    %v6271 = vunpack.c.l.b16 %v6235
    %v6272 = vunpack.c.l.b16 %v6236
    %v6273 = vunpack.c.l.b16 %v6237
    %v6274 = vunpack.c.l.b16 %v6238
    %v6275 = vunpack.c.l.b16 %v6239
    %v6276 = vunpack.c.l.b16 %v6240
    %v6277 = vunpack.c.l.b16 %v6241
    %v6278 = vunpack.c.l.b16 %v6242
    %v6279 = vunpack.c.l.b16 %v6243
    %v6280 = vunpack.c.l.b16 %v6244
    %v6281 = vunpack.c.l.b16 %v6245
    %v6282 = vpack.c.b16 %v6267, %v6266
    %v6283 = vpack.c.b16 %v6269, %v6268
    %v6284 = vpack.c.b16 %v6271, %v6270
    %v6285 = vpack.c.b16 %v6273, %v6272
    %v6286 = vpack.c.b16 %v6275, %v6274
    %v6287 = vpack.c.b16 %v6277, %v6276
    %v6288 = vpack.c.b16 %v6279, %v6278
    %v6289 = vpack.c.b16 %v6281, %v6280
    %6298 = vmatpush.bf16.msra.mxu0 %v6289
    %6299 = vmatpush.bf16.msra.mxu0 %v6288
    %6300 = vmatpush.bf16.msra.mxu0 %v6287
    %6301 = vmatpush.bf16.msra.mxu0 %v6286
    %6302 = vmatpush.bf16.msra.mxu0 %v6285
    %6303 = vmatpush.bf16.msra.mxu0 %v6284
    %6304 = vmatpush.bf16.msra.mxu0 %v6283
    %6305 = vmatpush.bf16.msra.mxu0 %v6282
    %6306 = vmatmul.bf16.gmra.mxu0 %v6229
    %v6307 = vpop.f32.mrf.mxu0
    %v6308 = vadd.f32 %v6248, %v6307
    %v6309 = vpop.f32.mrf.mxu0
    %6310 = vdwg.mxu0
    %6311 = vst [vmem:[%s8] sm:$0xff] %v6308
    // Predicated region
    $region62: #{net2530_forward.1} parent=1 // pred_check
      _
    $region63: #{net2530_forward.1} parent=1 // pred_check_branch
      %6313 = sbr.rel (0) target = $region65
    $region64: #{net2530_forward.1} parent=1 // pred_region
      _
    $region65: #{net2530_forward.1} parent=1 // pred_fallthru
      _
    // Predicated region
    $region66: #{net2530_forward.1} parent=1 // pred_check
      _
    $region67: #{net2530_forward.1} parent=1 // pred_check_branch
      %6315 = sbr.rel (0) target = $region69
    $region68: #{net2530_forward.1} parent=1 // pred_region
      _
    $region69: #{net2530_forward.1} parent=1 // pred_fallthru
      _
    %6316 = vsyncpa [#allocation3], 1
    %6317 = vsyncpa [#allocation5], 1
    %6318 = vsyncpa [#allocation8], 1
    %6319 = vsyncpa [#allocation11], 1

</llo_original>
